<compile_context>
chip_gen: v6e
topology: v6e:2x2x1
jax: 0.10.0
libtpu: 0.0.40
codegen_flags: <defaults>
</compile_context>

<pallas_src>
import math
from functools import partial

import jax
import jax.numpy as jnp
from jax import lax
from jax.experimental import pallas as pl
from jax.experimental.pallas import tpu as pltpu


# ----------------------------------------------------------------------------
# Fused kernel: grid axis = layer index (sequential, state carried in VMEM).
# ----------------------------------------------------------------------------
def fused_decoder_kernel(x_ref,
                         ln1g_ref, ln1b_ref, wqkv_ref, wo_ref, bo_ref,
                         ln2g_ref, ln2b_ref, w1_ref, b1_ref, w2_ref, b2_ref,
                         lmw_ref, lmb_ref,
                         out_ref,
                         x_scr,
                         *, B, T, n_head, head_size, eps, scale):
    l = pl.program_id(0)

    # Layer 0: bring embedded input into the persistent VMEM activation.
    @pl.when(l == 0)
    def _():
        x_scr[...] = x_ref[...]

    x = x_scr[...]                                   # (B*T, C)
    BT, C = x.shape

    # ---------------- LayerNorm 1 (one-pass stats) ----------------
    mu = jnp.mean(x, axis=-1, keepdims=True)
    var = jnp.mean(x * x, axis=-1, keepdims=True) - mu * mu
    xn = (x - mu) * lax.rsqrt(var + eps) * ln1g_ref[0] + ln1b_ref[0]

    # ---------------- Causal multi-head self-attention ----------------
    qkv = jnp.dot(xn, wqkv_ref[0], preferred_element_type=jnp.float32)   # (BT, 3C)
    q = qkv[:, :C].reshape(B, T, C)
    k = qkv[:, C:2 * C].reshape(B, T, C)
    v = qkv[:, 2 * C:].reshape(B, T, C)

    # Additive causal bias, built once, shared by every head.
    row = lax.broadcasted_iota(jnp.int32, (T, T), 0)
    col = lax.broadcasted_iota(jnp.int32, (T, T), 1)
    mask_bias = jnp.where(col <= row, 0.0, -1e30)[None, :, :]            # (1, T, T)

    wo_l = wo_ref[0]                                 # (C, C)
    attn = None
    for h in range(n_head):                          # static unroll; 128-lane aligned slices
        s = h * head_size
        qh = q[:, :, s:s + head_size]                # (B, T, D)
        kh = k[:, :, s:s + head_size]
        vh = v[:, :, s:s + head_size]
        # scores: contract the head dim directly (no explicit transpose)
        wei = jnp.einsum('btd,bsd->bts', qh, kh,
                         preferred_element_type=jnp.float32) * scale + mask_bias
        wei = wei - jnp.max(wei, axis=-1, keepdims=True)
        p = jnp.exp(wei)
        p = p * pl.reciprocal(jnp.sum(p, axis=-1, keepdims=True), approx=True)
        ctx = jnp.einsum('bts,bsd->btd', p, vh,
                         preferred_element_type=jnp.float32)             # (B, T, D)
        # fold the head output straight into the output projection (no concat)
        contrib = jnp.dot(ctx.reshape(BT, head_size), wo_l[s:s + head_size, :],
                          preferred_element_type=jnp.float32)            # (BT, C)
        attn = contrib if attn is None else attn + contrib
    attn = attn + bo_ref[0]

    x = x + attn                                     # dropout: identity (eval)

    # ---------------- LayerNorm 2 + FeedForward ----------------
    mu2 = jnp.mean(x, axis=-1, keepdims=True)
    var2 = jnp.mean(x * x, axis=-1, keepdims=True) - mu2 * mu2
    xn2 = (x - mu2) * lax.rsqrt(var2 + eps) * ln2g_ref[0] + ln2b_ref[0]
    h1 = jnp.maximum(
        jnp.dot(xn2, w1_ref[0], preferred_element_type=jnp.float32) + b1_ref[0], 0.0)
    ff = jnp.dot(h1, w2_ref[0], preferred_element_type=jnp.float32) + b2_ref[0]

    x_new = x + ff                                   # dropout: identity (eval)
    x_scr[...] = x_new

    # ---------------- lm_head (last layer only, lane-dense padded vocab) ----
    @pl.when(l == pl.num_programs(0) - 1)
    def _():
        out_ref[...] = (jnp.dot(x_new, lmw_ref[...], preferred_element_type=jnp.float32)
                        + lmb_ref[0])


# ----------------------------------------------------------------------------
# Wrapper: single pallas_call for the whole stack of blocks + lm_head.
# ----------------------------------------------------------------------------
def fused_forward(x2d, layers, lm_w, lm_b, *, B, T, n_head):
    BT, C = x2d.shape
    n_layer = layers["wqkv"].shape[0]
    Vp = lm_w.shape[1]
    C4 = 4 * C
    head_size = C // n_head

    layer3 = lambda l: (l, 0, 0)   # stream per-layer weight slab l
    const2 = lambda l: (0, 0)      # resident across all layers

    in_specs = [
        pl.BlockSpec((BT, C), const2),               # x (consumed at layer 0)
        pl.BlockSpec((1, 1, C), layer3),             # ln1 gamma
        pl.BlockSpec((1, 1, C), layer3),             # ln1 beta
        pl.BlockSpec((1, C, 3 * C), layer3),         # packed q/k/v weight
        pl.BlockSpec((1, C, C), layer3),             # attn out-proj weight
        pl.BlockSpec((1, 1, C), layer3),             # attn out-proj bias
        pl.BlockSpec((1, 1, C), layer3),             # ln2 gamma
        pl.BlockSpec((1, 1, C), layer3),             # ln2 beta
        pl.BlockSpec((1, C, C4), layer3),            # ff linear weight
        pl.BlockSpec((1, 1, C4), layer3),            # ff linear bias
        pl.BlockSpec((1, C4, C), layer3),            # ff proj weight
        pl.BlockSpec((1, 1, C), layer3),             # ff proj bias
        pl.BlockSpec((C, Vp), const2),               # lm_head weight (resident)
        pl.BlockSpec((1, Vp), const2),               # lm_head bias
    ]

    kernel = partial(fused_decoder_kernel, B=B, T=T, n_head=n_head,
                     head_size=head_size, eps=1e-5, scale=1.0 / math.sqrt(C))

    return pl.pallas_call(
        kernel,
        out_shape=jax.ShapeDtypeStruct((BT, Vp), jnp.float32),
        grid=(n_layer,),
        in_specs=in_specs,
        out_specs=pl.BlockSpec((BT, Vp), const2),
        scratch_shapes=[pltpu.VMEM((BT, C), jnp.float32)],   # activation carried across layers
        compiler_params=pltpu.CompilerParams(
            dimension_semantics=("arbitrary",)),             # layers are sequential
    )(x2d,
      layers["ln1_g"], layers["ln1_b"], layers["wqkv"], layers["wo"], layers["bo"],
      layers["ln2_g"], layers["ln2_b"], layers["w1"], layers["b1"],
      layers["w2"], layers["b2"],
      lm_w, lm_b)


# ----------------------------------------------------------------------------
# Parameter init (deterministic, synthetic) + full forward
# ----------------------------------------------------------------------------
def init_params(key, vocab_size, vocab_padded, block_size, n_embd, n_layer):
    def nrm(k, shape, scl=0.02):
        return (scl * jax.random.normal(k, shape)).astype(jnp.float32)

    keys = jax.random.split(key, 7)
    C, C4 = n_embd, 4 * n_embd
    lm_w = nrm(keys[2], (C, vocab_size))
    lm_b = jnp.zeros((1, vocab_size), jnp.float32)
    pad = vocab_padded - vocab_size
    return {
        "tok_emb": nrm(keys[0], (vocab_size, C)),
        "pos_emb": nrm(keys[1], (block_size, C)),
        # pad vocab dim to a multiple of 128 -> lane-dense logits store
        "lm_w": jnp.pad(lm_w, ((0, 0), (0, pad))),
        "lm_b": jnp.pad(lm_b, ((0, 0), (0, pad))),
        "layers": {
            "ln1_g": jnp.ones((n_layer, 1, C), jnp.float32),
            "ln1_b": jnp.zeros((n_layer, 1, C), jnp.float32),
            "wqkv": nrm(keys[3], (n_layer, C, 3 * C)),
            "wo": nrm(keys[4], (n_layer, C, C)),
            "bo": jnp.zeros((n_layer, 1, C), jnp.float32),
            "ln2_g": jnp.ones((n_layer, 1, C), jnp.float32),
            "ln2_b": jnp.zeros((n_layer, 1, C), jnp.float32),
            "w1": nrm(keys[5], (n_layer, C, C4)),
            "b1": jnp.zeros((n_layer, 1, C4), jnp.float32),
            "w2": nrm(keys[6], (n_layer, C4, C)),
            "b2": jnp.zeros((n_layer, 1, C), jnp.float32),
        },
    }


def decoder_transformer_forward(idx, params, n_head, vocab_size):
    # Embedding lookup is glue (gather) in plain JAX.
    B, T = idx.shape
    C = params["tok_emb"].shape[1]
    tok = jnp.take(params["tok_emb"], idx, axis=0)            # (B, T, C)
    pos = params["pos_emb"][:T][None, :, :]                   # (1, T, C)
    x2d = (tok + pos).astype(jnp.float32).reshape(B * T, C)   # lane-dense (BT, C)
    logits_padded = fused_forward(x2d, params["layers"], params["lm_w"], params["lm_b"],
                                  B=B, T=T, n_head=n_head)
    return logits_padded.reshape(B, T, -1)[:, :, :vocab_size]


if __name__ == "__main__":
    # Small shapes consistent with the module (scaled down from 384/6; head_size
    # chosen = 128 so every head slice / matmul operand is lane-dense).
    VOCAB = 96
    VOCAB_PAD = 128
    BLOCK_SIZE = 32      # T (matches the module's block_size)
    N_EMBD = 256
    N_HEAD = 2
    N_LAYER = 8          # matches the module (8 Blocks)
    B = 2

    key = jax.random.PRNGKey(0)
    pkey, ikey = jax.random.split(key)
    params = init_params(pkey, VOCAB, VOCAB_PAD, BLOCK_SIZE, N_EMBD, N_LAYER)
    idx = jax.random.randint(ikey, (B, BLOCK_SIZE), 0, VOCAB, dtype=jnp.int32)

    logits = decoder_transformer_forward(idx, params, N_HEAD, VOCAB)
    logits = jax.block_until_ready(logits)
    assert logits.shape == (B, BLOCK_SIZE, VOCAB)
    assert bool(jnp.all(jnp.isfinite(logits)))
    print("KERNEL_OK")
</pallas_src>

<mosaic_0001>
module attributes {stable_mosaic.version = 11 : i64} {
  func.func @fused_decoder_kernel(%arg0: i32, %arg1: memref<64x256xf32, #tpu.memory_space<vmem>>, %arg2: memref<1x1x256xf32, #tpu.memory_space<vmem>>, %arg3: memref<1x1x256xf32, #tpu.memory_space<vmem>>, %arg4: memref<1x256x768xf32, #tpu.memory_space<vmem>>, %arg5: memref<1x256x256xf32, #tpu.memory_space<vmem>>, %arg6: memref<1x1x256xf32, #tpu.memory_space<vmem>>, %arg7: memref<1x1x256xf32, #tpu.memory_space<vmem>>, %arg8: memref<1x1x256xf32, #tpu.memory_space<vmem>>, %arg9: memref<1x256x1024xf32, #tpu.memory_space<vmem>>, %arg10: memref<1x1x1024xf32, #tpu.memory_space<vmem>>, %arg11: memref<1x1024x256xf32, #tpu.memory_space<vmem>>, %arg12: memref<1x1x256xf32, #tpu.memory_space<vmem>>, %arg13: memref<256x128xf32, #tpu.memory_space<vmem>>, %arg14: memref<1x128xf32, #tpu.memory_space<vmem>>, %arg15: memref<64x128xf32, #tpu.memory_space<vmem>>, %arg16: memref<64x256xf32, #tpu.memory_space<vmem>>) attributes {dimension_semantics = [#tpu.dimension_semantics<arbitrary>], iteration_bounds = array<i64: 8>, scalar_prefetch = 0 : i64, scratch_operands = 1 : i64, tpu.core_type = #tpu.core_type<tc>, window_params = [{pipeline_mode = #tpu.pipeline_mode<synchronous>, transform_indices = @transform_0, window_bounds = array<i64: 64, 256>}, {transform_indices = @transform_1, window_bounds = array<i64: 1, 1, 256>}, {transform_indices = @transform_2, window_bounds = array<i64: 1, 1, 256>}, {transform_indices = @transform_3, window_bounds = array<i64: 1, 256, 768>}, {transform_indices = @transform_4, window_bounds = array<i64: 1, 256, 256>}, {transform_indices = @transform_5, window_bounds = array<i64: 1, 1, 256>}, {transform_indices = @transform_6, window_bounds = array<i64: 1, 1, 256>}, {transform_indices = @transform_7, window_bounds = array<i64: 1, 1, 256>}, {transform_indices = @transform_8, window_bounds = array<i64: 1, 256, 1024>}, {transform_indices = @transform_9, window_bounds = array<i64: 1, 1, 1024>}, {transform_indices = @transform_10, window_bounds = array<i64: 1, 1024, 256>}, {transform_indices = @transform_11, window_bounds = array<i64: 1, 1, 256>}, {pipeline_mode = #tpu.pipeline_mode<synchronous>, transform_indices = @transform_12, window_bounds = array<i64: 256, 128>}, {pipeline_mode = #tpu.pipeline_mode<synchronous>, transform_indices = @transform_13, window_bounds = array<i64: 1, 128>}, {pipeline_mode = #tpu.pipeline_mode<synchronous>, transform_indices = @transform_14, window_bounds = array<i64: 64, 128>}]} {
    %c0_i32 = arith.constant 0 : i32
    %0 = arith.cmpi eq, %arg0, %c0_i32 : i32
    %1 = arith.extui %0 : i1 to i32
    %c0_i32_0 = arith.constant 0 : i32
    %2 = arith.cmpi ne, %1, %c0_i32_0 : i32
    scf.if %2 {
      %c0_65 = arith.constant 0 : index
      %c0_66 = arith.constant 0 : index
      %145 = vector.load %arg1[%c0_65, %c0_66] : memref<64x256xf32, #tpu.memory_space<vmem>>, vector<64x256xf32>
      %c0_67 = arith.constant 0 : index
      %c0_68 = arith.constant 0 : index
      %146 = vector.load %arg16[%c0_67, %c0_68] : memref<64x256xf32, #tpu.memory_space<vmem>>, vector<64x256xf32>
      tpu.vector_store %arg16[%c0_67, %c0_68], %145 {strides = array<i32>} : memref<64x256xf32, #tpu.memory_space<vmem>>, vector<64x256xf32>,
    } else {
    }
    %c0 = arith.constant 0 : index
    %c0_1 = arith.constant 0 : index
    %3 = vector.load %arg16[%c0, %c0_1] : memref<64x256xf32, #tpu.memory_space<vmem>>, vector<64x256xf32>
    %cst = arith.constant dense<0.000000e+00> : vector<64xf32>
    %4 = vector.multi_reduction <add>, %3, %cst [1] : vector<64x256xf32> to vector<64xf32>
    %5 = vector.shape_cast %4 : vector<64xf32> to vector<64x1xf32>
    %cst_2 = arith.constant 2.560000e+02 : f32
    %6 = vector.broadcast %cst_2 : f32 to vector<64x1xf32>
    %7 = arith.divf %5, %6 : vector<64x1xf32>
    %8 = arith.mulf %3, %3 : vector<64x256xf32>
    %cst_3 = arith.constant dense<0.000000e+00> : vector<64xf32>
    %9 = vector.multi_reduction <add>, %8, %cst_3 [1] : vector<64x256xf32> to vector<64xf32>
    %10 = vector.shape_cast %9 : vector<64xf32> to vector<64x1xf32>
    %cst_4 = arith.constant 2.560000e+02 : f32
    %11 = vector.broadcast %cst_4 : f32 to vector<64x1xf32>
    %12 = arith.divf %10, %11 : vector<64x1xf32>
    %13 = arith.mulf %7, %7 : vector<64x1xf32>
    %14 = arith.subf %12, %13 : vector<64x1xf32>
    %15 = vector.broadcast %7 : vector<64x1xf32> to vector<64x256xf32>
    %16 = arith.subf %3, %15 : vector<64x256xf32>
    %cst_5 = arith.constant 9.99999974E-6 : f32
    %17 = vector.broadcast %cst_5 : f32 to vector<64x1xf32>
    %18 = arith.addf %14, %17 : vector<64x1xf32>
    %19 = math.rsqrt %18 : vector<64x1xf32>
    %20 = vector.broadcast %19 : vector<64x1xf32> to vector<64x256xf32>
    %21 = arith.mulf %16, %20 : vector<64x256xf32>
    %c0_6 = arith.constant 0 : index
    %c0_7 = arith.constant 0 : index
    %c0_8 = arith.constant 0 : index
    %22 = vector.load %arg2[%c0_6, %c0_7, %c0_8] : memref<1x1x256xf32, #tpu.memory_space<vmem>>, vector<1x1x256xf32>
    %23 = vector.shape_cast %22 : vector<1x1x256xf32> to vector<1x256xf32>
    %24 = vector.broadcast %23 : vector<1x256xf32> to vector<64x256xf32>
    %25 = arith.mulf %21, %24 : vector<64x256xf32>
    %c0_9 = arith.constant 0 : index
    %c0_10 = arith.constant 0 : index
    %c0_11 = arith.constant 0 : index
    %26 = vector.load %arg3[%c0_9, %c0_10, %c0_11] : memref<1x1x256xf32, #tpu.memory_space<vmem>>, vector<1x1x256xf32>
    %27 = vector.shape_cast %26 : vector<1x1x256xf32> to vector<1x256xf32>
    %28 = vector.broadcast %27 : vector<1x256xf32> to vector<64x256xf32>
    %29 = arith.addf %25, %28 : vector<64x256xf32>
    %c0_12 = arith.constant 0 : index
    %c0_13 = arith.constant 0 : index
    %c0_14 = arith.constant 0 : index
    %30 = vector.load %arg4[%c0_12, %c0_13, %c0_14] : memref<1x256x768xf32, #tpu.memory_space<vmem>>, vector<1x256x768xf32>
    %31 = vector.shape_cast %30 : vector<1x256x768xf32> to vector<256x768xf32>
    %cst_15 = arith.constant dense<0.000000e+00> : vector<64x768xf32>
    %32 = tpu.matmul %29, %31, %cst_15 {dimension_numbers = #tpu.dot_dimension_numbers<[1], [0], [0], [1], [0, 0, 1, 1], [], []>} : vector<64x256xf32>, vector<256x768xf32>, vector<64x768xf32> -> vector<64x768xf32>
    %33 = vector.extract_strided_slice %32 {offsets = [0, 0], sizes = [64, 256], strides = [1, 1]} : vector<64x768xf32> to vector<64x256xf32>
    %34 = vector.shape_cast %33 : vector<64x256xf32> to vector<2x32x256xf32>
    %35 = vector.extract_strided_slice %32 {offsets = [0, 256], sizes = [64, 256], strides = [1, 1]} : vector<64x768xf32> to vector<64x256xf32>
    %36 = vector.shape_cast %35 : vector<64x256xf32> to vector<2x32x256xf32>
    %37 = vector.extract_strided_slice %32 {offsets = [0, 512], sizes = [64, 256], strides = [1, 1]} : vector<64x768xf32> to vector<64x256xf32>
    %38 = vector.shape_cast %37 : vector<64x256xf32> to vector<2x32x256xf32>
    %39 = tpu.iota {dimensions = array<i32: 0>} : vector<32x32xi32>
    %40 = tpu.iota {dimensions = array<i32: 1>} : vector<32x32xi32>
    %41 = arith.cmpi sle, %40, %39 : vector<32x32xi32>
    %cst_16 = arith.constant 0.000000e+00 : f32
    %cst_17 = arith.constant -1.000000e+30 : f32
    %42 = vector.broadcast %cst_16 : f32 to vector<32x32xf32>
    %43 = vector.broadcast %cst_17 : f32 to vector<32x32xf32>
    %44 = arith.select %41, %42, %43 : vector<32x32xi1>, vector<32x32xf32>
    %45 = vector.shape_cast %44 : vector<32x32xf32> to vector<1x32x32xf32>
    %c0_18 = arith.constant 0 : index
    %c0_19 = arith.constant 0 : index
    %c0_20 = arith.constant 0 : index
    %46 = vector.load %arg5[%c0_18, %c0_19, %c0_20] : memref<1x256x256xf32, #tpu.memory_space<vmem>>, vector<1x256x256xf32>
    %47 = vector.shape_cast %46 : vector<1x256x256xf32> to vector<256x256xf32>
    %48 = vector.extract_strided_slice %34 {offsets = [0, 0, 0], sizes = [2, 32, 128], strides = [1, 1, 1]} : vector<2x32x256xf32> to vector<2x32x128xf32>
    %49 = vector.extract_strided_slice %36 {offsets = [0, 0, 0], sizes = [2, 32, 128], strides = [1, 1, 1]} : vector<2x32x256xf32> to vector<2x32x128xf32>
    %50 = vector.extract_strided_slice %38 {offsets = [0, 0, 0], sizes = [2, 32, 128], strides = [1, 1, 1]} : vector<2x32x256xf32> to vector<2x32x128xf32>
    "tpu.trace_start"() <{level = 10 : i32, message = "btd,bsd->bts"}> : () -> ()
    %cst_21 = arith.constant dense<0.000000e+00> : vector<2x32x32xf32>
    %51 = tpu.matmul %48, %49, %cst_21 {dimension_numbers = #tpu.dot_dimension_numbers<[2], [2], [1], [1], [0, 0, 0, 1, 1, 1], [0], [0]>} : vector<2x32x128xf32>, vector<2x32x128xf32>, vector<2x32x32xf32> -> vector<2x32x32xf32>
    "tpu.trace_stop"() : () -> ()
    %cst_22 = arith.constant 6.250000e-02 : f32
    %52 = vector.broadcast %cst_22 : f32 to vector<2x32x32xf32>
    %53 = arith.mulf %51, %52 : vector<2x32x32xf32>
    %54 = vector.broadcast %45 : vector<1x32x32xf32> to vector<2x32x32xf32>
    %55 = arith.addf %53, %54 : vector<2x32x32xf32>
    %cst_23 = arith.constant dense<0xFF800000> : vector<2x32xf32>
    %56 = vector.multi_reduction <maximumf>, %55, %cst_23 [2] : vector<2x32x32xf32> to vector<2x32xf32>
    %57 = vector.shape_cast %56 : vector<2x32xf32> to vector<2x32x1xf32>
    %58 = vector.broadcast %57 : vector<2x32x1xf32> to vector<2x32x32xf32>
    %59 = arith.subf %55, %58 : vector<2x32x32xf32>
    %60 = math.exp %59 : vector<2x32x32xf32>
    %cst_24 = arith.constant dense<0.000000e+00> : vector<2x32xf32>
    %61 = vector.multi_reduction <add>, %60, %cst_24 [2] : vector<2x32x32xf32> to vector<2x32xf32>
    %62 = vector.shape_cast %61 : vector<2x32xf32> to vector<2x32x1xf32>
    %63 = tpu.reciprocal %62 {approx = true} : vector<2x32x1xf32> -> vector<2x32x1xf32>
    %64 = vector.broadcast %63 : vector<2x32x1xf32> to vector<2x32x32xf32>
    %65 = arith.mulf %60, %64 : vector<2x32x32xf32>
    "tpu.trace_start"() <{level = 10 : i32, message = "bts,bsd->btd"}> : () -> ()
    %cst_25 = arith.constant dense<0.000000e+00> : vector<2x32x128xf32>
    %66 = tpu.matmul %65, %50, %cst_25 {dimension_numbers = #tpu.dot_dimension_numbers<[2], [1], [1], [2], [0, 0, 0, 1, 1, 2], [0], [0]>} : vector<2x32x32xf32>, vector<2x32x128xf32>, vector<2x32x128xf32> -> vector<2x32x128xf32>
    "tpu.trace_stop"() : () -> ()
    %67 = vector.shape_cast %66 : vector<2x32x128xf32> to vector<64x128xf32>
    %68 = vector.extract_strided_slice %47 {offsets = [0, 0], sizes = [128, 256], strides = [1, 1]} : vector<256x256xf32> to vector<128x256xf32>
    %cst_26 = arith.constant dense<0.000000e+00> : vector<64x256xf32>
    %69 = tpu.matmul %67, %68, %cst_26 {dimension_numbers = #tpu.dot_dimension_numbers<[1], [0], [0], [1], [0, 0, 1, 1], [], []>} : vector<64x128xf32>, vector<128x256xf32>, vector<64x256xf32> -> vector<64x256xf32>
    %70 = vector.extract_strided_slice %34 {offsets = [0, 0, 128], sizes = [2, 32, 128], strides = [1, 1, 1]} : vector<2x32x256xf32> to vector<2x32x128xf32>
    %71 = vector.extract_strided_slice %36 {offsets = [0, 0, 128], sizes = [2, 32, 128], strides = [1, 1, 1]} : vector<2x32x256xf32> to vector<2x32x128xf32>
    %72 = vector.extract_strided_slice %38 {offsets = [0, 0, 128], sizes = [2, 32, 128], strides = [1, 1, 1]} : vector<2x32x256xf32> to vector<2x32x128xf32>
    "tpu.trace_start"() <{level = 10 : i32, message = "btd,bsd->bts"}> : () -> ()
    %cst_27 = arith.constant dense<0.000000e+00> : vector<2x32x32xf32>
    %73 = tpu.matmul %70, %71, %cst_27 {dimension_numbers = #tpu.dot_dimension_numbers<[2], [2], [1], [1], [0, 0, 0, 1, 1, 1], [0], [0]>} : vector<2x32x128xf32>, vector<2x32x128xf32>, vector<2x32x32xf32> -> vector<2x32x32xf32>
    "tpu.trace_stop"() : () -> ()
    %cst_28 = arith.constant 6.250000e-02 : f32
    %74 = vector.broadcast %cst_28 : f32 to vector<2x32x32xf32>
    %75 = arith.mulf %73, %74 : vector<2x32x32xf32>
    %76 = vector.broadcast %45 : vector<1x32x32xf32> to vector<2x32x32xf32>
    %77 = arith.addf %75, %76 : vector<2x32x32xf32>
    %cst_29 = arith.constant dense<0xFF800000> : vector<2x32xf32>
    %78 = vector.multi_reduction <maximumf>, %77, %cst_29 [2] : vector<2x32x32xf32> to vector<2x32xf32>
    %79 = vector.shape_cast %78 : vector<2x32xf32> to vector<2x32x1xf32>
    %80 = vector.broadcast %79 : vector<2x32x1xf32> to vector<2x32x32xf32>
    %81 = arith.subf %77, %80 : vector<2x32x32xf32>
    %82 = math.exp %81 : vector<2x32x32xf32>
    %cst_30 = arith.constant dense<0.000000e+00> : vector<2x32xf32>
    %83 = vector.multi_reduction <add>, %82, %cst_30 [2] : vector<2x32x32xf32> to vector<2x32xf32>
    %84 = vector.shape_cast %83 : vector<2x32xf32> to vector<2x32x1xf32>
    %85 = tpu.reciprocal %84 {approx = true} : vector<2x32x1xf32> -> vector<2x32x1xf32>
    %86 = vector.broadcast %85 : vector<2x32x1xf32> to vector<2x32x32xf32>
    %87 = arith.mulf %82, %86 : vector<2x32x32xf32>
    "tpu.trace_start"() <{level = 10 : i32, message = "bts,bsd->btd"}> : () -> ()
    %cst_31 = arith.constant dense<0.000000e+00> : vector<2x32x128xf32>
    %88 = tpu.matmul %87, %72, %cst_31 {dimension_numbers = #tpu.dot_dimension_numbers<[2], [1], [1], [2], [0, 0, 0, 1, 1, 2], [0], [0]>} : vector<2x32x32xf32>, vector<2x32x128xf32>, vector<2x32x128xf32> -> vector<2x32x128xf32>
    "tpu.trace_stop"() : () -> ()
    %89 = vector.shape_cast %88 : vector<2x32x128xf32> to vector<64x128xf32>
    %90 = vector.extract_strided_slice %47 {offsets = [128, 0], sizes = [128, 256], strides = [1, 1]} : vector<256x256xf32> to vector<128x256xf32>
    %cst_32 = arith.constant dense<0.000000e+00> : vector<64x256xf32>
    %91 = tpu.matmul %89, %90, %cst_32 {dimension_numbers = #tpu.dot_dimension_numbers<[1], [0], [0], [1], [0, 0, 1, 1], [], []>} : vector<64x128xf32>, vector<128x256xf32>, vector<64x256xf32> -> vector<64x256xf32>
    %92 = arith.addf %69, %91 : vector<64x256xf32>
    %c0_33 = arith.constant 0 : index
    %c0_34 = arith.constant 0 : index
    %c0_35 = arith.constant 0 : index
    %93 = vector.load %arg6[%c0_33, %c0_34, %c0_35] : memref<1x1x256xf32, #tpu.memory_space<vmem>>, vector<1x1x256xf32>
    %94 = vector.shape_cast %93 : vector<1x1x256xf32> to vector<1x256xf32>
    %95 = vector.broadcast %94 : vector<1x256xf32> to vector<64x256xf32>
    %96 = arith.addf %92, %95 : vector<64x256xf32>
    %97 = arith.addf %3, %96 : vector<64x256xf32>
    %cst_36 = arith.constant dense<0.000000e+00> : vector<64xf32>
    %98 = vector.multi_reduction <add>, %97, %cst_36 [1] : vector<64x256xf32> to vector<64xf32>
    %99 = vector.shape_cast %98 : vector<64xf32> to vector<64x1xf32>
    %cst_37 = arith.constant 2.560000e+02 : f32
    %100 = vector.broadcast %cst_37 : f32 to vector<64x1xf32>
    %101 = arith.divf %99, %100 : vector<64x1xf32>
    %102 = arith.mulf %97, %97 : vector<64x256xf32>
    %cst_38 = arith.constant dense<0.000000e+00> : vector<64xf32>
    %103 = vector.multi_reduction <add>, %102, %cst_38 [1] : vector<64x256xf32> to vector<64xf32>
    %104 = vector.shape_cast %103 : vector<64xf32> to vector<64x1xf32>
    %cst_39 = arith.constant 2.560000e+02 : f32
    %105 = vector.broadcast %cst_39 : f32 to vector<64x1xf32>
    %106 = arith.divf %104, %105 : vector<64x1xf32>
    %107 = arith.mulf %101, %101 : vector<64x1xf32>
    %108 = arith.subf %106, %107 : vector<64x1xf32>
    %109 = vector.broadcast %101 : vector<64x1xf32> to vector<64x256xf32>
    %110 = arith.subf %97, %109 : vector<64x256xf32>
    %cst_40 = arith.constant 9.99999974E-6 : f32
    %111 = vector.broadcast %cst_40 : f32 to vector<64x1xf32>
    %112 = arith.addf %108, %111 : vector<64x1xf32>
    %113 = math.rsqrt %112 : vector<64x1xf32>
    %114 = vector.broadcast %113 : vector<64x1xf32> to vector<64x256xf32>
    %115 = arith.mulf %110, %114 : vector<64x256xf32>
    %c0_41 = arith.constant 0 : index
    %c0_42 = arith.constant 0 : index
    %c0_43 = arith.constant 0 : index
    %116 = vector.load %arg7[%c0_41, %c0_42, %c0_43] : memref<1x1x256xf32, #tpu.memory_space<vmem>>, vector<1x1x256xf32>
    %117 = vector.shape_cast %116 : vector<1x1x256xf32> to vector<1x256xf32>
    %118 = vector.broadcast %117 : vector<1x256xf32> to vector<64x256xf32>
    %119 = arith.mulf %115, %118 : vector<64x256xf32>
    %c0_44 = arith.constant 0 : index
    %c0_45 = arith.constant 0 : index
    %c0_46 = arith.constant 0 : index
    %120 = vector.load %arg8[%c0_44, %c0_45, %c0_46] : memref<1x1x256xf32, #tpu.memory_space<vmem>>, vector<1x1x256xf32>
    %121 = vector.shape_cast %120 : vector<1x1x256xf32> to vector<1x256xf32>
    %122 = vector.broadcast %121 : vector<1x256xf32> to vector<64x256xf32>
    %123 = arith.addf %119, %122 : vector<64x256xf32>
    %c0_47 = arith.constant 0 : index
    %c0_48 = arith.constant 0 : index
    %c0_49 = arith.constant 0 : index
    %124 = vector.load %arg9[%c0_47, %c0_48, %c0_49] : memref<1x256x1024xf32, #tpu.memory_space<vmem>>, vector<1x256x1024xf32>
    %125 = vector.shape_cast %124 : vector<1x256x1024xf32> to vector<256x1024xf32>
    %cst_50 = arith.constant dense<0.000000e+00> : vector<64x1024xf32>
    %126 = tpu.matmul %123, %125, %cst_50 {dimension_numbers = #tpu.dot_dimension_numbers<[1], [0], [0], [1], [0, 0, 1, 1], [], []>} : vector<64x256xf32>, vector<256x1024xf32>, vector<64x1024xf32> -> vector<64x1024xf32>
    %c0_51 = arith.constant 0 : index
    %c0_52 = arith.constant 0 : index
    %c0_53 = arith.constant 0 : index
    %127 = vector.load %arg10[%c0_51, %c0_52, %c0_53] : memref<1x1x1024xf32, #tpu.memory_space<vmem>>, vector<1x1x1024xf32>
    %128 = vector.shape_cast %127 : vector<1x1x1024xf32> to vector<1x1024xf32>
    %129 = vector.broadcast %128 : vector<1x1024xf32> to vector<64x1024xf32>
    %130 = arith.addf %126, %129 : vector<64x1024xf32>
    %cst_54 = arith.constant 0.000000e+00 : f32
    %131 = vector.broadcast %cst_54 : f32 to vector<64x1024xf32>
    %132 = arith.maximumf %130, %131 : vector<64x1024xf32>
    %c0_55 = arith.constant 0 : index
    %c0_56 = arith.constant 0 : index
    %c0_57 = arith.constant 0 : index
    %133 = vector.load %arg11[%c0_55, %c0_56, %c0_57] : memref<1x1024x256xf32, #tpu.memory_space<vmem>>, vector<1x1024x256xf32>
    %134 = vector.shape_cast %133 : vector<1x1024x256xf32> to vector<1024x256xf32>
    %cst_58 = arith.constant dense<0.000000e+00> : vector<64x256xf32>
    %135 = tpu.matmul %132, %134, %cst_58 {dimension_numbers = #tpu.dot_dimension_numbers<[1], [0], [0], [1], [0, 0, 1, 1], [], []>} : vector<64x1024xf32>, vector<1024x256xf32>, vector<64x256xf32> -> vector<64x256xf32>
    %c0_59 = arith.constant 0 : index
    %c0_60 = arith.constant 0 : index
    %c0_61 = arith.constant 0 : index
    %136 = vector.load %arg12[%c0_59, %c0_60, %c0_61] : memref<1x1x256xf32, #tpu.memory_space<vmem>>, vector<1x1x256xf32>
    %137 = vector.shape_cast %136 : vector<1x1x256xf32> to vector<1x256xf32>
    %138 = vector.broadcast %137 : vector<1x256xf32> to vector<64x256xf32>
    %139 = arith.addf %135, %138 : vector<64x256xf32>
    %140 = arith.addf %97, %139 : vector<64x256xf32>
    %c0_62 = arith.constant 0 : index
    %c0_63 = arith.constant 0 : index
    %141 = vector.load %arg16[%c0_62, %c0_63] : memref<64x256xf32, #tpu.memory_space<vmem>>, vector<64x256xf32>
    tpu.vector_store %arg16[%c0_62, %c0_63], %140 {strides = array<i32>} : memref<64x256xf32, #tpu.memory_space<vmem>>, vector<64x256xf32>,
    %c7_i32 = arith.constant 7 : i32
    %142 = arith.cmpi eq, %arg0, %c7_i32 : i32
    %143 = arith.extui %142 : i1 to i32
    %c0_i32_64 = arith.constant 0 : i32
    %144 = arith.cmpi ne, %143, %c0_i32_64 : i32
    scf.if %144 {
      %c0_65 = arith.constant 0 : index
      %c0_66 = arith.constant 0 : index
      %145 = vector.load %arg13[%c0_65, %c0_66] : memref<256x128xf32, #tpu.memory_space<vmem>>, vector<256x128xf32>
      %cst_67 = arith.constant dense<0.000000e+00> : vector<64x128xf32>
      %146 = tpu.matmul %140, %145, %cst_67 {dimension_numbers = #tpu.dot_dimension_numbers<[1], [0], [0], [1], [0, 0, 1, 1], [], []>} : vector<64x256xf32>, vector<256x128xf32>, vector<64x128xf32> -> vector<64x128xf32>
      %c0_68 = arith.constant 0 : index
      %c0_69 = arith.constant 0 : index
      %147 = vector.load %arg14[%c0_68, %c0_69] : memref<1x128xf32, #tpu.memory_space<vmem>>, vector<1x128xf32>
      %148 = vector.shape_cast %147 : vector<1x128xf32> to vector<128xf32>
      %149 = vector.shape_cast %148 : vector<128xf32> to vector<1x128xf32>
      %150 = vector.broadcast %149 : vector<1x128xf32> to vector<64x128xf32>
      %151 = arith.addf %146, %150 : vector<64x128xf32>
      %c0_70 = arith.constant 0 : index
      %c0_71 = arith.constant 0 : index
      %152 = vector.load %arg15[%c0_70, %c0_71] : memref<64x128xf32, #tpu.memory_space<vmem>>, vector<64x128xf32>
      tpu.vector_store %arg15[%c0_70, %c0_71], %151 {strides = array<i32>} : memref<64x128xf32, #tpu.memory_space<vmem>>, vector<64x128xf32>,
    } else {
    }
    return
  }
  func.func @transform_0(%arg0: i32) -> (i32, i32) {
    %c0_i32 = arith.constant 0 : i32
    %c0_i32_0 = arith.constant 0 : i32
    %c0_i32_1 = arith.constant 0 : i32
    return %c0_i32, %c0_i32_0 : i32, i32
  }
  func.func @transform_1(%arg0: i32) -> (i32, i32, i32) {
    %c0_i32 = arith.constant 0 : i32
    %c0_i32_0 = arith.constant 0 : i32
    %c0_i32_1 = arith.constant 0 : i32
    return %arg0, %c0_i32, %c0_i32_0 : i32, i32, i32
  }
  func.func @transform_2(%arg0: i32) -> (i32, i32, i32) {
    %c0_i32 = arith.constant 0 : i32
    %c0_i32_0 = arith.constant 0 : i32
    %c0_i32_1 = arith.constant 0 : i32
    return %arg0, %c0_i32, %c0_i32_0 : i32, i32, i32
  }
  func.func @transform_3(%arg0: i32) -> (i32, i32, i32) {
    %c0_i32 = arith.constant 0 : i32
    %c0_i32_0 = arith.constant 0 : i32
    %c0_i32_1 = arith.constant 0 : i32
    return %arg0, %c0_i32, %c0_i32_0 : i32, i32, i32
  }
  func.func @transform_4(%arg0: i32) -> (i32, i32, i32) {
    %c0_i32 = arith.constant 0 : i32
    %c0_i32_0 = arith.constant 0 : i32
    %c0_i32_1 = arith.constant 0 : i32
    return %arg0, %c0_i32, %c0_i32_0 : i32, i32, i32
  }
  func.func @transform_5(%arg0: i32) -> (i32, i32, i32) {
    %c0_i32 = arith.constant 0 : i32
    %c0_i32_0 = arith.constant 0 : i32
    %c0_i32_1 = arith.constant 0 : i32
    return %arg0, %c0_i32, %c0_i32_0 : i32, i32, i32
  }
  func.func @transform_6(%arg0: i32) -> (i32, i32, i32) {
    %c0_i32 = arith.constant 0 : i32
    %c0_i32_0 = arith.constant 0 : i32
    %c0_i32_1 = arith.constant 0 : i32
    return %arg0, %c0_i32, %c0_i32_0 : i32, i32, i32
  }
  func.func @transform_7(%arg0: i32) -> (i32, i32, i32) {
    %c0_i32 = arith.constant 0 : i32
    %c0_i32_0 = arith.constant 0 : i32
    %c0_i32_1 = arith.constant 0 : i32
    return %arg0, %c0_i32, %c0_i32_0 : i32, i32, i32
  }
  func.func @transform_8(%arg0: i32) -> (i32, i32, i32) {
    %c0_i32 = arith.constant 0 : i32
    %c0_i32_0 = arith.constant 0 : i32
    %c0_i32_1 = arith.constant 0 : i32
    return %arg0, %c0_i32, %c0_i32_0 : i32, i32, i32
  }
  func.func @transform_9(%arg0: i32) -> (i32, i32, i32) {
    %c0_i32 = arith.constant 0 : i32
    %c0_i32_0 = arith.constant 0 : i32
    %c0_i32_1 = arith.constant 0 : i32
    return %arg0, %c0_i32, %c0_i32_0 : i32, i32, i32
  }
  func.func @transform_10(%arg0: i32) -> (i32, i32, i32) {
    %c0_i32 = arith.constant 0 : i32
    %c0_i32_0 = arith.constant 0 : i32
    %c0_i32_1 = arith.constant 0 : i32
    return %arg0, %c0_i32, %c0_i32_0 : i32, i32, i32
  }
  func.func @transform_11(%arg0: i32) -> (i32, i32, i32) {
    %c0_i32 = arith.constant 0 : i32
    %c0_i32_0 = arith.constant 0 : i32
    %c0_i32_1 = arith.constant 0 : i32
    return %arg0, %c0_i32, %c0_i32_0 : i32, i32, i32
  }
  func.func @transform_12(%arg0: i32) -> (i32, i32) {
    %c0_i32 = arith.constant 0 : i32
    %c0_i32_0 = arith.constant 0 : i32
    %c0_i32_1 = arith.constant 0 : i32
    return %c0_i32, %c0_i32_0 : i32, i32
  }
  func.func @transform_13(%arg0: i32) -> (i32, i32) {
    %c0_i32 = arith.constant 0 : i32
    %c0_i32_0 = arith.constant 0 : i32
    %c0_i32_1 = arith.constant 0 : i32
    return %c0_i32, %c0_i32_0 : i32, i32
  }
  func.func @transform_14(%arg0: i32) -> (i32, i32) {
    %c0_i32 = arith.constant 0 : i32
    %c0_i32_0 = arith.constant 0 : i32
    %c0_i32_1 = arith.constant 0 : i32
    return %c0_i32, %c0_i32_0 : i32, i32
  }
}

</mosaic_0001>

<llo_original>
// kernel: tpu_custom_call.1
$region0: #{tpu_custom_call.1}
  #allocation0 [shape = 'u32[]', space=smem, size = 0x4, offset = 0x4, fixed_abs, tag = 'smem constant byte address 0x4 - core index']
  #allocation1 [shape = 'u32[144,128]{1,0:T(1,128)}', space=vmem, size = 0x12000, scoped, tag = 'internal scratch']
  #allocation2 [shape = 'f32[64,256]{1,0:T(8,128)}', space=vmem, size = 0x10000, scoped, tag = 'scratch operand']
  %s0 = inlined_call_operand.hbm [shape: f32[64,256], index: 0, kind: input, shape index: {}]
  %s1 = inlined_call_operand.hbm [shape: f32[8,1,256], index: 1, kind: input, shape index: {}]
  %s2 = inlined_call_operand.hbm [shape: f32[8,1,256], index: 2, kind: input, shape index: {}]
  %s3 = inlined_call_operand.hbm [shape: f32[8,256,768], index: 3, kind: input, shape index: {}]
  %s4 = inlined_call_operand.hbm [shape: f32[8,256,256], index: 4, kind: input, shape index: {}]
  %s5 = inlined_call_operand.hbm [shape: f32[8,1,256], index: 5, kind: input, shape index: {}]
  %s6 = inlined_call_operand.hbm [shape: f32[8,1,256], index: 6, kind: input, shape index: {}]
  %s7 = inlined_call_operand.hbm [shape: f32[8,1,256], index: 7, kind: input, shape index: {}]
  %s8 = inlined_call_operand.hbm [shape: f32[8,256,1024], index: 8, kind: input, shape index: {}]
  %s9 = inlined_call_operand.hbm [shape: f32[8,1,1024], index: 9, kind: input, shape index: {}]
  %s10 = inlined_call_operand.hbm [shape: f32[8,1024,256], index: 10, kind: input, shape index: {}]
  %s11 = inlined_call_operand.hbm [shape: f32[8,1,256], index: 11, kind: input, shape index: {}]
  %s12 = inlined_call_operand.hbm [shape: f32[256,128], index: 12, kind: input, shape index: {}]
  %s13 = inlined_call_operand.hbm [shape: f32[1,128], index: 13, kind: input, shape index: {}]
  %s14 = inlined_call_operand.hbm [shape: f32[64,128], index: 14, kind: output, shape index: {}]
  %s15 = sld [smem:[#allocation0]]
  $region153: #{tpu_custom_call.1} parent=0
    _
  %s17 = ssub.s32 1, %s15
  %s18 = scalar_select 0, %s17, %s15
  $region1: #{tpu_custom_call.1} parent=0
    #allocation3 [shape = 'u8[65536]{0}', space=vmem, size = 0x10000, scoped, tag = 'input window, operand 0, single buffered']
    #allocation4 [shape = 's32[2]{0}', space=sflag, size = 0x8, scoped, tag = 'scoped memory for tpu_custom_call.1']
    #allocation5 [shape = 's32[2]{0}', space=sflag, size = 0x8, scoped, tag = 'scoped memory for tpu_custom_call.1']
    #allocation6 [shape = 'u8[2048]{0}', space=vmem, size = 0x800, scoped, tag = 'input window, operand 1']
    #allocation7 [shape = 's32[2]{0}', space=sflag, size = 0x8, scoped, tag = 'scoped memory for tpu_custom_call.1']
    #allocation8 [shape = 'u8[2048]{0}', space=vmem, size = 0x800, scoped, tag = 'input window, operand 2']
    #allocation9 [shape = 'u8[1572864]{0}', space=vmem, size = 0x180000, scoped, tag = 'input window, operand 3']
    #allocation10 [shape = 's32[2]{0}', space=sflag, size = 0x8, scoped, tag = 'scoped memory for tpu_custom_call.1']
    #allocation11 [shape = 'u8[524288]{0}', space=vmem, size = 0x80000, scoped, tag = 'input window, operand 4']
    #allocation12 [shape = 'u8[2048]{0}', space=vmem, size = 0x800, scoped, tag = 'input window, operand 5']
    #allocation13 [shape = 's32[2]{0}', space=sflag, size = 0x8, scoped, tag = 'scoped memory for tpu_custom_call.1']
    #allocation14 [shape = 'u8[2048]{0}', space=vmem, size = 0x800, scoped, tag = 'input window, operand 6']
    #allocation15 [shape = 'u8[2048]{0}', space=vmem, size = 0x800, scoped, tag = 'input window, operand 7']
    #allocation16 [shape = 's32[2]{0}', space=sflag, size = 0x8, scoped, tag = 'scoped memory for tpu_custom_call.1']
    #allocation17 [shape = 'u8[2097152]{0}', space=vmem, size = 0x200000, scoped, tag = 'input window, operand 8']
    #allocation18 [shape = 'u8[8192]{0}', space=vmem, size = 0x2000, scoped, tag = 'input window, operand 9']
    #allocation19 [shape = 's32[2]{0}', space=sflag, size = 0x8, scoped, tag = 'scoped memory for tpu_custom_call.1']
    #allocation20 [shape = 'u8[2097152]{0}', space=vmem, size = 0x200000, scoped, tag = 'input window, operand 10']
    #allocation21 [shape = 'u8[2048]{0}', space=vmem, size = 0x800, scoped, tag = 'input window, operand 11']
    #allocation22 [shape = 's32[2]{0}', space=sflag, size = 0x8, scoped, tag = 'scoped memory for tpu_custom_call.1']
    #allocation23 [shape = 'u8[131072]{0}', space=vmem, size = 0x20000, scoped, tag = 'input window, operand 12, single buffered']
    #allocation24 [shape = 'u8[512]{0}', space=vmem, size = 0x400, scoped, tag = 'input window, operand 13, single buffered']
    #allocation25 [shape = 's32[1]{0}', space=sflag, size = 0x4, scoped, tag = 'scoped memory for tpu_custom_call.1']
    #allocation26 [shape = 'u8[32768]{0}', space=vmem, size = 0x8000, scoped, tag = 'output window, operand 0, single buffered']
    %19 = vsyncpa [#allocation4], 0
    %20 = vsyncpa [#allocation7], 0
    %s21 = scalar_lea.sflag [#allocation7], 1
    %22 = vsyncpa %s21, 0
    %23 = vsyncpa [#allocation10], 0
    %s24 = scalar_lea.sflag [#allocation10], 1
    %25 = vsyncpa %s24, 0
    %26 = vsyncpa [#allocation13], 0
    %s27 = scalar_lea.sflag [#allocation13], 1
    %28 = vsyncpa %s27, 0
    %29 = vsyncpa [#allocation16], 0
    %s30 = scalar_lea.sflag [#allocation16], 1
    %31 = vsyncpa %s30, 0
    %32 = vsyncpa [#allocation19], 0
    %s33 = scalar_lea.sflag [#allocation19], 1
    %34 = vsyncpa %s33, 0
    %35 = vsyncpa [#allocation22], 0
    %s36 = scalar_lea.sflag [#allocation22], 1
    %37 = vsyncpa %s36, 0
    %38 = vsyncpa [#allocation25], 0
    %39 = vsyncpa [#allocation5], 0
    loop: start=0, step=1, limit=10
    $region2: #{tpu_custom_call.1} parent=1 // loop_pre_header
      _
    $region3: #{tpu_custom_call.1} parent=1 // loop_header
      %s41 = sphi 0, %s45
      %p42 = scmp.ge.s32.totalorder %s41, 10
      %s49 = sphi 0, %s49
      %s51 = sphi 0, %s49
      %s52 = sphi 0, %s51
      %s66 = sphi 0, %s52
      %s72 = sphi 0, %s74
      %s75 = sphi 0, %s72
      %s76 = sphi 0, %s75
      %s92 = sphi 0, %s76
      %s98 = sphi 0, %s100
      %s101 = sphi 0, %s98
      %s102 = sphi 0, %s101
      %s118 = sphi 0, %s102
      %s124 = sphi 0, %s126
      %s127 = sphi 0, %s124
      %s128 = sphi 0, %s127
      %s144 = sphi 0, %s128
      %s150 = sphi 0, %s152
      %s153 = sphi 0, %s150
      %s154 = sphi 0, %s153
      %s170 = sphi 0, %s154
      %s176 = sphi 0, %s178
      %s179 = sphi 0, %s176
      %s180 = sphi 0, %s179
      %s196 = sphi 0, %s180
      %s202 = sphi 0, %s204
      %s205 = sphi 0, %s202
      %s206 = sphi 0, %s205
      %s222 = sphi 0, %s206
      %s228 = sphi 0, %s230
      %s231 = sphi 0, %s228
      %s232 = sphi 0, %s231
      %s248 = sphi 0, %s232
      %s254 = sphi 0, %s256
      %s257 = sphi 0, %s254
      %s258 = sphi 0, %s257
      %s274 = sphi 0, %s258
      %s280 = sphi 0, %s282
      %s283 = sphi 0, %s280
      %s284 = sphi 0, %s283
      %s300 = sphi 0, %s284
      %s306 = sphi 0, %s308
      %s309 = sphi 0, %s306
      %s310 = sphi 0, %s309
      %s326 = sphi 0, %s310
      %s332 = sphi 0, %s334
      %s335 = sphi 0, %s332
      %s336 = sphi 0, %s335
      %s352 = sphi 0, %s336
      %s356 = sphi 0, %s356
      %s358 = sphi 0, %s356
      %s359 = sphi 0, %s358
      %s373 = sphi 0, %s359
      %s377 = sphi 0, %s377
      %s379 = sphi 0, %s377
      %s380 = sphi 0, %s379
      %s394 = sphi 0, %s380
      %s398 = sphi 0, %s398
      %s400 = sphi 0, %s398
      %s401 = sphi 0, %s400
      %s415 = sphi 0, %s401
    $region4: #{tpu_custom_call.1} parent=1 // loop_header_branch
      %44 = sbr.rel (%p42) target = $region8
    $region5: #{tpu_custom_call.1} parent=1 // loop_body
      %s46 = ssub.s32 %s41, 1
      %s47 = ssub.s32 %s41, 2
      %s48 = sadd.s32 %s41, 1
      %s50 = sadd.s32 %s49, 1
      %p53 = scmp.eq.s32.totalorder %s41, 7
      %p54 = scmp.ne.s32.totalorder %s49, %s51
      %p55 = scmp.eq.s32.totalorder %s41, 0
      %p56 = por %p54, %p55
      %p57 = scmp.ne.s32.totalorder %s49, %s51
      %p58 = scmp.eq.s32.totalorder %s46, 7
      %p59 = por %p57, %p58
      %p60 = scmp.ne.s32.totalorder %s51, %s52
      %p61 = scmp.eq.s32.totalorder %s46, 0
      %p62 = por %p60, %p61
      %p63 = scmp.ne.s32.totalorder %s51, %s52
      %p64 = scmp.eq.s32.totalorder %s47, 7
      %p65 = por %p63, %p64
      %p67 = scmp.ne.s32.totalorder %s52, %s66
      %p68 = scmp.eq.s32.totalorder %s47, 0
      %p69 = por %p67, %p68
      %s70 = ssub.s32 %s41, %s48
      %p71 = scmp.eq.s32.totalorder %s70, 0
      %s73 = sadd.s32 %s72, 1
      %s74 = scalar_select %p71, %s72, %s73
      %p77 = pneg %p71
      %p78 = scmp.eq.s32.totalorder %s41, 7
      %p79 = por %p77, %p78
      %p80 = scmp.ne.s32.totalorder %s72, %s75
      %p81 = scmp.eq.s32.totalorder %s41, 0
      %p82 = por %p80, %p81
      %p83 = scmp.ne.s32.totalorder %s72, %s75
      %p84 = scmp.eq.s32.totalorder %s46, 7
      %p85 = por %p83, %p84
      %p86 = scmp.ne.s32.totalorder %s75, %s76
      %p87 = scmp.eq.s32.totalorder %s46, 0
      %p88 = por %p86, %p87
      %p89 = scmp.ne.s32.totalorder %s75, %s76
      %p90 = scmp.eq.s32.totalorder %s47, 7
      %p91 = por %p89, %p90
      %p93 = scmp.ne.s32.totalorder %s76, %s92
      %p94 = scmp.eq.s32.totalorder %s47, 0
      %p95 = por %p93, %p94
      %s96 = ssub.s32 %s41, %s48
      %p97 = scmp.eq.s32.totalorder %s96, 0
      %s99 = sadd.s32 %s98, 1
      %s100 = scalar_select %p97, %s98, %s99
      %p103 = pneg %p97
      %p104 = scmp.eq.s32.totalorder %s41, 7
      %p105 = por %p103, %p104
      %p106 = scmp.ne.s32.totalorder %s98, %s101
      %p107 = scmp.eq.s32.totalorder %s41, 0
      %p108 = por %p106, %p107
      %p109 = scmp.ne.s32.totalorder %s98, %s101
      %p110 = scmp.eq.s32.totalorder %s46, 7
      %p111 = por %p109, %p110
      %p112 = scmp.ne.s32.totalorder %s101, %s102
      %p113 = scmp.eq.s32.totalorder %s46, 0
      %p114 = por %p112, %p113
      %p115 = scmp.ne.s32.totalorder %s101, %s102
      %p116 = scmp.eq.s32.totalorder %s47, 7
      %p117 = por %p115, %p116
      %p119 = scmp.ne.s32.totalorder %s102, %s118
      %p120 = scmp.eq.s32.totalorder %s47, 0
      %p121 = por %p119, %p120
      %s122 = ssub.s32 %s41, %s48
      %p123 = scmp.eq.s32.totalorder %s122, 0
      %s125 = sadd.s32 %s124, 1
      %s126 = scalar_select %p123, %s124, %s125
      %p129 = pneg %p123
      %p130 = scmp.eq.s32.totalorder %s41, 7
      %p131 = por %p129, %p130
      %p132 = scmp.ne.s32.totalorder %s124, %s127
      %p133 = scmp.eq.s32.totalorder %s41, 0
      %p134 = por %p132, %p133
      %p135 = scmp.ne.s32.totalorder %s124, %s127
      %p136 = scmp.eq.s32.totalorder %s46, 7
      %p137 = por %p135, %p136
      %p138 = scmp.ne.s32.totalorder %s127, %s128
      %p139 = scmp.eq.s32.totalorder %s46, 0
      %p140 = por %p138, %p139
      %p141 = scmp.ne.s32.totalorder %s127, %s128
      %p142 = scmp.eq.s32.totalorder %s47, 7
      %p143 = por %p141, %p142
      %p145 = scmp.ne.s32.totalorder %s128, %s144
      %p146 = scmp.eq.s32.totalorder %s47, 0
      %p147 = por %p145, %p146
      %s148 = ssub.s32 %s41, %s48
      %p149 = scmp.eq.s32.totalorder %s148, 0
      %s151 = sadd.s32 %s150, 1
      %s152 = scalar_select %p149, %s150, %s151
      %p155 = pneg %p149
      %p156 = scmp.eq.s32.totalorder %s41, 7
      %p157 = por %p155, %p156
      %p158 = scmp.ne.s32.totalorder %s150, %s153
      %p159 = scmp.eq.s32.totalorder %s41, 0
      %p160 = por %p158, %p159
      %p161 = scmp.ne.s32.totalorder %s150, %s153
      %p162 = scmp.eq.s32.totalorder %s46, 7
      %p163 = por %p161, %p162
      %p164 = scmp.ne.s32.totalorder %s153, %s154
      %p165 = scmp.eq.s32.totalorder %s46, 0
      %p166 = por %p164, %p165
      %p167 = scmp.ne.s32.totalorder %s153, %s154
      %p168 = scmp.eq.s32.totalorder %s47, 7
      %p169 = por %p167, %p168
      %p171 = scmp.ne.s32.totalorder %s154, %s170
      %p172 = scmp.eq.s32.totalorder %s47, 0
      %p173 = por %p171, %p172
      %s174 = ssub.s32 %s41, %s48
      %p175 = scmp.eq.s32.totalorder %s174, 0
      %s177 = sadd.s32 %s176, 1
      %s178 = scalar_select %p175, %s176, %s177
      %p181 = pneg %p175
      %p182 = scmp.eq.s32.totalorder %s41, 7
      %p183 = por %p181, %p182
      %p184 = scmp.ne.s32.totalorder %s176, %s179
      %p185 = scmp.eq.s32.totalorder %s41, 0
      %p186 = por %p184, %p185
      %p187 = scmp.ne.s32.totalorder %s176, %s179
      %p188 = scmp.eq.s32.totalorder %s46, 7
      %p189 = por %p187, %p188
      %p190 = scmp.ne.s32.totalorder %s179, %s180
      %p191 = scmp.eq.s32.totalorder %s46, 0
      %p192 = por %p190, %p191
      %p193 = scmp.ne.s32.totalorder %s179, %s180
      %p194 = scmp.eq.s32.totalorder %s47, 7
      %p195 = por %p193, %p194
      %p197 = scmp.ne.s32.totalorder %s180, %s196
      %p198 = scmp.eq.s32.totalorder %s47, 0
      %p199 = por %p197, %p198
      %s200 = ssub.s32 %s41, %s48
      %p201 = scmp.eq.s32.totalorder %s200, 0
      %s203 = sadd.s32 %s202, 1
      %s204 = scalar_select %p201, %s202, %s203
      %p207 = pneg %p201
      %p208 = scmp.eq.s32.totalorder %s41, 7
      %p209 = por %p207, %p208
      %p210 = scmp.ne.s32.totalorder %s202, %s205
      %p211 = scmp.eq.s32.totalorder %s41, 0
      %p212 = por %p210, %p211
      %p213 = scmp.ne.s32.totalorder %s202, %s205
      %p214 = scmp.eq.s32.totalorder %s46, 7
      %p215 = por %p213, %p214
      %p216 = scmp.ne.s32.totalorder %s205, %s206
      %p217 = scmp.eq.s32.totalorder %s46, 0
      %p218 = por %p216, %p217
      %p219 = scmp.ne.s32.totalorder %s205, %s206
      %p220 = scmp.eq.s32.totalorder %s47, 7
      %p221 = por %p219, %p220
      %p223 = scmp.ne.s32.totalorder %s206, %s222
      %p224 = scmp.eq.s32.totalorder %s47, 0
      %p225 = por %p223, %p224
      %s226 = ssub.s32 %s41, %s48
      %p227 = scmp.eq.s32.totalorder %s226, 0
      %s229 = sadd.s32 %s228, 1
      %s230 = scalar_select %p227, %s228, %s229
      %p233 = pneg %p227
      %p234 = scmp.eq.s32.totalorder %s41, 7
      %p235 = por %p233, %p234
      %p236 = scmp.ne.s32.totalorder %s228, %s231
      %p237 = scmp.eq.s32.totalorder %s41, 0
      %p238 = por %p236, %p237
      %p239 = scmp.ne.s32.totalorder %s228, %s231
      %p240 = scmp.eq.s32.totalorder %s46, 7
      %p241 = por %p239, %p240
      %p242 = scmp.ne.s32.totalorder %s231, %s232
      %p243 = scmp.eq.s32.totalorder %s46, 0
      %p244 = por %p242, %p243
      %p245 = scmp.ne.s32.totalorder %s231, %s232
      %p246 = scmp.eq.s32.totalorder %s47, 7
      %p247 = por %p245, %p246
      %p249 = scmp.ne.s32.totalorder %s232, %s248
      %p250 = scmp.eq.s32.totalorder %s47, 0
      %p251 = por %p249, %p250
      %s252 = ssub.s32 %s41, %s48
      %p253 = scmp.eq.s32.totalorder %s252, 0
      %s255 = sadd.s32 %s254, 1
      %s256 = scalar_select %p253, %s254, %s255
      %p259 = pneg %p253
      %p260 = scmp.eq.s32.totalorder %s41, 7
      %p261 = por %p259, %p260
      %p262 = scmp.ne.s32.totalorder %s254, %s257
      %p263 = scmp.eq.s32.totalorder %s41, 0
      %p264 = por %p262, %p263
      %p265 = scmp.ne.s32.totalorder %s254, %s257
      %p266 = scmp.eq.s32.totalorder %s46, 7
      %p267 = por %p265, %p266
      %p268 = scmp.ne.s32.totalorder %s257, %s258
      %p269 = scmp.eq.s32.totalorder %s46, 0
      %p270 = por %p268, %p269
      %p271 = scmp.ne.s32.totalorder %s257, %s258
      %p272 = scmp.eq.s32.totalorder %s47, 7
      %p273 = por %p271, %p272
      %p275 = scmp.ne.s32.totalorder %s258, %s274
      %p276 = scmp.eq.s32.totalorder %s47, 0
      %p277 = por %p275, %p276
      %s278 = ssub.s32 %s41, %s48
      %p279 = scmp.eq.s32.totalorder %s278, 0
      %s281 = sadd.s32 %s280, 1
      %s282 = scalar_select %p279, %s280, %s281
      %p285 = pneg %p279
      %p286 = scmp.eq.s32.totalorder %s41, 7
      %p287 = por %p285, %p286
      %p288 = scmp.ne.s32.totalorder %s280, %s283
      %p289 = scmp.eq.s32.totalorder %s41, 0
      %p290 = por %p288, %p289
      %p291 = scmp.ne.s32.totalorder %s280, %s283
      %p292 = scmp.eq.s32.totalorder %s46, 7
      %p293 = por %p291, %p292
      %p294 = scmp.ne.s32.totalorder %s283, %s284
      %p295 = scmp.eq.s32.totalorder %s46, 0
      %p296 = por %p294, %p295
      %p297 = scmp.ne.s32.totalorder %s283, %s284
      %p298 = scmp.eq.s32.totalorder %s47, 7
      %p299 = por %p297, %p298
      %p301 = scmp.ne.s32.totalorder %s284, %s300
      %p302 = scmp.eq.s32.totalorder %s47, 0
      %p303 = por %p301, %p302
      %s304 = ssub.s32 %s41, %s48
      %p305 = scmp.eq.s32.totalorder %s304, 0
      %s307 = sadd.s32 %s306, 1
      %s308 = scalar_select %p305, %s306, %s307
      %p311 = pneg %p305
      %p312 = scmp.eq.s32.totalorder %s41, 7
      %p313 = por %p311, %p312
      %p314 = scmp.ne.s32.totalorder %s306, %s309
      %p315 = scmp.eq.s32.totalorder %s41, 0
      %p316 = por %p314, %p315
      %p317 = scmp.ne.s32.totalorder %s306, %s309
      %p318 = scmp.eq.s32.totalorder %s46, 7
      %p319 = por %p317, %p318
      %p320 = scmp.ne.s32.totalorder %s309, %s310
      %p321 = scmp.eq.s32.totalorder %s46, 0
      %p322 = por %p320, %p321
      %p323 = scmp.ne.s32.totalorder %s309, %s310
      %p324 = scmp.eq.s32.totalorder %s47, 7
      %p325 = por %p323, %p324
      %p327 = scmp.ne.s32.totalorder %s310, %s326
      %p328 = scmp.eq.s32.totalorder %s47, 0
      %p329 = por %p327, %p328
      %s330 = ssub.s32 %s41, %s48
      %p331 = scmp.eq.s32.totalorder %s330, 0
      %s333 = sadd.s32 %s332, 1
      %s334 = scalar_select %p331, %s332, %s333
      %p337 = pneg %p331
      %p338 = scmp.eq.s32.totalorder %s41, 7
      %p339 = por %p337, %p338
      %p340 = scmp.ne.s32.totalorder %s332, %s335
      %p341 = scmp.eq.s32.totalorder %s41, 0
      %p342 = por %p340, %p341
      %p343 = scmp.ne.s32.totalorder %s332, %s335
      %p344 = scmp.eq.s32.totalorder %s46, 7
      %p345 = por %p343, %p344
      %p346 = scmp.ne.s32.totalorder %s335, %s336
      %p347 = scmp.eq.s32.totalorder %s46, 0
      %p348 = por %p346, %p347
      %p349 = scmp.ne.s32.totalorder %s335, %s336
      %p350 = scmp.eq.s32.totalorder %s47, 7
      %p351 = por %p349, %p350
      %p353 = scmp.ne.s32.totalorder %s336, %s352
      %p354 = scmp.eq.s32.totalorder %s47, 0
      %p355 = por %p353, %p354
      %s357 = sadd.s32 %s356, 1
      %p360 = scmp.eq.s32.totalorder %s41, 7
      %p361 = scmp.ne.s32.totalorder %s356, %s358
      %p362 = scmp.eq.s32.totalorder %s41, 0
      %p363 = por %p361, %p362
      %p364 = scmp.ne.s32.totalorder %s356, %s358
      %p365 = scmp.eq.s32.totalorder %s46, 7
      %p366 = por %p364, %p365
      %p367 = scmp.ne.s32.totalorder %s358, %s359
      %p368 = scmp.eq.s32.totalorder %s46, 0
      %p369 = por %p367, %p368
      %p370 = scmp.ne.s32.totalorder %s358, %s359
      %p371 = scmp.eq.s32.totalorder %s47, 7
      %p372 = por %p370, %p371
      %p374 = scmp.ne.s32.totalorder %s359, %s373
      %p375 = scmp.eq.s32.totalorder %s47, 0
      %p376 = por %p374, %p375
      %s378 = sadd.s32 %s377, 1
      %p381 = scmp.eq.s32.totalorder %s41, 7
      %p382 = scmp.ne.s32.totalorder %s377, %s379
      %p383 = scmp.eq.s32.totalorder %s41, 0
      %p384 = por %p382, %p383
      %p385 = scmp.ne.s32.totalorder %s377, %s379
      %p386 = scmp.eq.s32.totalorder %s46, 7
      %p387 = por %p385, %p386
      %p388 = scmp.ne.s32.totalorder %s379, %s380
      %p389 = scmp.eq.s32.totalorder %s46, 0
      %p390 = por %p388, %p389
      %p391 = scmp.ne.s32.totalorder %s379, %s380
      %p392 = scmp.eq.s32.totalorder %s47, 7
      %p393 = por %p391, %p392
      %p395 = scmp.ne.s32.totalorder %s380, %s394
      %p396 = scmp.eq.s32.totalorder %s47, 0
      %p397 = por %p395, %p396
      %s399 = sadd.s32 %s398, 1
      %p402 = scmp.eq.s32.totalorder %s41, 7
      %p403 = scmp.ne.s32.totalorder %s398, %s400
      %p404 = scmp.eq.s32.totalorder %s41, 0
      %p405 = por %p403, %p404
      %p406 = scmp.ne.s32.totalorder %s398, %s400
      %p407 = scmp.eq.s32.totalorder %s46, 7
      %p408 = por %p406, %p407
      %p409 = scmp.ne.s32.totalorder %s400, %s401
      %p410 = scmp.eq.s32.totalorder %s46, 0
      %p411 = por %p409, %p410
      %p412 = scmp.ne.s32.totalorder %s400, %s401
      %p413 = scmp.eq.s32.totalorder %s47, 7
      %p414 = por %p412, %p413
      %p416 = scmp.ne.s32.totalorder %s401, %s415
      %p417 = scmp.eq.s32.totalorder %s47, 0
      %p418 = por %p416, %p417
      %p419 = scmp.le.s32.totalorder 1, %s41
      %p420 = scmp.lt.s32.totalorder %s41, 9
      %p421 = pnand %p419, %p420
      %p422 = pneg %p421
      // Predicated region
      $region9: #{tpu_custom_call.1} parent=5 // pred_check
        _
      $region10: #{tpu_custom_call.1} parent=5 // pred_check_branch
        %424 = sbr.rel (%p421) target = $region12
      $region11: #{tpu_custom_call.1} parent=5 // pred_region
        %s425 = ssub.s32 %s41, 1
        // Predicated region
        $region13: #{tpu_custom_call.1} parent=11 // pred_check
          %p426 = pneg %p62
        $region14: #{tpu_custom_call.1} parent=11 // pred_check_branch
          %428 = sbr.rel (%p426) target = $region16
        $region15: #{tpu_custom_call.1} parent=11 // pred_region
          %s430 = ssub.s32 2048, 2048
          %431 = vsyncadd [#allocation4], %s430
          %s432 = sshll.u32 [#allocation3], 4
          %s433 = int_to_ptr.vmem [resolvable:$true] %s432
          %438 = dma.hbm_to_vmem [thread:$0]  %s0, 2048, %s433, [#allocation4], 256, 256, 16
        $region16: #{tpu_custom_call.1} parent=11 // pred_fallthru
          _
        // Predicated region
        $region17: #{tpu_custom_call.1} parent=11 // pred_check
          %p439 = pneg %p369
        $region18: #{tpu_custom_call.1} parent=11 // pred_check_branch
          %441 = sbr.rel (%p439) target = $region20
        $region19: #{tpu_custom_call.1} parent=11 // pred_region
          %s443 = ssub.s32 4096, 4096
          %444 = vsyncadd [#allocation22], %s443
          %s445 = sshll.u32 [#allocation23], 4
          %s446 = int_to_ptr.vmem [resolvable:$true] %s445
          %451 = dma.hbm_to_vmem [thread:$0]  %s12, 4096, %s446, [#allocation22], 128, 128, 8
        $region20: #{tpu_custom_call.1} parent=11 // pred_fallthru
          _
        // Predicated region
        $region21: #{tpu_custom_call.1} parent=11 // pred_check
          %p452 = pneg %p390
        $region22: #{tpu_custom_call.1} parent=11 // pred_check_branch
          %454 = sbr.rel (%p452) target = $region24
        $region23: #{tpu_custom_call.1} parent=11 // pred_region
          %s456 = ssub.s32 16, 16
          %457 = vsyncadd [#allocation25], %s456
          %s459 = sshll.u32 [#allocation24], 4
          %s460 = int_to_ptr.vmem [resolvable:$true] %s459
          %462 = dma.hbm_to_vmem [thread:$0]  %s13, 16, %s460, [#allocation25]
        $region24: #{tpu_custom_call.1} parent=11 // pred_fallthru
          _
      $region12: #{tpu_custom_call.1} parent=5 // pred_fallthru
        _
      %p463 = scmp.lt.s32.totalorder %s41, 8
      // Predicated region
      $region25: #{tpu_custom_call.1} parent=5 // pred_check
        %p464 = pneg %p463
      $region26: #{tpu_custom_call.1} parent=5 // pred_check_branch
        %466 = sbr.rel (%p464) target = $region28
      $region27: #{tpu_custom_call.1} parent=5 // pred_region
        // Predicated region
        $region29: #{tpu_custom_call.1} parent=27 // pred_check
          %p467 = pneg %p82
        $region30: #{tpu_custom_call.1} parent=27 // pred_check_branch
          %469 = sbr.rel (%p467) target = $region32
        $region31: #{tpu_custom_call.1} parent=27 // pred_region
          %s470 = sand.u32 %s41, 1
          %s471 = scalar_lea.sflag [#allocation7], %s470
          %s472 = sand.u32 %s72, 1
          %s473 = smul.addr %s472, 2
          %s474 = scalar_lea.vmem [#allocation6], %s473
          %s476 = ssub.s32 32, 32
          %477 = vsyncadd %s471, %s476
          %s478 = smul.addr %s41, 2
          %s479 = smul.addr %s478, 16
          %s480 = scalar_lea.hbm %s1, %s479
          %s482 = sshll.u32 %s474, 4
          %s483 = int_to_ptr.vmem [resolvable:$true] %s482
          %485 = dma.hbm_to_vmem [thread:$0]  %s480, 32, %s483, %s471
        $region32: #{tpu_custom_call.1} parent=27 // pred_fallthru
          _
        // Predicated region
        $region33: #{tpu_custom_call.1} parent=27 // pred_check
          %p486 = pneg %p108
        $region34: #{tpu_custom_call.1} parent=27 // pred_check_branch
          %488 = sbr.rel (%p486) target = $region36
        $region35: #{tpu_custom_call.1} parent=27 // pred_region
          %s489 = sand.u32 %s41, 1
          %s490 = scalar_lea.sflag [#allocation7], %s489
          %s491 = sand.u32 %s98, 1
          %s492 = smul.addr %s491, 2
          %s493 = scalar_lea.vmem [#allocation8], %s492
          %s495 = ssub.s32 32, 32
          %496 = vsyncadd %s490, %s495
          %s497 = smul.addr %s41, 2
          %s498 = smul.addr %s497, 16
          %s499 = scalar_lea.hbm %s2, %s498
          %s501 = sshll.u32 %s493, 4
          %s502 = int_to_ptr.vmem [resolvable:$true] %s501
          %504 = dma.hbm_to_vmem [thread:$0]  %s499, 32, %s502, %s490
        $region36: #{tpu_custom_call.1} parent=27 // pred_fallthru
          _
        // Predicated region
        $region37: #{tpu_custom_call.1} parent=27 // pred_check
          %p505 = pneg %p134
        $region38: #{tpu_custom_call.1} parent=27 // pred_check_branch
          %507 = sbr.rel (%p505) target = $region40
        $region39: #{tpu_custom_call.1} parent=27 // pred_region
          %s508 = sand.u32 %s41, 1
          %s509 = scalar_lea.sflag [#allocation10], %s508
          %s510 = sand.u32 %s124, 1
          %s511 = smul.addr %s510, 1536
          %s512 = scalar_lea.vmem [#allocation9], %s511
          %s514 = ssub.s32 24576, 24576
          %515 = vsyncadd %s509, %s514
          %s516 = smul.addr %s41, 192
          %s517 = smul.addr %s516, 128
          %s518 = scalar_lea.hbm %s3, %s517
          %s519 = sshll.u32 %s512, 4
          %s520 = int_to_ptr.vmem [resolvable:$true] %s519
          %525 = dma.hbm_to_vmem [thread:$0]  %s518, 24576, %s520, %s509, 768, 768, 48
        $region40: #{tpu_custom_call.1} parent=27 // pred_fallthru
          _
        // Predicated region
        $region41: #{tpu_custom_call.1} parent=27 // pred_check
          %p526 = pneg %p160
        $region42: #{tpu_custom_call.1} parent=27 // pred_check_branch
          %528 = sbr.rel (%p526) target = $region44
        $region43: #{tpu_custom_call.1} parent=27 // pred_region
          %s529 = sand.u32 %s41, 1
          %s530 = scalar_lea.sflag [#allocation10], %s529
          %s531 = sand.u32 %s150, 1
          %s532 = smul.addr %s531, 512
          %s533 = scalar_lea.vmem [#allocation11], %s532
          %s535 = ssub.s32 8192, 8192
          %536 = vsyncadd %s530, %s535
          %s537 = smul.addr %s41, 64
          %s538 = smul.addr %s537, 128
          %s539 = scalar_lea.hbm %s4, %s538
          %s540 = sshll.u32 %s533, 4
          %s541 = int_to_ptr.vmem [resolvable:$true] %s540
          %546 = dma.hbm_to_vmem [thread:$0]  %s539, 8192, %s541, %s530, 256, 256, 16
        $region44: #{tpu_custom_call.1} parent=27 // pred_fallthru
          _
        // Predicated region
        $region45: #{tpu_custom_call.1} parent=27 // pred_check
          %p547 = pneg %p186
        $region46: #{tpu_custom_call.1} parent=27 // pred_check_branch
          %549 = sbr.rel (%p547) target = $region48
        $region47: #{tpu_custom_call.1} parent=27 // pred_region
          %s550 = sand.u32 %s41, 1
          %s551 = scalar_lea.sflag [#allocation13], %s550
          %s552 = sand.u32 %s176, 1
          %s553 = smul.addr %s552, 2
          %s554 = scalar_lea.vmem [#allocation12], %s553
          %s556 = ssub.s32 32, 32
          %557 = vsyncadd %s551, %s556
          %s558 = smul.addr %s41, 2
          %s559 = smul.addr %s558, 16
          %s560 = scalar_lea.hbm %s5, %s559
          %s562 = sshll.u32 %s554, 4
          %s563 = int_to_ptr.vmem [resolvable:$true] %s562
          %565 = dma.hbm_to_vmem [thread:$0]  %s560, 32, %s563, %s551
        $region48: #{tpu_custom_call.1} parent=27 // pred_fallthru
          _
        // Predicated region
        $region49: #{tpu_custom_call.1} parent=27 // pred_check
          %p566 = pneg %p212
        $region50: #{tpu_custom_call.1} parent=27 // pred_check_branch
          %568 = sbr.rel (%p566) target = $region52
        $region51: #{tpu_custom_call.1} parent=27 // pred_region
          %s569 = sand.u32 %s41, 1
          %s570 = scalar_lea.sflag [#allocation13], %s569
          %s571 = sand.u32 %s202, 1
          %s572 = smul.addr %s571, 2
          %s573 = scalar_lea.vmem [#allocation14], %s572
          %s575 = ssub.s32 32, 32
          %576 = vsyncadd %s570, %s575
          %s577 = smul.addr %s41, 2
          %s578 = smul.addr %s577, 16
          %s579 = scalar_lea.hbm %s6, %s578
          %s581 = sshll.u32 %s573, 4
          %s582 = int_to_ptr.vmem [resolvable:$true] %s581
          %584 = dma.hbm_to_vmem [thread:$0]  %s579, 32, %s582, %s570
        $region52: #{tpu_custom_call.1} parent=27 // pred_fallthru
          _
        // Predicated region
        $region53: #{tpu_custom_call.1} parent=27 // pred_check
          %p585 = pneg %p238
        $region54: #{tpu_custom_call.1} parent=27 // pred_check_branch
          %587 = sbr.rel (%p585) target = $region56
        $region55: #{tpu_custom_call.1} parent=27 // pred_region
          %s588 = sand.u32 %s41, 1
          %s589 = scalar_lea.sflag [#allocation16], %s588
          %s590 = sand.u32 %s228, 1
          %s591 = smul.addr %s590, 2
          %s592 = scalar_lea.vmem [#allocation15], %s591
          %s594 = ssub.s32 32, 32
          %595 = vsyncadd %s589, %s594
          %s596 = smul.addr %s41, 2
          %s597 = smul.addr %s596, 16
          %s598 = scalar_lea.hbm %s7, %s597
          %s600 = sshll.u32 %s592, 4
          %s601 = int_to_ptr.vmem [resolvable:$true] %s600
          %603 = dma.hbm_to_vmem [thread:$0]  %s598, 32, %s601, %s589
        $region56: #{tpu_custom_call.1} parent=27 // pred_fallthru
          _
        // Predicated region
        $region57: #{tpu_custom_call.1} parent=27 // pred_check
          %p604 = pneg %p264
        $region58: #{tpu_custom_call.1} parent=27 // pred_check_branch
          %606 = sbr.rel (%p604) target = $region60
        $region59: #{tpu_custom_call.1} parent=27 // pred_region
          %s607 = sand.u32 %s41, 1
          %s608 = scalar_lea.sflag [#allocation16], %s607
          %s609 = sand.u32 %s254, 1
          %s610 = smul.addr %s609, 2048
          %s611 = scalar_lea.vmem [#allocation17], %s610
          %s613 = ssub.s32 32768, 32768
          %614 = vsyncadd %s608, %s613
          %s615 = smul.addr %s41, 256
          %s616 = smul.addr %s615, 128
          %s617 = scalar_lea.hbm %s8, %s616
          %s618 = sshll.u32 %s611, 4
          %s619 = int_to_ptr.vmem [resolvable:$true] %s618
          %624 = dma.hbm_to_vmem [thread:$0]  %s617, 32768, %s619, %s608, 1024, 1024, 64
        $region60: #{tpu_custom_call.1} parent=27 // pred_fallthru
          _
        // Predicated region
        $region61: #{tpu_custom_call.1} parent=27 // pred_check
          %p625 = pneg %p290
        $region62: #{tpu_custom_call.1} parent=27 // pred_check_branch
          %627 = sbr.rel (%p625) target = $region64
        $region63: #{tpu_custom_call.1} parent=27 // pred_region
          %s628 = sand.u32 %s41, 1
          %s629 = scalar_lea.sflag [#allocation19], %s628
          %s630 = sand.u32 %s280, 1
          %s631 = smul.addr %s630, 8
          %s632 = scalar_lea.vmem [#allocation18], %s631
          %s634 = ssub.s32 128, 128
          %635 = vsyncadd %s629, %s634
          %s636 = smul.addr %s41, 8
          %s637 = smul.addr %s636, 16
          %s638 = scalar_lea.hbm %s9, %s637
          %s640 = sshll.u32 %s632, 4
          %s641 = int_to_ptr.vmem [resolvable:$true] %s640
          %643 = dma.hbm_to_vmem [thread:$0]  %s638, 128, %s641, %s629
        $region64: #{tpu_custom_call.1} parent=27 // pred_fallthru
          _
        // Predicated region
        $region65: #{tpu_custom_call.1} parent=27 // pred_check
          %p644 = pneg %p316
        $region66: #{tpu_custom_call.1} parent=27 // pred_check_branch
          %646 = sbr.rel (%p644) target = $region68
        $region67: #{tpu_custom_call.1} parent=27 // pred_region
          %s647 = sand.u32 %s41, 1
          %s648 = scalar_lea.sflag [#allocation19], %s647
          %s649 = sand.u32 %s306, 1
          %s650 = smul.addr %s649, 2048
          %s651 = scalar_lea.vmem [#allocation20], %s650
          %s653 = ssub.s32 32768, 32768
          %654 = vsyncadd %s648, %s653
          %s655 = smul.addr %s41, 256
          %s656 = smul.addr %s655, 128
          %s657 = scalar_lea.hbm %s10, %s656
          %s658 = sshll.u32 %s651, 4
          %s659 = int_to_ptr.vmem [resolvable:$true] %s658
          %664 = dma.hbm_to_vmem [thread:$0]  %s657, 32768, %s659, %s648, 256, 256, 16
        $region68: #{tpu_custom_call.1} parent=27 // pred_fallthru
          _
        // Predicated region
        $region69: #{tpu_custom_call.1} parent=27 // pred_check
          %p665 = pneg %p342
        $region70: #{tpu_custom_call.1} parent=27 // pred_check_branch
          %667 = sbr.rel (%p665) target = $region72
        $region71: #{tpu_custom_call.1} parent=27 // pred_region
          %s668 = sand.u32 %s41, 1
          %s669 = scalar_lea.sflag [#allocation22], %s668
          %s670 = sand.u32 %s332, 1
          %s671 = smul.addr %s670, 2
          %s672 = scalar_lea.vmem [#allocation21], %s671
          %s674 = ssub.s32 32, 32
          %675 = vsyncadd %s669, %s674
          %s676 = smul.addr %s41, 2
          %s677 = smul.addr %s676, 16
          %s678 = scalar_lea.hbm %s11, %s677
          %s680 = sshll.u32 %s672, 4
          %s681 = int_to_ptr.vmem [resolvable:$true] %s680
          %683 = dma.hbm_to_vmem [thread:$0]  %s678, 32, %s681, %s669
        $region72: #{tpu_custom_call.1} parent=27 // pred_fallthru
          _
      $region28: #{tpu_custom_call.1} parent=5 // pred_fallthru
        _
      %p684 = scmp.le.s32.totalorder 1, %s41
      %p685 = scmp.lt.s32.totalorder %s41, 9
      %p686 = pnand %p684, %p685
      %p687 = pneg %p686
      // Predicated region
      $region73: #{tpu_custom_call.1} parent=5 // pred_check
        _
      $region74: #{tpu_custom_call.1} parent=5 // pred_check_branch
        %689 = sbr.rel (%p686) target = $region76
      $region75: #{tpu_custom_call.1} parent=5 // pred_region
        %s690 = ssub.s32 %s41, 1
        // Predicated region
        $region77: #{tpu_custom_call.1} parent=75 // pred_check
          %p691 = pneg %p62
        $region78: #{tpu_custom_call.1} parent=75 // pred_check_branch
          %693 = sbr.rel (%p691) target = $region80
        $region79: #{tpu_custom_call.1} parent=75 // pred_region
          %694 = dma.done [#allocation4], 2048
        $region80: #{tpu_custom_call.1} parent=75 // pred_fallthru
          _
        %s695 = sand.u32 %s46, 1
        %s696 = scalar_lea.sflag [#allocation7], %s695
        %s697 = sand.u32 %s75, 1
        %s698 = smul.addr %s697, 2
        %s699 = scalar_lea.vmem [#allocation6], %s698
        // Predicated region
        $region81: #{tpu_custom_call.1} parent=75 // pred_check
          %p700 = pneg %p88
        $region82: #{tpu_custom_call.1} parent=75 // pred_check_branch
          %702 = sbr.rel (%p700) target = $region84
        $region83: #{tpu_custom_call.1} parent=75 // pred_region
          %703 = dma.done %s696, 32
        $region84: #{tpu_custom_call.1} parent=75 // pred_fallthru
          _
        %s704 = sand.u32 %s46, 1
        %s705 = scalar_lea.sflag [#allocation7], %s704
        %s706 = sand.u32 %s101, 1
        %s707 = smul.addr %s706, 2
        %s708 = scalar_lea.vmem [#allocation8], %s707
        // Predicated region
        $region85: #{tpu_custom_call.1} parent=75 // pred_check
          %p709 = pneg %p114
        $region86: #{tpu_custom_call.1} parent=75 // pred_check_branch
          %711 = sbr.rel (%p709) target = $region88
        $region87: #{tpu_custom_call.1} parent=75 // pred_region
          %712 = dma.done %s705, 32
        $region88: #{tpu_custom_call.1} parent=75 // pred_fallthru
          _
        %s713 = sand.u32 %s46, 1
        %s714 = scalar_lea.sflag [#allocation10], %s713
        %s715 = sand.u32 %s127, 1
        %s716 = smul.addr %s715, 1536
        %s717 = scalar_lea.vmem [#allocation9], %s716
        // Predicated region
        $region89: #{tpu_custom_call.1} parent=75 // pred_check
          %p718 = pneg %p140
        $region90: #{tpu_custom_call.1} parent=75 // pred_check_branch
          %720 = sbr.rel (%p718) target = $region92
        $region91: #{tpu_custom_call.1} parent=75 // pred_region
          %721 = dma.done %s714, 24576
        $region92: #{tpu_custom_call.1} parent=75 // pred_fallthru
          _
        %s722 = sand.u32 %s46, 1
        %s723 = scalar_lea.sflag [#allocation10], %s722
        %s724 = sand.u32 %s153, 1
        %s725 = smul.addr %s724, 512
        %s726 = scalar_lea.vmem [#allocation11], %s725
        // Predicated region
        $region93: #{tpu_custom_call.1} parent=75 // pred_check
          %p727 = pneg %p166
        $region94: #{tpu_custom_call.1} parent=75 // pred_check_branch
          %729 = sbr.rel (%p727) target = $region96
        $region95: #{tpu_custom_call.1} parent=75 // pred_region
          %730 = dma.done %s723, 8192
        $region96: #{tpu_custom_call.1} parent=75 // pred_fallthru
          _
        %s731 = sand.u32 %s46, 1
        %s732 = scalar_lea.sflag [#allocation13], %s731
        %s733 = sand.u32 %s179, 1
        %s734 = smul.addr %s733, 2
        %s735 = scalar_lea.vmem [#allocation12], %s734
        // Predicated region
        $region97: #{tpu_custom_call.1} parent=75 // pred_check
          %p736 = pneg %p192
        $region98: #{tpu_custom_call.1} parent=75 // pred_check_branch
          %738 = sbr.rel (%p736) target = $region100
        $region99: #{tpu_custom_call.1} parent=75 // pred_region
          %739 = dma.done %s732, 32
        $region100: #{tpu_custom_call.1} parent=75 // pred_fallthru
          _
        %s740 = sand.u32 %s46, 1
        %s741 = scalar_lea.sflag [#allocation13], %s740
        %s742 = sand.u32 %s205, 1
        %s743 = smul.addr %s742, 2
        %s744 = scalar_lea.vmem [#allocation14], %s743
        // Predicated region
        $region101: #{tpu_custom_call.1} parent=75 // pred_check
          %p745 = pneg %p218
        $region102: #{tpu_custom_call.1} parent=75 // pred_check_branch
          %747 = sbr.rel (%p745) target = $region104
        $region103: #{tpu_custom_call.1} parent=75 // pred_region
          %748 = dma.done %s741, 32
        $region104: #{tpu_custom_call.1} parent=75 // pred_fallthru
          _
        %s749 = sand.u32 %s46, 1
        %s750 = scalar_lea.sflag [#allocation16], %s749
        %s751 = sand.u32 %s231, 1
        %s752 = smul.addr %s751, 2
        %s753 = scalar_lea.vmem [#allocation15], %s752
        // Predicated region
        $region105: #{tpu_custom_call.1} parent=75 // pred_check
          %p754 = pneg %p244
        $region106: #{tpu_custom_call.1} parent=75 // pred_check_branch
          %756 = sbr.rel (%p754) target = $region108
        $region107: #{tpu_custom_call.1} parent=75 // pred_region
          %757 = dma.done %s750, 32
        $region108: #{tpu_custom_call.1} parent=75 // pred_fallthru
          _
        %s758 = sand.u32 %s46, 1
        %s759 = scalar_lea.sflag [#allocation16], %s758
        %s760 = sand.u32 %s257, 1
        %s761 = smul.addr %s760, 2048
        %s762 = scalar_lea.vmem [#allocation17], %s761
        // Predicated region
        $region109: #{tpu_custom_call.1} parent=75 // pred_check
          %p763 = pneg %p270
        $region110: #{tpu_custom_call.1} parent=75 // pred_check_branch
          %765 = sbr.rel (%p763) target = $region112
        $region111: #{tpu_custom_call.1} parent=75 // pred_region
          %766 = dma.done %s759, 32768
        $region112: #{tpu_custom_call.1} parent=75 // pred_fallthru
          _
        %s767 = sand.u32 %s46, 1
        %s768 = scalar_lea.sflag [#allocation19], %s767
        %s769 = sand.u32 %s283, 1
        %s770 = smul.addr %s769, 8
        %s771 = scalar_lea.vmem [#allocation18], %s770
        // Predicated region
        $region113: #{tpu_custom_call.1} parent=75 // pred_check
          %p772 = pneg %p296
        $region114: #{tpu_custom_call.1} parent=75 // pred_check_branch
          %774 = sbr.rel (%p772) target = $region116
        $region115: #{tpu_custom_call.1} parent=75 // pred_region
          %775 = dma.done %s768, 128
        $region116: #{tpu_custom_call.1} parent=75 // pred_fallthru
          _
        %s776 = sand.u32 %s46, 1
        %s777 = scalar_lea.sflag [#allocation19], %s776
        %s778 = sand.u32 %s309, 1
        %s779 = smul.addr %s778, 2048
        %s780 = scalar_lea.vmem [#allocation20], %s779
        // Predicated region
        $region117: #{tpu_custom_call.1} parent=75 // pred_check
          %p781 = pneg %p322
        $region118: #{tpu_custom_call.1} parent=75 // pred_check_branch
          %783 = sbr.rel (%p781) target = $region120
        $region119: #{tpu_custom_call.1} parent=75 // pred_region
          %784 = dma.done %s777, 32768
        $region120: #{tpu_custom_call.1} parent=75 // pred_fallthru
          _
        %s785 = sand.u32 %s46, 1
        %s786 = scalar_lea.sflag [#allocation22], %s785
        %s787 = sand.u32 %s335, 1
        %s788 = smul.addr %s787, 2
        %s789 = scalar_lea.vmem [#allocation21], %s788
        // Predicated region
        $region121: #{tpu_custom_call.1} parent=75 // pred_check
          %p790 = pneg %p348
        $region122: #{tpu_custom_call.1} parent=75 // pred_check_branch
          %792 = sbr.rel (%p790) target = $region124
        $region123: #{tpu_custom_call.1} parent=75 // pred_region
          %793 = dma.done %s786, 32
        $region124: #{tpu_custom_call.1} parent=75 // pred_fallthru
          _
        // Predicated region
        $region125: #{tpu_custom_call.1} parent=75 // pred_check
          %p794 = pneg %p369
        $region126: #{tpu_custom_call.1} parent=75 // pred_check_branch
          %796 = sbr.rel (%p794) target = $region128
        $region127: #{tpu_custom_call.1} parent=75 // pred_region
          %797 = dma.done [#allocation22], 4096
        $region128: #{tpu_custom_call.1} parent=75 // pred_fallthru
          _
        // Predicated region
        $region129: #{tpu_custom_call.1} parent=75 // pred_check
          %p798 = pneg %p390
        $region130: #{tpu_custom_call.1} parent=75 // pred_check_branch
          %800 = sbr.rel (%p798) target = $region132
        $region131: #{tpu_custom_call.1} parent=75 // pred_region
          %801 = dma.done [#allocation25], 16
        $region132: #{tpu_custom_call.1} parent=75 // pred_fallthru
          _
        %p802 = pneg %p62
        %p803 = pneg %p59
        %s804 = sand.u32 %s46, 1
        %s805 = scalar_lea.sflag [#allocation7], %s804
        %s806 = sand.u32 %s75, 1
        %s807 = smul.addr %s806, 2
        %s808 = scalar_lea.vmem [#allocation6], %s807
        %p809 = pneg %p88
        %p810 = pneg %p85
        %s811 = sand.u32 %s46, 1
        %s812 = scalar_lea.sflag [#allocation7], %s811
        %s813 = sand.u32 %s101, 1
        %s814 = smul.addr %s813, 2
        %s815 = scalar_lea.vmem [#allocation8], %s814
        %p816 = pneg %p114
        %p817 = pneg %p111
        %s818 = sand.u32 %s46, 1
        %s819 = scalar_lea.sflag [#allocation10], %s818
        %s820 = sand.u32 %s127, 1
        %s821 = smul.addr %s820, 1536
        %s822 = scalar_lea.vmem [#allocation9], %s821
        %p823 = pneg %p140
        %p824 = pneg %p137
        %s825 = sand.u32 %s46, 1
        %s826 = scalar_lea.sflag [#allocation10], %s825
        %s827 = sand.u32 %s153, 1
        %s828 = smul.addr %s827, 512
        %s829 = scalar_lea.vmem [#allocation11], %s828
        %p830 = pneg %p166
        %p831 = pneg %p163
        %s832 = sand.u32 %s46, 1
        %s833 = scalar_lea.sflag [#allocation13], %s832
        %s834 = sand.u32 %s179, 1
        %s835 = smul.addr %s834, 2
        %s836 = scalar_lea.vmem [#allocation12], %s835
        %p837 = pneg %p192
        %p838 = pneg %p189
        %s839 = sand.u32 %s46, 1
        %s840 = scalar_lea.sflag [#allocation13], %s839
        %s841 = sand.u32 %s205, 1
        %s842 = smul.addr %s841, 2
        %s843 = scalar_lea.vmem [#allocation14], %s842
        %p844 = pneg %p218
        %p845 = pneg %p215
        %s846 = sand.u32 %s46, 1
        %s847 = scalar_lea.sflag [#allocation16], %s846
        %s848 = sand.u32 %s231, 1
        %s849 = smul.addr %s848, 2
        %s850 = scalar_lea.vmem [#allocation15], %s849
        %p851 = pneg %p244
        %p852 = pneg %p241
        %s853 = sand.u32 %s46, 1
        %s854 = scalar_lea.sflag [#allocation16], %s853
        %s855 = sand.u32 %s257, 1
        %s856 = smul.addr %s855, 2048
        %s857 = scalar_lea.vmem [#allocation17], %s856
        %p858 = pneg %p270
        %p859 = pneg %p267
        %s860 = sand.u32 %s46, 1
        %s861 = scalar_lea.sflag [#allocation19], %s860
        %s862 = sand.u32 %s283, 1
        %s863 = smul.addr %s862, 8
        %s864 = scalar_lea.vmem [#allocation18], %s863
        %p865 = pneg %p296
        %p866 = pneg %p293
        %s867 = sand.u32 %s46, 1
        %s868 = scalar_lea.sflag [#allocation19], %s867
        %s869 = sand.u32 %s309, 1
        %s870 = smul.addr %s869, 2048
        %s871 = scalar_lea.vmem [#allocation20], %s870
        %p872 = pneg %p322
        %p873 = pneg %p319
        %s874 = sand.u32 %s46, 1
        %s875 = scalar_lea.sflag [#allocation22], %s874
        %s876 = sand.u32 %s335, 1
        %s877 = smul.addr %s876, 2
        %s878 = scalar_lea.vmem [#allocation21], %s877
        %p879 = pneg %p348
        %p880 = pneg %p345
        %p881 = pneg %p369
        %p882 = pneg %p366
        %p883 = pneg %p390
        %p884 = pneg %p387
        %p885 = pneg %p411
        %p886 = pneg %p408
        %p887 = scmp.eq.s32.totalorder %s46, 0
        // Predicated region
        $region133: #{tpu_custom_call.1} parent=75 // pred_check
          %p888 = pneg %p887
        $region134: #{tpu_custom_call.1} parent=75 // pred_check_branch
          %890 = sbr.rel (%p888) target = $region136
        $region135: #{tpu_custom_call.1} parent=75 // pred_region
          %v891 = vld [vmem:[#allocation3] sm:$0xff]
          %v892 = vld [vmem:[#allocation3 + $0x8] sm:$0xff]
          %v893 = vld [vmem:[#allocation3 + $0x10] sm:$0xff]
          %v894 = vld [vmem:[#allocation3 + $0x18] sm:$0xff]
          %v895 = vld [vmem:[#allocation3 + $0x20] sm:$0xff]
          %v896 = vld [vmem:[#allocation3 + $0x28] sm:$0xff]
          %v897 = vld [vmem:[#allocation3 + $0x30] sm:$0xff]
          %v898 = vld [vmem:[#allocation3 + $0x38] sm:$0xff]
          %v899 = vld [vmem:[#allocation3 + $0x40] sm:$0xff]
          %v900 = vld [vmem:[#allocation3 + $0x48] sm:$0xff]
          %v901 = vld [vmem:[#allocation3 + $0x50] sm:$0xff]
          %v902 = vld [vmem:[#allocation3 + $0x58] sm:$0xff]
          %v903 = vld [vmem:[#allocation3 + $0x60] sm:$0xff]
          %v904 = vld [vmem:[#allocation3 + $0x68] sm:$0xff]
          %v905 = vld [vmem:[#allocation3 + $0x70] sm:$0xff]
          %v906 = vld [vmem:[#allocation3 + $0x78] sm:$0xff]
          %907 = vst [vmem:[#allocation2] sm:$0xff] %v891
          %908 = vst [vmem:[#allocation2 + $0x8] sm:$0xff] %v892
          %909 = vst [vmem:[#allocation2 + $0x10] sm:$0xff] %v893
          %910 = vst [vmem:[#allocation2 + $0x18] sm:$0xff] %v894
          %911 = vst [vmem:[#allocation2 + $0x20] sm:$0xff] %v895
          %912 = vst [vmem:[#allocation2 + $0x28] sm:$0xff] %v896
          %913 = vst [vmem:[#allocation2 + $0x30] sm:$0xff] %v897
          %914 = vst [vmem:[#allocation2 + $0x38] sm:$0xff] %v898
          %915 = vst [vmem:[#allocation2 + $0x40] sm:$0xff] %v899
          %916 = vst [vmem:[#allocation2 + $0x48] sm:$0xff] %v900
          %917 = vst [vmem:[#allocation2 + $0x50] sm:$0xff] %v901
          %918 = vst [vmem:[#allocation2 + $0x58] sm:$0xff] %v902
          %919 = vst [vmem:[#allocation2 + $0x60] sm:$0xff] %v903
          %920 = vst [vmem:[#allocation2 + $0x68] sm:$0xff] %v904
          %921 = vst [vmem:[#allocation2 + $0x70] sm:$0xff] %v905
          %922 = vst [vmem:[#allocation2 + $0x78] sm:$0xff] %v906
        $region136: #{tpu_custom_call.1} parent=75 // pred_fallthru
          _
        %v923 = vld [vmem:[#allocation2] sm:$0xff]
        %v924 = vld [vmem:[#allocation2 + $0x8] sm:$0xff]
        %v925 = vld [vmem:[#allocation2 + $0x10] sm:$0xff]
        %v926 = vld [vmem:[#allocation2 + $0x18] sm:$0xff]
        %v927 = vld [vmem:[#allocation2 + $0x20] sm:$0xff]
        %v928 = vld [vmem:[#allocation2 + $0x28] sm:$0xff]
        %v929 = vld [vmem:[#allocation2 + $0x30] sm:$0xff]
        %v930 = vld [vmem:[#allocation2 + $0x38] sm:$0xff]
        %v931 = vld [vmem:[#allocation2 + $0x40] sm:$0xff]
        %v932 = vld [vmem:[#allocation2 + $0x48] sm:$0xff]
        %v933 = vld [vmem:[#allocation2 + $0x50] sm:$0xff]
        %v934 = vld [vmem:[#allocation2 + $0x58] sm:$0xff]
        %v935 = vld [vmem:[#allocation2 + $0x60] sm:$0xff]
        %v936 = vld [vmem:[#allocation2 + $0x68] sm:$0xff]
        %v937 = vld [vmem:[#allocation2 + $0x70] sm:$0xff]
        %v938 = vld [vmem:[#allocation2 + $0x78] sm:$0xff]
        %v939 = vadd.f32 %v923, %v924
        %940 = vadd.xlane.f32.xlu0 %v939
        %v941 = vpop.xlane.xlu0 %940
        %v942 = vadd.f32 %v925, %v926
        %943 = vadd.xlane.f32.xlu0 %v942
        %v944 = vpop.xlane.xlu0 %943
        %v945 = vadd.f32 %v927, %v928
        %946 = vadd.xlane.f32.xlu0 %v945
        %v947 = vpop.xlane.xlu0 %946
        %v948 = vadd.f32 %v929, %v930
        %949 = vadd.xlane.f32.xlu0 %v948
        %v950 = vpop.xlane.xlu0 %949
        %v951 = vadd.f32 %v931, %v932
        %952 = vadd.xlane.f32.xlu0 %v951
        %v953 = vpop.xlane.xlu0 %952
        %v954 = vadd.f32 %v933, %v934
        %955 = vadd.xlane.f32.xlu0 %v954
        %v956 = vpop.xlane.xlu0 %955
        %v957 = vadd.f32 %v935, %v936
        %958 = vadd.xlane.f32.xlu0 %v957
        %v959 = vpop.xlane.xlu0 %958
        %v960 = vadd.f32 %v937, %v938
        %961 = vadd.xlane.f32.xlu0 %v960
        %v962 = vpop.xlane.xlu0 %961
        %v963 = vrcp.pop 256.0
        %v964 = vmul.f32 %v941, %v963
        %v965 = vmul.f32 %v944, %v963
        %v966 = vmul.f32 %v947, %v963
        %v967 = vmul.f32 %v950, %v963
        %v968 = vmul.f32 %v953, %v963
        %v969 = vmul.f32 %v956, %v963
        %v970 = vmul.f32 %v959, %v963
        %v971 = vmul.f32 %v962, %v963
        %v972 = vmul.f32 %v923, %v923
        %v973 = vmul.f32 %v924, %v924
        %v974 = vmul.f32 %v925, %v925
        %v975 = vmul.f32 %v926, %v926
        %v976 = vmul.f32 %v927, %v927
        %v977 = vmul.f32 %v928, %v928
        %v978 = vmul.f32 %v929, %v929
        %v979 = vmul.f32 %v930, %v930
        %v980 = vmul.f32 %v931, %v931
        %v981 = vmul.f32 %v932, %v932
        %v982 = vmul.f32 %v933, %v933
        %v983 = vmul.f32 %v934, %v934
        %v984 = vmul.f32 %v935, %v935
        %v985 = vmul.f32 %v936, %v936
        %v986 = vmul.f32 %v937, %v937
        %v987 = vmul.f32 %v938, %v938
        %v988 = vadd.f32 %v972, %v973
        %989 = vadd.xlane.f32.xlu0 %v988
        %v990 = vpop.xlane.xlu0 %989
        %v991 = vadd.f32 %v974, %v975
        %992 = vadd.xlane.f32.xlu0 %v991
        %v993 = vpop.xlane.xlu0 %992
        %v994 = vadd.f32 %v976, %v977
        %995 = vadd.xlane.f32.xlu0 %v994
        %v996 = vpop.xlane.xlu0 %995
        %v997 = vadd.f32 %v978, %v979
        %998 = vadd.xlane.f32.xlu0 %v997
        %v999 = vpop.xlane.xlu0 %998
        %v1000 = vadd.f32 %v980, %v981
        %1001 = vadd.xlane.f32.xlu0 %v1000
        %v1002 = vpop.xlane.xlu0 %1001
        %v1003 = vadd.f32 %v982, %v983
        %1004 = vadd.xlane.f32.xlu0 %v1003
        %v1005 = vpop.xlane.xlu0 %1004
        %v1006 = vadd.f32 %v984, %v985
        %1007 = vadd.xlane.f32.xlu0 %v1006
        %v1008 = vpop.xlane.xlu0 %1007
        %v1009 = vadd.f32 %v986, %v987
        %1010 = vadd.xlane.f32.xlu0 %v1009
        %v1011 = vpop.xlane.xlu0 %1010
        %v1012 = vmul.f32 %v990, %v963
        %v1013 = vmul.f32 %v993, %v963
        %v1014 = vmul.f32 %v996, %v963
        %v1015 = vmul.f32 %v999, %v963
        %v1016 = vmul.f32 %v1002, %v963
        %v1017 = vmul.f32 %v1005, %v963
        %v1018 = vmul.f32 %v1008, %v963
        %v1019 = vmul.f32 %v1011, %v963
        %v1020 = vmul.f32 %v964, %v964
        %v1021 = vmul.f32 %v965, %v965
        %v1022 = vmul.f32 %v966, %v966
        %v1023 = vmul.f32 %v967, %v967
        %v1024 = vmul.f32 %v968, %v968
        %v1025 = vmul.f32 %v969, %v969
        %v1026 = vmul.f32 %v970, %v970
        %v1027 = vmul.f32 %v971, %v971
        %v1028 = vsub.f32 %v1012, %v1020
        %v1029 = vsub.f32 %v1013, %v1021
        %v1030 = vsub.f32 %v1014, %v1022
        %v1031 = vsub.f32 %v1015, %v1023
        %v1032 = vsub.f32 %v1016, %v1024
        %v1033 = vsub.f32 %v1017, %v1025
        %v1034 = vsub.f32 %v1018, %v1026
        %v1035 = vsub.f32 %v1019, %v1027
        %v1036 = vsub.f32 %v923, %v964
        %v1037 = vsub.f32 %v924, %v964
        %v1038 = vsub.f32 %v925, %v965
        %v1039 = vsub.f32 %v926, %v965
        %v1040 = vsub.f32 %v927, %v966
        %v1041 = vsub.f32 %v928, %v966
        %v1042 = vsub.f32 %v929, %v967
        %v1043 = vsub.f32 %v930, %v967
        %v1044 = vsub.f32 %v931, %v968
        %v1045 = vsub.f32 %v932, %v968
        %v1046 = vsub.f32 %v933, %v969
        %v1047 = vsub.f32 %v934, %v969
        %v1048 = vsub.f32 %v935, %v970
        %v1049 = vsub.f32 %v936, %v970
        %v1050 = vsub.f32 %v937, %v971
        %v1051 = vsub.f32 %v938, %v971
        %v1052 = vadd.f32 %v1028, 1e-05
        %v1053 = vadd.f32 %v1029, 1e-05
        %v1054 = vadd.f32 %v1030, 1e-05
        %v1055 = vadd.f32 %v1031, 1e-05
        %v1056 = vadd.f32 %v1032, 1e-05
        %v1057 = vadd.f32 %v1033, 1e-05
        %v1058 = vadd.f32 %v1034, 1e-05
        %v1059 = vadd.f32 %v1035, 1e-05
        %v1060 = vrsqrt.pop %v1052
        %v1061 = vrsqrt.pop %v1053
        %v1062 = vrsqrt.pop %v1054
        %v1063 = vrsqrt.pop %v1055
        %v1064 = vrsqrt.pop %v1056
        %v1065 = vrsqrt.pop %v1057
        %v1066 = vrsqrt.pop %v1058
        %v1067 = vrsqrt.pop %v1059
        %v1068 = vmul.f32 %v1036, %v1060
        %v1069 = vmul.f32 %v1037, %v1060
        %v1070 = vmul.f32 %v1038, %v1061
        %v1071 = vmul.f32 %v1039, %v1061
        %v1072 = vmul.f32 %v1040, %v1062
        %v1073 = vmul.f32 %v1041, %v1062
        %v1074 = vmul.f32 %v1042, %v1063
        %v1075 = vmul.f32 %v1043, %v1063
        %v1076 = vmul.f32 %v1044, %v1064
        %v1077 = vmul.f32 %v1045, %v1064
        %v1078 = vmul.f32 %v1046, %v1065
        %v1079 = vmul.f32 %v1047, %v1065
        %v1080 = vmul.f32 %v1048, %v1066
        %v1081 = vmul.f32 %v1049, %v1066
        %v1082 = vmul.f32 %v1050, %v1067
        %v1083 = vmul.f32 %v1051, %v1067
        %v1084 = vld [vmem:[%s699] sm:$0x3]
        %v1086 = vlaneseq
        %v1087 = vshrl.u32 %v1086, 7
        %v1088 = vsub.s32 0, %v1087
        %v1089 = vrot.slane %v1084, %v1088
        %v1090 = vlaneseq
        %v1091 = vshrl.u32 %v1090, 7
        %v1092 = vsub.s32 1, %v1091
        %v1093 = vrot.slane %v1084, %v1092
        %v1096 = vmul.f32 %v1068, %v1089
        %v1097 = vmul.f32 %v1069, %v1093
        %v1098 = vmul.f32 %v1070, %v1089
        %v1099 = vmul.f32 %v1071, %v1093
        %v1100 = vmul.f32 %v1072, %v1089
        %v1101 = vmul.f32 %v1073, %v1093
        %v1102 = vmul.f32 %v1074, %v1089
        %v1103 = vmul.f32 %v1075, %v1093
        %v1104 = vmul.f32 %v1076, %v1089
        %v1105 = vmul.f32 %v1077, %v1093
        %v1106 = vmul.f32 %v1078, %v1089
        %v1107 = vmul.f32 %v1079, %v1093
        %v1108 = vmul.f32 %v1080, %v1089
        %v1109 = vmul.f32 %v1081, %v1093
        %v1110 = vmul.f32 %v1082, %v1089
        %v1111 = vmul.f32 %v1083, %v1093
        %v1112 = vld [vmem:[%s708] sm:$0x3]
        %v1114 = vlaneseq
        %v1115 = vshrl.u32 %v1114, 7
        %v1116 = vsub.s32 0, %v1115
        %v1117 = vrot.slane %v1112, %v1116
        %v1118 = vlaneseq
        %v1119 = vshrl.u32 %v1118, 7
        %v1120 = vsub.s32 1, %v1119
        %v1121 = vrot.slane %v1112, %v1120
        %v1124 = vadd.f32 %v1096, %v1117
        %v1125 = vadd.f32 %v1097, %v1121
        %v1126 = vadd.f32 %v1098, %v1117
        %v1127 = vadd.f32 %v1099, %v1121
        %v1128 = vadd.f32 %v1100, %v1117
        %v1129 = vadd.f32 %v1101, %v1121
        %v1130 = vadd.f32 %v1102, %v1117
        %v1131 = vadd.f32 %v1103, %v1121
        %v1132 = vadd.f32 %v1104, %v1117
        %v1133 = vadd.f32 %v1105, %v1121
        %v1134 = vadd.f32 %v1106, %v1117
        %v1135 = vadd.f32 %v1107, %v1121
        %v1136 = vadd.f32 %v1108, %v1117
        %v1137 = vadd.f32 %v1109, %v1121
        %v1138 = vadd.f32 %v1110, %v1117
        %v1139 = vadd.f32 %v1111, %v1121
        %v1140 = vld [vmem:[%s717] sm:$0xff]
        %v1141 = vld [vmem:[%s717 + $0x8] sm:$0xff]
        %v1142 = vld [vmem:[%s717 + $0x10] sm:$0xff]
        %v1143 = vld [vmem:[%s717 + $0x18] sm:$0xff]
        %v1144 = vld [vmem:[%s717 + $0x20] sm:$0xff]
        %v1145 = vld [vmem:[%s717 + $0x28] sm:$0xff]
        %v1146 = vld [vmem:[%s717 + $0x30] sm:$0xff]
        %v1147 = vld [vmem:[%s717 + $0x38] sm:$0xff]
        %v1148 = vld [vmem:[%s717 + $0x40] sm:$0xff]
        %v1149 = vld [vmem:[%s717 + $0x48] sm:$0xff]
        %v1150 = vld [vmem:[%s717 + $0x50] sm:$0xff]
        %v1151 = vld [vmem:[%s717 + $0x58] sm:$0xff]
        %v1152 = vld [vmem:[%s717 + $0x60] sm:$0xff]
        %v1153 = vld [vmem:[%s717 + $0x68] sm:$0xff]
        %v1154 = vld [vmem:[%s717 + $0x70] sm:$0xff]
        %v1155 = vld [vmem:[%s717 + $0x78] sm:$0xff]
        %v1156 = vld [vmem:[%s717 + $0x80] sm:$0xff]
        %v1157 = vld [vmem:[%s717 + $0x88] sm:$0xff]
        %v1158 = vld [vmem:[%s717 + $0x90] sm:$0xff]
        %v1159 = vld [vmem:[%s717 + $0x98] sm:$0xff]
        %v1160 = vld [vmem:[%s717 + $0xa0] sm:$0xff]
        %v1161 = vld [vmem:[%s717 + $0xa8] sm:$0xff]
        %v1162 = vld [vmem:[%s717 + $0xb0] sm:$0xff]
        %v1163 = vld [vmem:[%s717 + $0xb8] sm:$0xff]
        %v1164 = vld [vmem:[%s717 + $0xc0] sm:$0xff]
        %v1165 = vld [vmem:[%s717 + $0xc8] sm:$0xff]
        %v1166 = vld [vmem:[%s717 + $0xd0] sm:$0xff]
        %v1167 = vld [vmem:[%s717 + $0xd8] sm:$0xff]
        %v1168 = vld [vmem:[%s717 + $0xe0] sm:$0xff]
        %v1169 = vld [vmem:[%s717 + $0xe8] sm:$0xff]
        %v1170 = vld [vmem:[%s717 + $0xf0] sm:$0xff]
        %v1171 = vld [vmem:[%s717 + $0xf8] sm:$0xff]
        %v1172 = vld [vmem:[%s717 + $0x100] sm:$0xff]
        %v1173 = vld [vmem:[%s717 + $0x108] sm:$0xff]
        %v1174 = vld [vmem:[%s717 + $0x110] sm:$0xff]
        %v1175 = vld [vmem:[%s717 + $0x118] sm:$0xff]
        %v1176 = vld [vmem:[%s717 + $0x120] sm:$0xff]
        %v1177 = vld [vmem:[%s717 + $0x128] sm:$0xff]
        %v1178 = vld [vmem:[%s717 + $0x130] sm:$0xff]
        %v1179 = vld [vmem:[%s717 + $0x138] sm:$0xff]
        %v1180 = vld [vmem:[%s717 + $0x140] sm:$0xff]
        %v1181 = vld [vmem:[%s717 + $0x148] sm:$0xff]
        %v1182 = vld [vmem:[%s717 + $0x150] sm:$0xff]
        %v1183 = vld [vmem:[%s717 + $0x158] sm:$0xff]
        %v1184 = vld [vmem:[%s717 + $0x160] sm:$0xff]
        %v1185 = vld [vmem:[%s717 + $0x168] sm:$0xff]
        %v1186 = vld [vmem:[%s717 + $0x170] sm:$0xff]
        %v1187 = vld [vmem:[%s717 + $0x178] sm:$0xff]
        %v1188 = vld [vmem:[%s717 + $0x180] sm:$0xff]
        %v1189 = vld [vmem:[%s717 + $0x188] sm:$0xff]
        %v1190 = vld [vmem:[%s717 + $0x190] sm:$0xff]
        %v1191 = vld [vmem:[%s717 + $0x198] sm:$0xff]
        %v1192 = vld [vmem:[%s717 + $0x1a0] sm:$0xff]
        %v1193 = vld [vmem:[%s717 + $0x1a8] sm:$0xff]
        %v1194 = vld [vmem:[%s717 + $0x1b0] sm:$0xff]
        %v1195 = vld [vmem:[%s717 + $0x1b8] sm:$0xff]
        %v1196 = vld [vmem:[%s717 + $0x1c0] sm:$0xff]
        %v1197 = vld [vmem:[%s717 + $0x1c8] sm:$0xff]
        %v1198 = vld [vmem:[%s717 + $0x1d0] sm:$0xff]
        %v1199 = vld [vmem:[%s717 + $0x1d8] sm:$0xff]
        %v1200 = vld [vmem:[%s717 + $0x1e0] sm:$0xff]
        %v1201 = vld [vmem:[%s717 + $0x1e8] sm:$0xff]
        %v1202 = vld [vmem:[%s717 + $0x1f0] sm:$0xff]
        %v1203 = vld [vmem:[%s717 + $0x1f8] sm:$0xff]
        %v1204 = vld [vmem:[%s717 + $0x200] sm:$0xff]
        %v1205 = vld [vmem:[%s717 + $0x208] sm:$0xff]
        %v1206 = vld [vmem:[%s717 + $0x210] sm:$0xff]
        %v1207 = vld [vmem:[%s717 + $0x218] sm:$0xff]
        %v1208 = vld [vmem:[%s717 + $0x220] sm:$0xff]
        %v1209 = vld [vmem:[%s717 + $0x228] sm:$0xff]
        %v1210 = vld [vmem:[%s717 + $0x230] sm:$0xff]
        %v1211 = vld [vmem:[%s717 + $0x238] sm:$0xff]
        %v1212 = vld [vmem:[%s717 + $0x240] sm:$0xff]
        %v1213 = vld [vmem:[%s717 + $0x248] sm:$0xff]
        %v1214 = vld [vmem:[%s717 + $0x250] sm:$0xff]
        %v1215 = vld [vmem:[%s717 + $0x258] sm:$0xff]
        %v1216 = vld [vmem:[%s717 + $0x260] sm:$0xff]
        %v1217 = vld [vmem:[%s717 + $0x268] sm:$0xff]
        %v1218 = vld [vmem:[%s717 + $0x270] sm:$0xff]
        %v1219 = vld [vmem:[%s717 + $0x278] sm:$0xff]
        %v1220 = vld [vmem:[%s717 + $0x280] sm:$0xff]
        %v1221 = vld [vmem:[%s717 + $0x288] sm:$0xff]
        %v1222 = vld [vmem:[%s717 + $0x290] sm:$0xff]
        %v1223 = vld [vmem:[%s717 + $0x298] sm:$0xff]
        %v1224 = vld [vmem:[%s717 + $0x2a0] sm:$0xff]
        %v1225 = vld [vmem:[%s717 + $0x2a8] sm:$0xff]
        %v1226 = vld [vmem:[%s717 + $0x2b0] sm:$0xff]
        %v1227 = vld [vmem:[%s717 + $0x2b8] sm:$0xff]
        %v1228 = vld [vmem:[%s717 + $0x2c0] sm:$0xff]
        %v1229 = vld [vmem:[%s717 + $0x2c8] sm:$0xff]
        %v1230 = vld [vmem:[%s717 + $0x2d0] sm:$0xff]
        %v1231 = vld [vmem:[%s717 + $0x2d8] sm:$0xff]
        %v1232 = vld [vmem:[%s717 + $0x2e0] sm:$0xff]
        %v1233 = vld [vmem:[%s717 + $0x2e8] sm:$0xff]
        %v1234 = vld [vmem:[%s717 + $0x2f0] sm:$0xff]
        %v1235 = vld [vmem:[%s717 + $0x2f8] sm:$0xff]
        %v1236 = vld [vmem:[%s717 + $0x300] sm:$0xff]
        %v1237 = vld [vmem:[%s717 + $0x308] sm:$0xff]
        %v1238 = vld [vmem:[%s717 + $0x310] sm:$0xff]
        %v1239 = vld [vmem:[%s717 + $0x318] sm:$0xff]
        %v1240 = vld [vmem:[%s717 + $0x320] sm:$0xff]
        %v1241 = vld [vmem:[%s717 + $0x328] sm:$0xff]
        %v1242 = vld [vmem:[%s717 + $0x330] sm:$0xff]
        %v1243 = vld [vmem:[%s717 + $0x338] sm:$0xff]
        %v1244 = vld [vmem:[%s717 + $0x340] sm:$0xff]
        %v1245 = vld [vmem:[%s717 + $0x348] sm:$0xff]
        %v1246 = vld [vmem:[%s717 + $0x350] sm:$0xff]
        %v1247 = vld [vmem:[%s717 + $0x358] sm:$0xff]
        %v1248 = vld [vmem:[%s717 + $0x360] sm:$0xff]
        %v1249 = vld [vmem:[%s717 + $0x368] sm:$0xff]
        %v1250 = vld [vmem:[%s717 + $0x370] sm:$0xff]
        %v1251 = vld [vmem:[%s717 + $0x378] sm:$0xff]
        %v1252 = vld [vmem:[%s717 + $0x380] sm:$0xff]
        %v1253 = vld [vmem:[%s717 + $0x388] sm:$0xff]
        %v1254 = vld [vmem:[%s717 + $0x390] sm:$0xff]
        %v1255 = vld [vmem:[%s717 + $0x398] sm:$0xff]
        %v1256 = vld [vmem:[%s717 + $0x3a0] sm:$0xff]
        %v1257 = vld [vmem:[%s717 + $0x3a8] sm:$0xff]
        %v1258 = vld [vmem:[%s717 + $0x3b0] sm:$0xff]
        %v1259 = vld [vmem:[%s717 + $0x3b8] sm:$0xff]
        %v1260 = vld [vmem:[%s717 + $0x3c0] sm:$0xff]
        %v1261 = vld [vmem:[%s717 + $0x3c8] sm:$0xff]
        %v1262 = vld [vmem:[%s717 + $0x3d0] sm:$0xff]
        %v1263 = vld [vmem:[%s717 + $0x3d8] sm:$0xff]
        %v1264 = vld [vmem:[%s717 + $0x3e0] sm:$0xff]
        %v1265 = vld [vmem:[%s717 + $0x3e8] sm:$0xff]
        %v1266 = vld [vmem:[%s717 + $0x3f0] sm:$0xff]
        %v1267 = vld [vmem:[%s717 + $0x3f8] sm:$0xff]
        %v1268 = vld [vmem:[%s717 + $0x400] sm:$0xff]
        %v1269 = vld [vmem:[%s717 + $0x408] sm:$0xff]
        %v1270 = vld [vmem:[%s717 + $0x410] sm:$0xff]
        %v1271 = vld [vmem:[%s717 + $0x418] sm:$0xff]
        %v1272 = vld [vmem:[%s717 + $0x420] sm:$0xff]
        %v1273 = vld [vmem:[%s717 + $0x428] sm:$0xff]
        %v1274 = vld [vmem:[%s717 + $0x430] sm:$0xff]
        %v1275 = vld [vmem:[%s717 + $0x438] sm:$0xff]
        %v1276 = vld [vmem:[%s717 + $0x440] sm:$0xff]
        %v1277 = vld [vmem:[%s717 + $0x448] sm:$0xff]
        %v1278 = vld [vmem:[%s717 + $0x450] sm:$0xff]
        %v1279 = vld [vmem:[%s717 + $0x458] sm:$0xff]
        %v1280 = vld [vmem:[%s717 + $0x460] sm:$0xff]
        %v1281 = vld [vmem:[%s717 + $0x468] sm:$0xff]
        %v1282 = vld [vmem:[%s717 + $0x470] sm:$0xff]
        %v1283 = vld [vmem:[%s717 + $0x478] sm:$0xff]
        %v1284 = vld [vmem:[%s717 + $0x480] sm:$0xff]
        %v1285 = vld [vmem:[%s717 + $0x488] sm:$0xff]
        %v1286 = vld [vmem:[%s717 + $0x490] sm:$0xff]
        %v1287 = vld [vmem:[%s717 + $0x498] sm:$0xff]
        %v1288 = vld [vmem:[%s717 + $0x4a0] sm:$0xff]
        %v1289 = vld [vmem:[%s717 + $0x4a8] sm:$0xff]
        %v1290 = vld [vmem:[%s717 + $0x4b0] sm:$0xff]
        %v1291 = vld [vmem:[%s717 + $0x4b8] sm:$0xff]
        %v1292 = vld [vmem:[%s717 + $0x4c0] sm:$0xff]
        %v1293 = vld [vmem:[%s717 + $0x4c8] sm:$0xff]
        %v1294 = vld [vmem:[%s717 + $0x4d0] sm:$0xff]
        %v1295 = vld [vmem:[%s717 + $0x4d8] sm:$0xff]
        %v1296 = vld [vmem:[%s717 + $0x4e0] sm:$0xff]
        %v1297 = vld [vmem:[%s717 + $0x4e8] sm:$0xff]
        %v1298 = vld [vmem:[%s717 + $0x4f0] sm:$0xff]
        %v1299 = vld [vmem:[%s717 + $0x4f8] sm:$0xff]
        %v1300 = vld [vmem:[%s717 + $0x500] sm:$0xff]
        %v1301 = vld [vmem:[%s717 + $0x508] sm:$0xff]
        %v1302 = vld [vmem:[%s717 + $0x510] sm:$0xff]
        %v1303 = vld [vmem:[%s717 + $0x518] sm:$0xff]
        %v1304 = vld [vmem:[%s717 + $0x520] sm:$0xff]
        %v1305 = vld [vmem:[%s717 + $0x528] sm:$0xff]
        %v1306 = vld [vmem:[%s717 + $0x530] sm:$0xff]
        %v1307 = vld [vmem:[%s717 + $0x538] sm:$0xff]
        %v1308 = vld [vmem:[%s717 + $0x540] sm:$0xff]
        %v1309 = vld [vmem:[%s717 + $0x548] sm:$0xff]
        %v1310 = vld [vmem:[%s717 + $0x550] sm:$0xff]
        %v1311 = vld [vmem:[%s717 + $0x558] sm:$0xff]
        %v1312 = vld [vmem:[%s717 + $0x560] sm:$0xff]
        %v1313 = vld [vmem:[%s717 + $0x568] sm:$0xff]
        %v1314 = vld [vmem:[%s717 + $0x570] sm:$0xff]
        %v1315 = vld [vmem:[%s717 + $0x578] sm:$0xff]
        %v1316 = vld [vmem:[%s717 + $0x580] sm:$0xff]
        %v1317 = vld [vmem:[%s717 + $0x588] sm:$0xff]
        %v1318 = vld [vmem:[%s717 + $0x590] sm:$0xff]
        %v1319 = vld [vmem:[%s717 + $0x598] sm:$0xff]
        %v1320 = vld [vmem:[%s717 + $0x5a0] sm:$0xff]
        %v1321 = vld [vmem:[%s717 + $0x5a8] sm:$0xff]
        %v1322 = vld [vmem:[%s717 + $0x5b0] sm:$0xff]
        %v1323 = vld [vmem:[%s717 + $0x5b8] sm:$0xff]
        %v1324 = vld [vmem:[%s717 + $0x5c0] sm:$0xff]
        %v1325 = vld [vmem:[%s717 + $0x5c8] sm:$0xff]
        %v1326 = vld [vmem:[%s717 + $0x5d0] sm:$0xff]
        %v1327 = vld [vmem:[%s717 + $0x5d8] sm:$0xff]
        %v1328 = vld [vmem:[%s717 + $0x5e0] sm:$0xff]
        %v1329 = vld [vmem:[%s717 + $0x5e8] sm:$0xff]
        %v1330 = vld [vmem:[%s717 + $0x5f0] sm:$0xff]
        %v1331 = vld [vmem:[%s717 + $0x5f8] sm:$0xff]
        %1332 = vmatprep.subr.mxu0 %v1231
        %1333 = vmatpush1.msra.mxu0 %v1230
        %1334 = vmatprep.subr.mxu0 %v1225
        %1335 = vmatpush1.msra.mxu0 %v1224
        %1336 = vmatprep.subr.mxu0 %v1219
        %1337 = vmatpush1.msra.mxu0 %v1218
        %1338 = vmatprep.subr.mxu0 %v1213
        %1339 = vmatpush1.msra.mxu0 %v1212
        %1340 = vmatprep.subr.mxu0 %v1207
        %1341 = vmatpush1.msra.mxu0 %v1206
        %1342 = vmatprep.subr.mxu0 %v1201
        %1343 = vmatpush1.msra.mxu0 %v1200
        %1344 = vmatprep.subr.mxu0 %v1195
        %1345 = vmatpush1.msra.mxu0 %v1194
        %1346 = vmatprep.subr.mxu0 %v1189
        %1347 = vmatpush1.msra.mxu0 %v1188
        %1348 = vmatprep.subr.mxu0 %v1183
        %1349 = vmatpush1.msra.mxu0 %v1182
        %1350 = vmatprep.subr.mxu0 %v1177
        %1351 = vmatpush1.msra.mxu0 %v1176
        %1352 = vmatprep.subr.mxu0 %v1171
        %1353 = vmatpush1.msra.mxu0 %v1170
        %1354 = vmatprep.subr.mxu0 %v1165
        %1355 = vmatpush1.msra.mxu0 %v1164
        %1356 = vmatprep.subr.mxu0 %v1159
        %1357 = vmatpush1.msra.mxu0 %v1158
        %1358 = vmatprep.subr.mxu0 %v1153
        %1359 = vmatpush1.msra.mxu0 %v1152
        %1360 = vmatprep.subr.mxu0 %v1147
        %1361 = vmatpush1.msra.mxu0 %v1146
        %1362 = vmatprep.subr.mxu0 %v1141
        %1363 = vmatpush1.msra.mxu0 %v1140
        %1364 = vmatprep.subr.mxu0 %v1327
        %1365 = vmatpush2.msra.mxu0 %v1326
        %1366 = vmatprep.subr.mxu0 %v1321
        %1367 = vmatpush2.msra.mxu0 %v1320
        %1368 = vmatprep.subr.mxu0 %v1315
        %1369 = vmatpush2.msra.mxu0 %v1314
        %1370 = vmatprep.subr.mxu0 %v1309
        %1371 = vmatpush2.msra.mxu0 %v1308
        %1372 = vmatprep.subr.mxu0 %v1303
        %1373 = vmatpush2.msra.mxu0 %v1302
        %1374 = vmatprep.subr.mxu0 %v1297
        %1375 = vmatpush2.msra.mxu0 %v1296
        %1376 = vmatprep.subr.mxu0 %v1291
        %1377 = vmatpush2.msra.mxu0 %v1290
        %1378 = vmatprep.subr.mxu0 %v1285
        %1379 = vmatpush2.msra.mxu0 %v1284
        %1380 = vmatprep.subr.mxu0 %v1279
        %1381 = vmatpush2.msra.mxu0 %v1278
        %1382 = vmatprep.subr.mxu0 %v1273
        %1383 = vmatpush2.msra.mxu0 %v1272
        %1384 = vmatprep.subr.mxu0 %v1267
        %1385 = vmatpush2.msra.mxu0 %v1266
        %1386 = vmatprep.subr.mxu0 %v1261
        %1387 = vmatpush2.msra.mxu0 %v1260
        %1388 = vmatprep.subr.mxu0 %v1255
        %1389 = vmatpush2.msra.mxu0 %v1254
        %1390 = vmatprep.subr.mxu0 %v1249
        %1391 = vmatpush2.msra.mxu0 %v1248
        %1392 = vmatprep.subr.mxu0 %v1243
        %1393 = vmatpush2.msra.mxu0 %v1242
        %1394 = vmatprep.subr.mxu0 %v1237
        %1395 = vmatpush2.msra.mxu0 %v1236
        %1396 = vmatprep.mubr.f32.mxu0 %v1125
        %1397 = vmatmul.mubr.f32.gmra.mxu0 %v1124
        %v1398 = vpop.f32.mrf.mxu0
        %v1399 = vadd.f32 0.0, %v1398
        %v1400 = vpop.f32.mrf.mxu0
        %v1401 = vadd.f32 0.0, %v1400
        %1402 = vmatprep.mubr.f32.mxu0 %v1127
        %1403 = vmatmul.mubr.f32.gmra.mxu0 %v1126
        %v1404 = vpop.f32.mrf.mxu0
        %v1405 = vadd.f32 0.0, %v1404
        %v1406 = vpop.f32.mrf.mxu0
        %v1407 = vadd.f32 0.0, %v1406
        %1408 = vmatprep.mubr.f32.mxu0 %v1129
        %1409 = vmatmul.mubr.f32.gmra.mxu0 %v1128
        %v1410 = vpop.f32.mrf.mxu0
        %v1411 = vadd.f32 0.0, %v1410
        %v1412 = vpop.f32.mrf.mxu0
        %v1413 = vadd.f32 0.0, %v1412
        %1414 = vmatprep.mubr.f32.mxu0 %v1131
        %1415 = vmatmul.mubr.f32.gmra.mxu0 %v1130
        %v1416 = vpop.f32.mrf.mxu0
        %v1417 = vadd.f32 0.0, %v1416
        %v1418 = vpop.f32.mrf.mxu0
        %v1419 = vadd.f32 0.0, %v1418
        %1420 = vmatprep.mubr.f32.mxu0 %v1133
        %1421 = vmatmul.mubr.f32.gmra.mxu0 %v1132
        %v1422 = vpop.f32.mrf.mxu0
        %v1423 = vadd.f32 0.0, %v1422
        %v1424 = vpop.f32.mrf.mxu0
        %v1425 = vadd.f32 0.0, %v1424
        %1426 = vmatprep.mubr.f32.mxu0 %v1135
        %1427 = vmatmul.mubr.f32.gmra.mxu0 %v1134
        %v1428 = vpop.f32.mrf.mxu0
        %v1429 = vadd.f32 0.0, %v1428
        %v1430 = vpop.f32.mrf.mxu0
        %v1431 = vadd.f32 0.0, %v1430
        %1432 = vmatprep.mubr.f32.mxu0 %v1137
        %1433 = vmatmul.mubr.f32.gmra.mxu0 %v1136
        %v1434 = vpop.f32.mrf.mxu0
        %v1435 = vadd.f32 0.0, %v1434
        %v1436 = vpop.f32.mrf.mxu0
        %v1437 = vadd.f32 0.0, %v1436
        %1438 = vmatprep.mubr.f32.mxu0 %v1139
        %1439 = vmatmul.mubr.f32.gmra.mxu0 %v1138
        %v1440 = vpop.f32.mrf.mxu0
        %v1441 = vadd.f32 0.0, %v1440
        %v1442 = vpop.f32.mrf.mxu0
        %v1443 = vadd.f32 0.0, %v1442
        %1444 = vdwg.mxu0
        %1445 = vmatprep.subr.mxu0 %v1233
        %1446 = vmatpush1.msra.mxu0 %v1232
        %1447 = vmatprep.subr.mxu0 %v1227
        %1448 = vmatpush1.msra.mxu0 %v1226
        %1449 = vmatprep.subr.mxu0 %v1221
        %1450 = vmatpush1.msra.mxu0 %v1220
        %1451 = vmatprep.subr.mxu0 %v1215
        %1452 = vmatpush1.msra.mxu0 %v1214
        %1453 = vmatprep.subr.mxu0 %v1209
        %1454 = vmatpush1.msra.mxu0 %v1208
        %1455 = vmatprep.subr.mxu0 %v1203
        %1456 = vmatpush1.msra.mxu0 %v1202
        %1457 = vmatprep.subr.mxu0 %v1197
        %1458 = vmatpush1.msra.mxu0 %v1196
        %1459 = vmatprep.subr.mxu0 %v1191
        %1460 = vmatpush1.msra.mxu0 %v1190
        %1461 = vmatprep.subr.mxu0 %v1185
        %1462 = vmatpush1.msra.mxu0 %v1184
        %1463 = vmatprep.subr.mxu0 %v1179
        %1464 = vmatpush1.msra.mxu0 %v1178
        %1465 = vmatprep.subr.mxu0 %v1173
        %1466 = vmatpush1.msra.mxu0 %v1172
        %1467 = vmatprep.subr.mxu0 %v1167
        %1468 = vmatpush1.msra.mxu0 %v1166
        %1469 = vmatprep.subr.mxu0 %v1161
        %1470 = vmatpush1.msra.mxu0 %v1160
        %1471 = vmatprep.subr.mxu0 %v1155
        %1472 = vmatpush1.msra.mxu0 %v1154
        %1473 = vmatprep.subr.mxu0 %v1149
        %1474 = vmatpush1.msra.mxu0 %v1148
        %1475 = vmatprep.subr.mxu0 %v1143
        %1476 = vmatpush1.msra.mxu0 %v1142
        %1477 = vmatprep.subr.mxu0 %v1329
        %1478 = vmatpush2.msra.mxu0 %v1328
        %1479 = vmatprep.subr.mxu0 %v1323
        %1480 = vmatpush2.msra.mxu0 %v1322
        %1481 = vmatprep.subr.mxu0 %v1317
        %1482 = vmatpush2.msra.mxu0 %v1316
        %1483 = vmatprep.subr.mxu0 %v1311
        %1484 = vmatpush2.msra.mxu0 %v1310
        %1485 = vmatprep.subr.mxu0 %v1305
        %1486 = vmatpush2.msra.mxu0 %v1304
        %1487 = vmatprep.subr.mxu0 %v1299
        %1488 = vmatpush2.msra.mxu0 %v1298
        %1489 = vmatprep.subr.mxu0 %v1293
        %1490 = vmatpush2.msra.mxu0 %v1292
        %1491 = vmatprep.subr.mxu0 %v1287
        %1492 = vmatpush2.msra.mxu0 %v1286
        %1493 = vmatprep.subr.mxu0 %v1281
        %1494 = vmatpush2.msra.mxu0 %v1280
        %1495 = vmatprep.subr.mxu0 %v1275
        %1496 = vmatpush2.msra.mxu0 %v1274
        %1497 = vmatprep.subr.mxu0 %v1269
        %1498 = vmatpush2.msra.mxu0 %v1268
        %1499 = vmatprep.subr.mxu0 %v1263
        %1500 = vmatpush2.msra.mxu0 %v1262
        %1501 = vmatprep.subr.mxu0 %v1257
        %1502 = vmatpush2.msra.mxu0 %v1256
        %1503 = vmatprep.subr.mxu0 %v1251
        %1504 = vmatpush2.msra.mxu0 %v1250
        %1505 = vmatprep.subr.mxu0 %v1245
        %1506 = vmatpush2.msra.mxu0 %v1244
        %1507 = vmatprep.subr.mxu0 %v1239
        %1508 = vmatpush2.msra.mxu0 %v1238
        %1509 = vmatprep.mubr.f32.mxu0 %v1125
        %1510 = vmatmul.mubr.f32.gmra.mxu0 %v1124
        %v1511 = vpop.f32.mrf.mxu0
        %v1512 = vadd.f32 0.0, %v1511
        %v1513 = vpop.f32.mrf.mxu0
        %v1514 = vadd.f32 0.0, %v1513
        %1515 = vmatprep.mubr.f32.mxu0 %v1127
        %1516 = vmatmul.mubr.f32.gmra.mxu0 %v1126
        %v1517 = vpop.f32.mrf.mxu0
        %v1518 = vadd.f32 0.0, %v1517
        %v1519 = vpop.f32.mrf.mxu0
        %v1520 = vadd.f32 0.0, %v1519
        %1521 = vmatprep.mubr.f32.mxu0 %v1129
        %1522 = vmatmul.mubr.f32.gmra.mxu0 %v1128
        %v1523 = vpop.f32.mrf.mxu0
        %v1524 = vadd.f32 0.0, %v1523
        %v1525 = vpop.f32.mrf.mxu0
        %v1526 = vadd.f32 0.0, %v1525
        %1527 = vmatprep.mubr.f32.mxu0 %v1131
        %1528 = vmatmul.mubr.f32.gmra.mxu0 %v1130
        %v1529 = vpop.f32.mrf.mxu0
        %v1530 = vadd.f32 0.0, %v1529
        %v1531 = vpop.f32.mrf.mxu0
        %v1532 = vadd.f32 0.0, %v1531
        %1533 = vmatprep.mubr.f32.mxu0 %v1133
        %1534 = vmatmul.mubr.f32.gmra.mxu0 %v1132
        %v1535 = vpop.f32.mrf.mxu0
        %v1536 = vadd.f32 0.0, %v1535
        %v1537 = vpop.f32.mrf.mxu0
        %v1538 = vadd.f32 0.0, %v1537
        %1539 = vmatprep.mubr.f32.mxu0 %v1135
        %1540 = vmatmul.mubr.f32.gmra.mxu0 %v1134
        %v1541 = vpop.f32.mrf.mxu0
        %v1542 = vadd.f32 0.0, %v1541
        %v1543 = vpop.f32.mrf.mxu0
        %v1544 = vadd.f32 0.0, %v1543
        %1545 = vmatprep.mubr.f32.mxu0 %v1137
        %1546 = vmatmul.mubr.f32.gmra.mxu0 %v1136
        %v1547 = vpop.f32.mrf.mxu0
        %v1548 = vadd.f32 0.0, %v1547
        %v1549 = vpop.f32.mrf.mxu0
        %v1550 = vadd.f32 0.0, %v1549
        %1551 = vmatprep.mubr.f32.mxu0 %v1139
        %1552 = vmatmul.mubr.f32.gmra.mxu0 %v1138
        %v1553 = vpop.f32.mrf.mxu0
        %v1554 = vadd.f32 0.0, %v1553
        %v1555 = vpop.f32.mrf.mxu0
        %v1556 = vadd.f32 0.0, %v1555
        %1557 = vdwg.mxu0
        %1558 = vmatprep.subr.mxu0 %v1235
        %1559 = vmatpush1.msra.mxu0 %v1234
        %1560 = vmatprep.subr.mxu0 %v1229
        %1561 = vmatpush1.msra.mxu0 %v1228
        %1562 = vmatprep.subr.mxu0 %v1223
        %1563 = vmatpush1.msra.mxu0 %v1222
        %1564 = vmatprep.subr.mxu0 %v1217
        %1565 = vmatpush1.msra.mxu0 %v1216
        %1566 = vmatprep.subr.mxu0 %v1211
        %1567 = vmatpush1.msra.mxu0 %v1210
        %1568 = vmatprep.subr.mxu0 %v1205
        %1569 = vmatpush1.msra.mxu0 %v1204
        %1570 = vmatprep.subr.mxu0 %v1199
        %1571 = vmatpush1.msra.mxu0 %v1198
        %1572 = vmatprep.subr.mxu0 %v1193
        %1573 = vmatpush1.msra.mxu0 %v1192
        %1574 = vmatprep.subr.mxu0 %v1187
        %1575 = vmatpush1.msra.mxu0 %v1186
        %1576 = vmatprep.subr.mxu0 %v1181
        %1577 = vmatpush1.msra.mxu0 %v1180
        %1578 = vmatprep.subr.mxu0 %v1175
        %1579 = vmatpush1.msra.mxu0 %v1174
        %1580 = vmatprep.subr.mxu0 %v1169
        %1581 = vmatpush1.msra.mxu0 %v1168
        %1582 = vmatprep.subr.mxu0 %v1163
        %1583 = vmatpush1.msra.mxu0 %v1162
        %1584 = vmatprep.subr.mxu0 %v1157
        %1585 = vmatpush1.msra.mxu0 %v1156
        %1586 = vmatprep.subr.mxu0 %v1151
        %1587 = vmatpush1.msra.mxu0 %v1150
        %1588 = vmatprep.subr.mxu0 %v1145
        %1589 = vmatpush1.msra.mxu0 %v1144
        %1590 = vmatprep.subr.mxu0 %v1331
        %1591 = vmatpush2.msra.mxu0 %v1330
        %1592 = vmatprep.subr.mxu0 %v1325
        %1593 = vmatpush2.msra.mxu0 %v1324
        %1594 = vmatprep.subr.mxu0 %v1319
        %1595 = vmatpush2.msra.mxu0 %v1318
        %1596 = vmatprep.subr.mxu0 %v1313
        %1597 = vmatpush2.msra.mxu0 %v1312
        %1598 = vmatprep.subr.mxu0 %v1307
        %1599 = vmatpush2.msra.mxu0 %v1306
        %1600 = vmatprep.subr.mxu0 %v1301
        %1601 = vmatpush2.msra.mxu0 %v1300
        %1602 = vmatprep.subr.mxu0 %v1295
        %1603 = vmatpush2.msra.mxu0 %v1294
        %1604 = vmatprep.subr.mxu0 %v1289
        %1605 = vmatpush2.msra.mxu0 %v1288
        %1606 = vmatprep.subr.mxu0 %v1283
        %1607 = vmatpush2.msra.mxu0 %v1282
        %1608 = vmatprep.subr.mxu0 %v1277
        %1609 = vmatpush2.msra.mxu0 %v1276
        %1610 = vmatprep.subr.mxu0 %v1271
        %1611 = vmatpush2.msra.mxu0 %v1270
        %1612 = vmatprep.subr.mxu0 %v1265
        %1613 = vmatpush2.msra.mxu0 %v1264
        %1614 = vmatprep.subr.mxu0 %v1259
        %1615 = vmatpush2.msra.mxu0 %v1258
        %1616 = vmatprep.subr.mxu0 %v1253
        %1617 = vmatpush2.msra.mxu0 %v1252
        %1618 = vmatprep.subr.mxu0 %v1247
        %1619 = vmatpush2.msra.mxu0 %v1246
        %1620 = vmatprep.subr.mxu0 %v1241
        %1621 = vmatpush2.msra.mxu0 %v1240
        %1622 = vmatprep.mubr.f32.mxu0 %v1125
        %1623 = vmatmul.mubr.f32.gmra.mxu0 %v1124
        %v1624 = vpop.f32.mrf.mxu0
        %v1625 = vadd.f32 0.0, %v1624
        %v1626 = vpop.f32.mrf.mxu0
        %v1627 = vadd.f32 0.0, %v1626
        %1628 = vmatprep.mubr.f32.mxu0 %v1127
        %1629 = vmatmul.mubr.f32.gmra.mxu0 %v1126
        %v1630 = vpop.f32.mrf.mxu0
        %v1631 = vadd.f32 0.0, %v1630
        %v1632 = vpop.f32.mrf.mxu0
        %v1633 = vadd.f32 0.0, %v1632
        %1634 = vmatprep.mubr.f32.mxu0 %v1129
        %1635 = vmatmul.mubr.f32.gmra.mxu0 %v1128
        %v1636 = vpop.f32.mrf.mxu0
        %v1637 = vadd.f32 0.0, %v1636
        %v1638 = vpop.f32.mrf.mxu0
        %v1639 = vadd.f32 0.0, %v1638
        %1640 = vmatprep.mubr.f32.mxu0 %v1131
        %1641 = vmatmul.mubr.f32.gmra.mxu0 %v1130
        %v1642 = vpop.f32.mrf.mxu0
        %v1643 = vadd.f32 0.0, %v1642
        %v1644 = vpop.f32.mrf.mxu0
        %v1645 = vadd.f32 0.0, %v1644
        %1646 = vmatprep.mubr.f32.mxu0 %v1133
        %1647 = vmatmul.mubr.f32.gmra.mxu0 %v1132
        %v1648 = vpop.f32.mrf.mxu0
        %v1649 = vadd.f32 0.0, %v1648
        %v1650 = vpop.f32.mrf.mxu0
        %v1651 = vadd.f32 0.0, %v1650
        %1652 = vmatprep.mubr.f32.mxu0 %v1135
        %1653 = vmatmul.mubr.f32.gmra.mxu0 %v1134
        %v1654 = vpop.f32.mrf.mxu0
        %v1655 = vadd.f32 0.0, %v1654
        %v1656 = vpop.f32.mrf.mxu0
        %v1657 = vadd.f32 0.0, %v1656
        %1658 = vmatprep.mubr.f32.mxu0 %v1137
        %1659 = vmatmul.mubr.f32.gmra.mxu0 %v1136
        %v1660 = vpop.f32.mrf.mxu0
        %v1661 = vadd.f32 0.0, %v1660
        %v1662 = vpop.f32.mrf.mxu0
        %v1663 = vadd.f32 0.0, %v1662
        %1664 = vmatprep.mubr.f32.mxu0 %v1139
        %1665 = vmatmul.mubr.f32.gmra.mxu0 %v1138
        %v1666 = vpop.f32.mrf.mxu0
        %v1667 = vadd.f32 0.0, %v1666
        %v1668 = vpop.f32.mrf.mxu0
        %v1669 = vadd.f32 0.0, %v1668
        %1670 = vdwg.mxu0
        %v1671 = vlaneseq
        %v1672 = vshrl.u32 %v1671, 7
        %v1673 = vadd.s32 %v1672, 8
        %v1674 = vadd.s32 %v1672, 16
        %v1675 = vadd.s32 %v1672, 24
        %v1676 = vlaneseq
        %v1677 = vand.u32 %v1676, 127
        %vm1678 = vcmp.le.s32.totalorder %v1677, %v1672
        %vm1679 = vcmp.le.s32.totalorder %v1677, %v1673
        %vm1680 = vcmp.le.s32.totalorder %v1677, %v1674
        %vm1681 = vcmp.le.s32.totalorder %v1677, %v1675
        %v1682 = vsel %vm1678, 0.0, -1e+30
        %v1683 = vsel %vm1679, 0.0, -1e+30
        %v1684 = vsel %vm1680, 0.0, -1e+30
        %v1685 = vsel %vm1681, 0.0, -1e+30
        %v1686 = vld [vmem:[%s726] sm:$0xff]
        %v1687 = vld [vmem:[%s726 + $0x8] sm:$0xff]
        %v1688 = vld [vmem:[%s726 + $0x10] sm:$0xff]
        %v1689 = vld [vmem:[%s726 + $0x18] sm:$0xff]
        %v1690 = vld [vmem:[%s726 + $0x20] sm:$0xff]
        %v1691 = vld [vmem:[%s726 + $0x28] sm:$0xff]
        %v1692 = vld [vmem:[%s726 + $0x30] sm:$0xff]
        %v1693 = vld [vmem:[%s726 + $0x38] sm:$0xff]
        %v1694 = vld [vmem:[%s726 + $0x40] sm:$0xff]
        %v1695 = vld [vmem:[%s726 + $0x48] sm:$0xff]
        %v1696 = vld [vmem:[%s726 + $0x50] sm:$0xff]
        %v1697 = vld [vmem:[%s726 + $0x58] sm:$0xff]
        %v1698 = vld [vmem:[%s726 + $0x60] sm:$0xff]
        %v1699 = vld [vmem:[%s726 + $0x68] sm:$0xff]
        %v1700 = vld [vmem:[%s726 + $0x70] sm:$0xff]
        %v1701 = vld [vmem:[%s726 + $0x78] sm:$0xff]
        %v1702 = vld [vmem:[%s726 + $0x80] sm:$0xff]
        %v1703 = vld [vmem:[%s726 + $0x88] sm:$0xff]
        %v1704 = vld [vmem:[%s726 + $0x90] sm:$0xff]
        %v1705 = vld [vmem:[%s726 + $0x98] sm:$0xff]
        %v1706 = vld [vmem:[%s726 + $0xa0] sm:$0xff]
        %v1707 = vld [vmem:[%s726 + $0xa8] sm:$0xff]
        %v1708 = vld [vmem:[%s726 + $0xb0] sm:$0xff]
        %v1709 = vld [vmem:[%s726 + $0xb8] sm:$0xff]
        %v1710 = vld [vmem:[%s726 + $0xc0] sm:$0xff]
        %v1711 = vld [vmem:[%s726 + $0xc8] sm:$0xff]
        %v1712 = vld [vmem:[%s726 + $0xd0] sm:$0xff]
        %v1713 = vld [vmem:[%s726 + $0xd8] sm:$0xff]
        %v1714 = vld [vmem:[%s726 + $0xe0] sm:$0xff]
        %v1715 = vld [vmem:[%s726 + $0xe8] sm:$0xff]
        %v1716 = vld [vmem:[%s726 + $0xf0] sm:$0xff]
        %v1717 = vld [vmem:[%s726 + $0xf8] sm:$0xff]
        %v1718 = vld [vmem:[%s726 + $0x100] sm:$0xff]
        %v1719 = vld [vmem:[%s726 + $0x108] sm:$0xff]
        %v1720 = vld [vmem:[%s726 + $0x110] sm:$0xff]
        %v1721 = vld [vmem:[%s726 + $0x118] sm:$0xff]
        %v1722 = vld [vmem:[%s726 + $0x120] sm:$0xff]
        %v1723 = vld [vmem:[%s726 + $0x128] sm:$0xff]
        %v1724 = vld [vmem:[%s726 + $0x130] sm:$0xff]
        %v1725 = vld [vmem:[%s726 + $0x138] sm:$0xff]
        %v1726 = vld [vmem:[%s726 + $0x140] sm:$0xff]
        %v1727 = vld [vmem:[%s726 + $0x148] sm:$0xff]
        %v1728 = vld [vmem:[%s726 + $0x150] sm:$0xff]
        %v1729 = vld [vmem:[%s726 + $0x158] sm:$0xff]
        %v1730 = vld [vmem:[%s726 + $0x160] sm:$0xff]
        %v1731 = vld [vmem:[%s726 + $0x168] sm:$0xff]
        %v1732 = vld [vmem:[%s726 + $0x170] sm:$0xff]
        %v1733 = vld [vmem:[%s726 + $0x178] sm:$0xff]
        %v1734 = vld [vmem:[%s726 + $0x180] sm:$0xff]
        %v1735 = vld [vmem:[%s726 + $0x188] sm:$0xff]
        %v1736 = vld [vmem:[%s726 + $0x190] sm:$0xff]
        %v1737 = vld [vmem:[%s726 + $0x198] sm:$0xff]
        %v1738 = vld [vmem:[%s726 + $0x1a0] sm:$0xff]
        %v1739 = vld [vmem:[%s726 + $0x1a8] sm:$0xff]
        %v1740 = vld [vmem:[%s726 + $0x1b0] sm:$0xff]
        %v1741 = vld [vmem:[%s726 + $0x1b8] sm:$0xff]
        %v1742 = vld [vmem:[%s726 + $0x1c0] sm:$0xff]
        %v1743 = vld [vmem:[%s726 + $0x1c8] sm:$0xff]
        %v1744 = vld [vmem:[%s726 + $0x1d0] sm:$0xff]
        %v1745 = vld [vmem:[%s726 + $0x1d8] sm:$0xff]
        %v1746 = vld [vmem:[%s726 + $0x1e0] sm:$0xff]
        %v1747 = vld [vmem:[%s726 + $0x1e8] sm:$0xff]
        %v1748 = vld [vmem:[%s726 + $0x1f0] sm:$0xff]
        %v1749 = vld [vmem:[%s726 + $0x1f8] sm:$0xff]
        %1750 = vmatprep.subr.mxu0 0.0
        %1751 = vmatpush1.xpose.msra.mxu0 0.0
        %1752 = vmatprep.subr.mxu0 0.0
        %1753 = vmatpush1.xpose.msra.mxu0 0.0
        %1754 = vmatprep.subr.mxu0 0.0
        %1755 = vmatpush1.xpose.msra.mxu0 0.0
        %1756 = vmatprep.subr.mxu0 0.0
        %1757 = vmatpush1.xpose.msra.mxu0 0.0
        %1758 = vmatprep.subr.mxu0 0.0
        %1759 = vmatpush1.xpose.msra.mxu0 0.0
        %1760 = vmatprep.subr.mxu0 0.0
        %1761 = vmatpush1.xpose.msra.mxu0 0.0
        %1762 = vmatprep.subr.mxu0 0.0
        %1763 = vmatpush1.xpose.msra.mxu0 0.0
        %1764 = vmatprep.subr.mxu0 0.0
        %1765 = vmatpush1.xpose.msra.mxu0 0.0
        %1766 = vmatprep.subr.mxu0 0.0
        %1767 = vmatpush1.xpose.msra.mxu0 0.0
        %1768 = vmatprep.subr.mxu0 0.0
        %1769 = vmatpush1.xpose.msra.mxu0 0.0
        %1770 = vmatprep.subr.mxu0 0.0
        %1771 = vmatpush1.xpose.msra.mxu0 0.0
        %1772 = vmatprep.subr.mxu0 0.0
        %1773 = vmatpush1.xpose.msra.mxu0 0.0
        %1774 = vmatprep.subr.mxu0 0.0
        %1775 = vmatpush1.xpose.msra.mxu0 %v1530
        %1776 = vmatprep.subr.mxu0 0.0
        %1777 = vmatpush1.xpose.msra.mxu0 %v1524
        %1778 = vmatprep.subr.mxu0 0.0
        %1779 = vmatpush1.xpose.msra.mxu0 %v1518
        %1780 = vmatprep.subr.mxu0 0.0
        %1781 = vmatpush1.xpose.msra.mxu0 %v1512
        %1782 = vmatprep.subr.mxu0 0.0
        %1783 = vmatpush2.xpose.msra.mxu0 0.0
        %1784 = vmatprep.subr.mxu0 0.0
        %1785 = vmatpush2.xpose.msra.mxu0 0.0
        %1786 = vmatprep.subr.mxu0 0.0
        %1787 = vmatpush2.xpose.msra.mxu0 0.0
        %1788 = vmatprep.subr.mxu0 0.0
        %1789 = vmatpush2.xpose.msra.mxu0 0.0
        %1790 = vmatprep.subr.mxu0 0.0
        %1791 = vmatpush2.xpose.msra.mxu0 0.0
        %1792 = vmatprep.subr.mxu0 0.0
        %1793 = vmatpush2.xpose.msra.mxu0 0.0
        %1794 = vmatprep.subr.mxu0 0.0
        %1795 = vmatpush2.xpose.msra.mxu0 0.0
        %1796 = vmatprep.subr.mxu0 0.0
        %1797 = vmatpush2.xpose.msra.mxu0 0.0
        %1798 = vmatprep.subr.mxu0 0.0
        %1799 = vmatpush2.xpose.msra.mxu0 0.0
        %1800 = vmatprep.subr.mxu0 0.0
        %1801 = vmatpush2.xpose.msra.mxu0 0.0
        %1802 = vmatprep.subr.mxu0 0.0
        %1803 = vmatpush2.xpose.msra.mxu0 0.0
        %1804 = vmatprep.subr.mxu0 0.0
        %1805 = vmatpush2.xpose.msra.mxu0 0.0
        %1806 = vmatprep.subr.mxu0 0.0
        %1807 = vmatpush2.xpose.msra.mxu0 0.0
        %1808 = vmatprep.subr.mxu0 0.0
        %1809 = vmatpush2.xpose.msra.mxu0 0.0
        %1810 = vmatprep.subr.mxu0 0.0
        %1811 = vmatpush2.xpose.msra.mxu0 0.0
        %1812 = vmatprep.subr.mxu0 0.0
        %1813 = vmatpush2.xpose.msra.mxu0 0.0
        %1814 = vmatprep.mubr.f32.mxu0 0.0
        %1815 = vmatmul.mubr.f32.gmra.mxu0 %v1399
        %v1816 = vpop.f32.mrf.mxu0
        %v1817 = vadd.f32 0.0, %v1816
        %v1818 = vpop.f32.mrf.mxu0
        %1819 = vmatprep.mubr.f32.mxu0 0.0
        %1820 = vmatmul.mubr.f32.gmra.mxu0 %v1405
        %v1821 = vpop.f32.mrf.mxu0
        %v1822 = vadd.f32 0.0, %v1821
        %v1823 = vpop.f32.mrf.mxu0
        %1824 = vmatprep.mubr.f32.mxu0 0.0
        %1825 = vmatmul.mubr.f32.gmra.mxu0 %v1411
        %v1826 = vpop.f32.mrf.mxu0
        %v1827 = vadd.f32 0.0, %v1826
        %v1828 = vpop.f32.mrf.mxu0
        %1829 = vmatprep.mubr.f32.mxu0 0.0
        %1830 = vmatmul.mubr.f32.gmra.mxu0 %v1417
        %v1831 = vpop.f32.mrf.mxu0
        %v1832 = vadd.f32 0.0, %v1831
        %v1833 = vpop.f32.mrf.mxu0
        %1834 = vdwg.mxu0
        %1835 = vmatprep.subr.mxu0 0.0
        %1836 = vmatpush1.xpose.msra.mxu0 0.0
        %1837 = vmatprep.subr.mxu0 0.0
        %1838 = vmatpush1.xpose.msra.mxu0 0.0
        %1839 = vmatprep.subr.mxu0 0.0
        %1840 = vmatpush1.xpose.msra.mxu0 0.0
        %1841 = vmatprep.subr.mxu0 0.0
        %1842 = vmatpush1.xpose.msra.mxu0 0.0
        %1843 = vmatprep.subr.mxu0 0.0
        %1844 = vmatpush1.xpose.msra.mxu0 0.0
        %1845 = vmatprep.subr.mxu0 0.0
        %1846 = vmatpush1.xpose.msra.mxu0 0.0
        %1847 = vmatprep.subr.mxu0 0.0
        %1848 = vmatpush1.xpose.msra.mxu0 0.0
        %1849 = vmatprep.subr.mxu0 0.0
        %1850 = vmatpush1.xpose.msra.mxu0 0.0
        %1851 = vmatprep.subr.mxu0 0.0
        %1852 = vmatpush1.xpose.msra.mxu0 0.0
        %1853 = vmatprep.subr.mxu0 0.0
        %1854 = vmatpush1.xpose.msra.mxu0 0.0
        %1855 = vmatprep.subr.mxu0 0.0
        %1856 = vmatpush1.xpose.msra.mxu0 0.0
        %1857 = vmatprep.subr.mxu0 0.0
        %1858 = vmatpush1.xpose.msra.mxu0 0.0
        %1859 = vmatprep.subr.mxu0 0.0
        %1860 = vmatpush1.xpose.msra.mxu0 %v1554
        %1861 = vmatprep.subr.mxu0 0.0
        %1862 = vmatpush1.xpose.msra.mxu0 %v1548
        %1863 = vmatprep.subr.mxu0 0.0
        %1864 = vmatpush1.xpose.msra.mxu0 %v1542
        %1865 = vmatprep.subr.mxu0 0.0
        %1866 = vmatpush1.xpose.msra.mxu0 %v1536
        %1867 = vmatprep.subr.mxu0 0.0
        %1868 = vmatpush2.xpose.msra.mxu0 0.0
        %1869 = vmatprep.subr.mxu0 0.0
        %1870 = vmatpush2.xpose.msra.mxu0 0.0
        %1871 = vmatprep.subr.mxu0 0.0
        %1872 = vmatpush2.xpose.msra.mxu0 0.0
        %1873 = vmatprep.subr.mxu0 0.0
        %1874 = vmatpush2.xpose.msra.mxu0 0.0
        %1875 = vmatprep.subr.mxu0 0.0
        %1876 = vmatpush2.xpose.msra.mxu0 0.0
        %1877 = vmatprep.subr.mxu0 0.0
        %1878 = vmatpush2.xpose.msra.mxu0 0.0
        %1879 = vmatprep.subr.mxu0 0.0
        %1880 = vmatpush2.xpose.msra.mxu0 0.0
        %1881 = vmatprep.subr.mxu0 0.0
        %1882 = vmatpush2.xpose.msra.mxu0 0.0
        %1883 = vmatprep.subr.mxu0 0.0
        %1884 = vmatpush2.xpose.msra.mxu0 0.0
        %1885 = vmatprep.subr.mxu0 0.0
        %1886 = vmatpush2.xpose.msra.mxu0 0.0
        %1887 = vmatprep.subr.mxu0 0.0
        %1888 = vmatpush2.xpose.msra.mxu0 0.0
        %1889 = vmatprep.subr.mxu0 0.0
        %1890 = vmatpush2.xpose.msra.mxu0 0.0
        %1891 = vmatprep.subr.mxu0 0.0
        %1892 = vmatpush2.xpose.msra.mxu0 0.0
        %1893 = vmatprep.subr.mxu0 0.0
        %1894 = vmatpush2.xpose.msra.mxu0 0.0
        %1895 = vmatprep.subr.mxu0 0.0
        %1896 = vmatpush2.xpose.msra.mxu0 0.0
        %1897 = vmatprep.subr.mxu0 0.0
        %1898 = vmatpush2.xpose.msra.mxu0 0.0
        %1899 = vmatprep.mubr.f32.mxu0 0.0
        %1900 = vmatmul.mubr.f32.gmra.mxu0 %v1423
        %v1901 = vpop.f32.mrf.mxu0
        %v1902 = vadd.f32 0.0, %v1901
        %v1903 = vpop.f32.mrf.mxu0
        %1904 = vmatprep.mubr.f32.mxu0 0.0
        %1905 = vmatmul.mubr.f32.gmra.mxu0 %v1429
        %v1906 = vpop.f32.mrf.mxu0
        %v1907 = vadd.f32 0.0, %v1906
        %v1908 = vpop.f32.mrf.mxu0
        %1909 = vmatprep.mubr.f32.mxu0 0.0
        %1910 = vmatmul.mubr.f32.gmra.mxu0 %v1435
        %v1911 = vpop.f32.mrf.mxu0
        %v1912 = vadd.f32 0.0, %v1911
        %v1913 = vpop.f32.mrf.mxu0
        %1914 = vmatprep.mubr.f32.mxu0 0.0
        %1915 = vmatmul.mubr.f32.gmra.mxu0 %v1441
        %v1916 = vpop.f32.mrf.mxu0
        %v1917 = vadd.f32 0.0, %v1916
        %v1918 = vpop.f32.mrf.mxu0
        %1919 = vdwg.mxu0
        %v1920 = vmul.f32 %v1817, 0.0625
        %v1921 = vmul.f32 %v1822, 0.0625
        %v1922 = vmul.f32 %v1827, 0.0625
        %v1923 = vmul.f32 %v1832, 0.0625
        %v1924 = vmul.f32 %v1902, 0.0625
        %v1925 = vmul.f32 %v1907, 0.0625
        %v1926 = vmul.f32 %v1912, 0.0625
        %v1927 = vmul.f32 %v1917, 0.0625
        %v1928 = vadd.f32 %v1920, %v1682
        %v1929 = vadd.f32 %v1921, %v1683
        %v1930 = vadd.f32 %v1922, %v1684
        %v1931 = vadd.f32 %v1923, %v1685
        %v1932 = vadd.f32 %v1924, %v1682
        %v1933 = vadd.f32 %v1925, %v1683
        %v1934 = vadd.f32 %v1926, %v1684
        %v1935 = vadd.f32 %v1927, %v1685
        %vm1936 = vcmask 261120
        %v1937 = vsel %vm1936, %v1928, -inf
        %1938 = vmax.xlane.f32.xlu0 %v1937
        %v1939 = vpop.xlane.xlu0 %1938
        %v1940 = vsel %vm1936, %v1929, -inf
        %1941 = vmax.xlane.f32.xlu0 %v1940
        %v1942 = vpop.xlane.xlu0 %1941
        %v1943 = vsel %vm1936, %v1930, -inf
        %1944 = vmax.xlane.f32.xlu0 %v1943
        %v1945 = vpop.xlane.xlu0 %1944
        %v1946 = vsel %vm1936, %v1931, -inf
        %1947 = vmax.xlane.f32.xlu0 %v1946
        %v1948 = vpop.xlane.xlu0 %1947
        %v1949 = vsel %vm1936, %v1932, -inf
        %1950 = vmax.xlane.f32.xlu0 %v1949
        %v1951 = vpop.xlane.xlu0 %1950
        %v1952 = vsel %vm1936, %v1933, -inf
        %1953 = vmax.xlane.f32.xlu0 %v1952
        %v1954 = vpop.xlane.xlu0 %1953
        %v1955 = vsel %vm1936, %v1934, -inf
        %1956 = vmax.xlane.f32.xlu0 %v1955
        %v1957 = vpop.xlane.xlu0 %1956
        %v1958 = vsel %vm1936, %v1935, -inf
        %1959 = vmax.xlane.f32.xlu0 %v1958
        %v1960 = vpop.xlane.xlu0 %1959
        %v1961 = vsub.f32 %v1928, %v1939
        %v1962 = vsub.f32 %v1929, %v1942
        %v1963 = vsub.f32 %v1930, %v1945
        %v1964 = vsub.f32 %v1931, %v1948
        %v1965 = vsub.f32 %v1932, %v1951
        %v1966 = vsub.f32 %v1933, %v1954
        %v1967 = vsub.f32 %v1934, %v1957
        %v1968 = vsub.f32 %v1935, %v1960
        %v1969 = vmul.f32 %v1961, 1.442695
        %v1970 = vpow.pop %v1969
        %v1971 = vmul.f32 %v1962, 1.442695
        %v1972 = vpow.pop %v1971
        %v1973 = vmul.f32 %v1963, 1.442695
        %v1974 = vpow.pop %v1973
        %v1975 = vmul.f32 %v1964, 1.442695
        %v1976 = vpow.pop %v1975
        %v1977 = vmul.f32 %v1965, 1.442695
        %v1978 = vpow.pop %v1977
        %v1979 = vmul.f32 %v1966, 1.442695
        %v1980 = vpow.pop %v1979
        %v1981 = vmul.f32 %v1967, 1.442695
        %v1982 = vpow.pop %v1981
        %v1983 = vmul.f32 %v1968, 1.442695
        %v1984 = vpow.pop %v1983
        %v1985 = vsel %vm1936, %v1970, 0.0
        %1986 = vadd.xlane.f32.xlu0 %v1985
        %v1987 = vpop.xlane.xlu0 %1986
        %v1988 = vsel %vm1936, %v1972, 0.0
        %1989 = vadd.xlane.f32.xlu0 %v1988
        %v1990 = vpop.xlane.xlu0 %1989
        %v1991 = vsel %vm1936, %v1974, 0.0
        %1992 = vadd.xlane.f32.xlu0 %v1991
        %v1993 = vpop.xlane.xlu0 %1992
        %v1994 = vsel %vm1936, %v1976, 0.0
        %1995 = vadd.xlane.f32.xlu0 %v1994
        %v1996 = vpop.xlane.xlu0 %1995
        %v1997 = vsel %vm1936, %v1978, 0.0
        %1998 = vadd.xlane.f32.xlu0 %v1997
        %v1999 = vpop.xlane.xlu0 %1998
        %v2000 = vsel %vm1936, %v1980, 0.0
        %2001 = vadd.xlane.f32.xlu0 %v2000
        %v2002 = vpop.xlane.xlu0 %2001
        %v2003 = vsel %vm1936, %v1982, 0.0
        %2004 = vadd.xlane.f32.xlu0 %v2003
        %v2005 = vpop.xlane.xlu0 %2004
        %v2006 = vsel %vm1936, %v1984, 0.0
        %2007 = vadd.xlane.f32.xlu0 %v2006
        %v2008 = vpop.xlane.xlu0 %2007
        %v2009 = vrcp.pop %v1987
        %v2010 = vrcp.pop %v1990
        %v2011 = vrcp.pop %v1993
        %v2012 = vrcp.pop %v1996
        %v2013 = vrcp.pop %v1999
        %v2014 = vrcp.pop %v2002
        %v2015 = vrcp.pop %v2005
        %v2016 = vrcp.pop %v2008
        %v2017 = vmul.f32 %v1970, %v2009
        %v2018 = vmul.f32 %v1972, %v2010
        %v2019 = vmul.f32 %v1974, %v2011
        %v2020 = vmul.f32 %v1976, %v2012
        %v2021 = vmul.f32 %v1978, %v2013
        %v2022 = vmul.f32 %v1980, %v2014
        %v2023 = vmul.f32 %v1982, %v2015
        %v2024 = vmul.f32 %v1984, %v2016
        %v2026 = vsel %vm1936, %v2017, 0
        %v2029 = vsel %vm1936, %v2018, 0
        %v2032 = vsel %vm1936, %v2019, 0
        %v2035 = vsel %vm1936, %v2020, 0
        %2037 = vmatprep.subr.mxu0 0.0
        %2038 = vmatpush1.msra.mxu0 0.0
        %2039 = vmatprep.subr.mxu0 0.0
        %2040 = vmatpush1.msra.mxu0 0.0
        %2041 = vmatprep.subr.mxu0 0.0
        %2042 = vmatpush1.msra.mxu0 0.0
        %2043 = vmatprep.subr.mxu0 0.0
        %2044 = vmatpush1.msra.mxu0 0.0
        %2045 = vmatprep.subr.mxu0 0.0
        %2046 = vmatpush1.msra.mxu0 0.0
        %2047 = vmatprep.subr.mxu0 0.0
        %2048 = vmatpush1.msra.mxu0 0.0
        %2049 = vmatprep.subr.mxu0 0.0
        %2050 = vmatpush1.msra.mxu0 0.0
        %2051 = vmatprep.subr.mxu0 0.0
        %2052 = vmatpush1.msra.mxu0 0.0
        %2053 = vmatprep.subr.mxu0 0.0
        %2054 = vmatpush1.msra.mxu0 0.0
        %2055 = vmatprep.subr.mxu0 0.0
        %2056 = vmatpush1.msra.mxu0 0.0
        %2057 = vmatprep.subr.mxu0 0.0
        %2058 = vmatpush1.msra.mxu0 0.0
        %2059 = vmatprep.subr.mxu0 0.0
        %2060 = vmatpush1.msra.mxu0 0.0
        %2061 = vmatprep.subr.mxu0 0.0
        %2062 = vmatpush1.msra.mxu0 %v1643
        %2063 = vmatprep.subr.mxu0 0.0
        %2064 = vmatpush1.msra.mxu0 %v1637
        %2065 = vmatprep.subr.mxu0 0.0
        %2066 = vmatpush1.msra.mxu0 %v1631
        %2067 = vmatprep.subr.mxu0 0.0
        %2068 = vmatpush1.msra.mxu0 %v1625
        %2069 = vmatprep.subr.mxu0 0.0
        %2070 = vmatpush2.msra.mxu0 0.0
        %2071 = vmatprep.subr.mxu0 0.0
        %2072 = vmatpush2.msra.mxu0 0.0
        %2073 = vmatprep.subr.mxu0 0.0
        %2074 = vmatpush2.msra.mxu0 0.0
        %2075 = vmatprep.subr.mxu0 0.0
        %2076 = vmatpush2.msra.mxu0 0.0
        %2077 = vmatprep.subr.mxu0 0.0
        %2078 = vmatpush2.msra.mxu0 0.0
        %2079 = vmatprep.subr.mxu0 0.0
        %2080 = vmatpush2.msra.mxu0 0.0
        %2081 = vmatprep.subr.mxu0 0.0
        %2082 = vmatpush2.msra.mxu0 0.0
        %2083 = vmatprep.subr.mxu0 0.0
        %2084 = vmatpush2.msra.mxu0 0.0
        %2085 = vmatprep.subr.mxu0 0.0
        %2086 = vmatpush2.msra.mxu0 0.0
        %2087 = vmatprep.subr.mxu0 0.0
        %2088 = vmatpush2.msra.mxu0 0.0
        %2089 = vmatprep.subr.mxu0 0.0
        %2090 = vmatpush2.msra.mxu0 0.0
        %2091 = vmatprep.subr.mxu0 0.0
        %2092 = vmatpush2.msra.mxu0 0.0
        %2093 = vmatprep.subr.mxu0 0.0
        %2094 = vmatpush2.msra.mxu0 0.0
        %2095 = vmatprep.subr.mxu0 0.0
        %2096 = vmatpush2.msra.mxu0 0.0
        %2097 = vmatprep.subr.mxu0 0.0
        %2098 = vmatpush2.msra.mxu0 0.0
        %2099 = vmatprep.subr.mxu0 0.0
        %2100 = vmatpush2.msra.mxu0 0.0
        %2101 = vmatprep.mubr.f32.mxu0 0.0
        %2102 = vmatmul.mubr.f32.gmra.mxu0 %v2026
        %v2103 = vpop.f32.mrf.mxu0
        %v2104 = vadd.f32 0.0, %v2103
        %v2105 = vpop.f32.mrf.mxu0
        %2106 = vmatprep.mubr.f32.mxu0 0.0
        %2107 = vmatmul.mubr.f32.gmra.mxu0 %v2029
        %v2108 = vpop.f32.mrf.mxu0
        %v2109 = vadd.f32 0.0, %v2108
        %v2110 = vpop.f32.mrf.mxu0
        %2111 = vmatprep.mubr.f32.mxu0 0.0
        %2112 = vmatmul.mubr.f32.gmra.mxu0 %v2032
        %v2113 = vpop.f32.mrf.mxu0
        %v2114 = vadd.f32 0.0, %v2113
        %v2115 = vpop.f32.mrf.mxu0
        %2116 = vmatprep.mubr.f32.mxu0 0.0
        %2117 = vmatmul.mubr.f32.gmra.mxu0 %v2035
        %v2118 = vpop.f32.mrf.mxu0
        %v2119 = vadd.f32 0.0, %v2118
        %v2120 = vpop.f32.mrf.mxu0
        %2121 = vdwg.mxu0
        %v2123 = vsel %vm1936, %v2021, 0
        %v2126 = vsel %vm1936, %v2022, 0
        %v2129 = vsel %vm1936, %v2023, 0
        %v2132 = vsel %vm1936, %v2024, 0
        %2134 = vmatprep.subr.mxu0 0.0
        %2135 = vmatpush1.msra.mxu0 0.0
        %2136 = vmatprep.subr.mxu0 0.0
        %2137 = vmatpush1.msra.mxu0 0.0
        %2138 = vmatprep.subr.mxu0 0.0
        %2139 = vmatpush1.msra.mxu0 0.0
        %2140 = vmatprep.subr.mxu0 0.0
        %2141 = vmatpush1.msra.mxu0 0.0
        %2142 = vmatprep.subr.mxu0 0.0
        %2143 = vmatpush1.msra.mxu0 0.0
        %2144 = vmatprep.subr.mxu0 0.0
        %2145 = vmatpush1.msra.mxu0 0.0
        %2146 = vmatprep.subr.mxu0 0.0
        %2147 = vmatpush1.msra.mxu0 0.0
        %2148 = vmatprep.subr.mxu0 0.0
        %2149 = vmatpush1.msra.mxu0 0.0
        %2150 = vmatprep.subr.mxu0 0.0
        %2151 = vmatpush1.msra.mxu0 0.0
        %2152 = vmatprep.subr.mxu0 0.0
        %2153 = vmatpush1.msra.mxu0 0.0
        %2154 = vmatprep.subr.mxu0 0.0
        %2155 = vmatpush1.msra.mxu0 0.0
        %2156 = vmatprep.subr.mxu0 0.0
        %2157 = vmatpush1.msra.mxu0 0.0
        %2158 = vmatprep.subr.mxu0 0.0
        %2159 = vmatpush1.msra.mxu0 %v1667
        %2160 = vmatprep.subr.mxu0 0.0
        %2161 = vmatpush1.msra.mxu0 %v1661
        %2162 = vmatprep.subr.mxu0 0.0
        %2163 = vmatpush1.msra.mxu0 %v1655
        %2164 = vmatprep.subr.mxu0 0.0
        %2165 = vmatpush1.msra.mxu0 %v1649
        %2166 = vmatprep.subr.mxu0 0.0
        %2167 = vmatpush2.msra.mxu0 0.0
        %2168 = vmatprep.subr.mxu0 0.0
        %2169 = vmatpush2.msra.mxu0 0.0
        %2170 = vmatprep.subr.mxu0 0.0
        %2171 = vmatpush2.msra.mxu0 0.0
        %2172 = vmatprep.subr.mxu0 0.0
        %2173 = vmatpush2.msra.mxu0 0.0
        %2174 = vmatprep.subr.mxu0 0.0
        %2175 = vmatpush2.msra.mxu0 0.0
        %2176 = vmatprep.subr.mxu0 0.0
        %2177 = vmatpush2.msra.mxu0 0.0
        %2178 = vmatprep.subr.mxu0 0.0
        %2179 = vmatpush2.msra.mxu0 0.0
        %2180 = vmatprep.subr.mxu0 0.0
        %2181 = vmatpush2.msra.mxu0 0.0
        %2182 = vmatprep.subr.mxu0 0.0
        %2183 = vmatpush2.msra.mxu0 0.0
        %2184 = vmatprep.subr.mxu0 0.0
        %2185 = vmatpush2.msra.mxu0 0.0
        %2186 = vmatprep.subr.mxu0 0.0
        %2187 = vmatpush2.msra.mxu0 0.0
        %2188 = vmatprep.subr.mxu0 0.0
        %2189 = vmatpush2.msra.mxu0 0.0
        %2190 = vmatprep.subr.mxu0 0.0
        %2191 = vmatpush2.msra.mxu0 0.0
        %2192 = vmatprep.subr.mxu0 0.0
        %2193 = vmatpush2.msra.mxu0 0.0
        %2194 = vmatprep.subr.mxu0 0.0
        %2195 = vmatpush2.msra.mxu0 0.0
        %2196 = vmatprep.subr.mxu0 0.0
        %2197 = vmatpush2.msra.mxu0 0.0
        %2198 = vmatprep.mubr.f32.mxu0 0.0
        %2199 = vmatmul.mubr.f32.gmra.mxu0 %v2123
        %v2200 = vpop.f32.mrf.mxu0
        %v2201 = vadd.f32 0.0, %v2200
        %v2202 = vpop.f32.mrf.mxu0
        %2203 = vmatprep.mubr.f32.mxu0 0.0
        %2204 = vmatmul.mubr.f32.gmra.mxu0 %v2126
        %v2205 = vpop.f32.mrf.mxu0
        %v2206 = vadd.f32 0.0, %v2205
        %v2207 = vpop.f32.mrf.mxu0
        %2208 = vmatprep.mubr.f32.mxu0 0.0
        %2209 = vmatmul.mubr.f32.gmra.mxu0 %v2129
        %v2210 = vpop.f32.mrf.mxu0
        %v2211 = vadd.f32 0.0, %v2210
        %v2212 = vpop.f32.mrf.mxu0
        %2213 = vmatprep.mubr.f32.mxu0 0.0
        %2214 = vmatmul.mubr.f32.gmra.mxu0 %v2132
        %v2215 = vpop.f32.mrf.mxu0
        %v2216 = vadd.f32 0.0, %v2215
        %v2217 = vpop.f32.mrf.mxu0
        %2218 = vdwg.mxu0
        %2219 = vmatprep.subr.mxu0 0.0
        %2220 = vmatpush1.xpose.msra.mxu0 0.0
        %2221 = vmatprep.subr.mxu0 0.0
        %2222 = vmatpush1.xpose.msra.mxu0 0.0
        %2223 = vmatprep.subr.mxu0 0.0
        %2224 = vmatpush1.xpose.msra.mxu0 0.0
        %2225 = vmatprep.subr.mxu0 0.0
        %2226 = vmatpush1.xpose.msra.mxu0 0.0
        %2227 = vmatprep.subr.mxu0 0.0
        %2228 = vmatpush1.xpose.msra.mxu0 0.0
        %2229 = vmatprep.subr.mxu0 0.0
        %2230 = vmatpush1.xpose.msra.mxu0 0.0
        %2231 = vmatprep.subr.mxu0 0.0
        %2232 = vmatpush1.xpose.msra.mxu0 0.0
        %2233 = vmatprep.subr.mxu0 0.0
        %2234 = vmatpush1.xpose.msra.mxu0 0.0
        %2235 = vmatprep.subr.mxu0 0.0
        %2236 = vmatpush1.xpose.msra.mxu0 0.0
        %2237 = vmatprep.subr.mxu0 0.0
        %2238 = vmatpush1.xpose.msra.mxu0 0.0
        %2239 = vmatprep.subr.mxu0 0.0
        %2240 = vmatpush1.xpose.msra.mxu0 0.0
        %2241 = vmatprep.subr.mxu0 0.0
        %2242 = vmatpush1.xpose.msra.mxu0 0.0
        %2243 = vmatprep.subr.mxu0 0.0
        %2244 = vmatpush1.xpose.msra.mxu0 %v1532
        %2245 = vmatprep.subr.mxu0 0.0
        %2246 = vmatpush1.xpose.msra.mxu0 %v1526
        %2247 = vmatprep.subr.mxu0 0.0
        %2248 = vmatpush1.xpose.msra.mxu0 %v1520
        %2249 = vmatprep.subr.mxu0 0.0
        %2250 = vmatpush1.xpose.msra.mxu0 %v1514
        %2251 = vmatprep.subr.mxu0 0.0
        %2252 = vmatpush2.xpose.msra.mxu0 0.0
        %2253 = vmatprep.subr.mxu0 0.0
        %2254 = vmatpush2.xpose.msra.mxu0 0.0
        %2255 = vmatprep.subr.mxu0 0.0
        %2256 = vmatpush2.xpose.msra.mxu0 0.0
        %2257 = vmatprep.subr.mxu0 0.0
        %2258 = vmatpush2.xpose.msra.mxu0 0.0
        %2259 = vmatprep.subr.mxu0 0.0
        %2260 = vmatpush2.xpose.msra.mxu0 0.0
        %2261 = vmatprep.subr.mxu0 0.0
        %2262 = vmatpush2.xpose.msra.mxu0 0.0
        %2263 = vmatprep.subr.mxu0 0.0
        %2264 = vmatpush2.xpose.msra.mxu0 0.0
        %2265 = vmatprep.subr.mxu0 0.0
        %2266 = vmatpush2.xpose.msra.mxu0 0.0
        %2267 = vmatprep.subr.mxu0 0.0
        %2268 = vmatpush2.xpose.msra.mxu0 0.0
        %2269 = vmatprep.subr.mxu0 0.0
        %2270 = vmatpush2.xpose.msra.mxu0 0.0
        %2271 = vmatprep.subr.mxu0 0.0
        %2272 = vmatpush2.xpose.msra.mxu0 0.0
        %2273 = vmatprep.subr.mxu0 0.0
        %2274 = vmatpush2.xpose.msra.mxu0 0.0
        %2275 = vmatprep.subr.mxu0 0.0
        %2276 = vmatpush2.xpose.msra.mxu0 0.0
        %2277 = vmatprep.subr.mxu0 0.0
        %2278 = vmatpush2.xpose.msra.mxu0 0.0
        %2279 = vmatprep.subr.mxu0 0.0
        %2280 = vmatpush2.xpose.msra.mxu0 0.0
        %2281 = vmatprep.subr.mxu0 0.0
        %2282 = vmatpush2.xpose.msra.mxu0 0.0
        %2283 = vmatprep.mubr.f32.mxu0 0.0
        %2284 = vmatmul.mubr.f32.gmra.mxu0 %v1401
        %v2285 = vpop.f32.mrf.mxu0
        %v2286 = vadd.f32 0.0, %v2285
        %v2287 = vpop.f32.mrf.mxu0
        %2288 = vmatprep.mubr.f32.mxu0 0.0
        %2289 = vmatmul.mubr.f32.gmra.mxu0 %v1407
        %v2290 = vpop.f32.mrf.mxu0
        %v2291 = vadd.f32 0.0, %v2290
        %v2292 = vpop.f32.mrf.mxu0
        %2293 = vmatprep.mubr.f32.mxu0 0.0
        %2294 = vmatmul.mubr.f32.gmra.mxu0 %v1413
        %v2295 = vpop.f32.mrf.mxu0
        %v2296 = vadd.f32 0.0, %v2295
        %v2297 = vpop.f32.mrf.mxu0
        %2298 = vmatprep.mubr.f32.mxu0 0.0
        %2299 = vmatmul.mubr.f32.gmra.mxu0 %v1419
        %v2300 = vpop.f32.mrf.mxu0
        %v2301 = vadd.f32 0.0, %v2300
        %v2302 = vpop.f32.mrf.mxu0
        %2303 = vdwg.mxu0
        %2304 = vmatprep.subr.mxu0 0.0
        %2305 = vmatpush1.xpose.msra.mxu0 0.0
        %2306 = vmatprep.subr.mxu0 0.0
        %2307 = vmatpush1.xpose.msra.mxu0 0.0
        %2308 = vmatprep.subr.mxu0 0.0
        %2309 = vmatpush1.xpose.msra.mxu0 0.0
        %2310 = vmatprep.subr.mxu0 0.0
        %2311 = vmatpush1.xpose.msra.mxu0 0.0
        %2312 = vmatprep.subr.mxu0 0.0
        %2313 = vmatpush1.xpose.msra.mxu0 0.0
        %2314 = vmatprep.subr.mxu0 0.0
        %2315 = vmatpush1.xpose.msra.mxu0 0.0
        %2316 = vmatprep.subr.mxu0 0.0
        %2317 = vmatpush1.xpose.msra.mxu0 0.0
        %2318 = vmatprep.subr.mxu0 0.0
        %2319 = vmatpush1.xpose.msra.mxu0 0.0
        %2320 = vmatprep.subr.mxu0 0.0
        %2321 = vmatpush1.xpose.msra.mxu0 0.0
        %2322 = vmatprep.subr.mxu0 0.0
        %2323 = vmatpush1.xpose.msra.mxu0 0.0
        %2324 = vmatprep.subr.mxu0 0.0
        %2325 = vmatpush1.xpose.msra.mxu0 0.0
        %2326 = vmatprep.subr.mxu0 0.0
        %2327 = vmatpush1.xpose.msra.mxu0 0.0
        %2328 = vmatprep.subr.mxu0 0.0
        %2329 = vmatpush1.xpose.msra.mxu0 %v1556
        %2330 = vmatprep.subr.mxu0 0.0
        %2331 = vmatpush1.xpose.msra.mxu0 %v1550
        %2332 = vmatprep.subr.mxu0 0.0
        %2333 = vmatpush1.xpose.msra.mxu0 %v1544
        %2334 = vmatprep.subr.mxu0 0.0
        %2335 = vmatpush1.xpose.msra.mxu0 %v1538
        %2336 = vmatprep.subr.mxu0 0.0
        %2337 = vmatpush2.xpose.msra.mxu0 0.0
        %2338 = vmatprep.subr.mxu0 0.0
        %2339 = vmatpush2.xpose.msra.mxu0 0.0
        %2340 = vmatprep.subr.mxu0 0.0
        %2341 = vmatpush2.xpose.msra.mxu0 0.0
        %2342 = vmatprep.subr.mxu0 0.0
        %2343 = vmatpush2.xpose.msra.mxu0 0.0
        %2344 = vmatprep.subr.mxu0 0.0
        %2345 = vmatpush2.xpose.msra.mxu0 0.0
        %2346 = vmatprep.subr.mxu0 0.0
        %2347 = vmatpush2.xpose.msra.mxu0 0.0
        %2348 = vmatprep.subr.mxu0 0.0
        %2349 = vmatpush2.xpose.msra.mxu0 0.0
        %2350 = vmatprep.subr.mxu0 0.0
        %2351 = vmatpush2.xpose.msra.mxu0 0.0
        %2352 = vmatprep.subr.mxu0 0.0
        %2353 = vmatpush2.xpose.msra.mxu0 0.0
        %2354 = vmatprep.subr.mxu0 0.0
        %2355 = vmatpush2.xpose.msra.mxu0 0.0
        %2356 = vmatprep.subr.mxu0 0.0
        %2357 = vmatpush2.xpose.msra.mxu0 0.0
        %2358 = vmatprep.subr.mxu0 0.0
        %2359 = vmatpush2.xpose.msra.mxu0 0.0
        %2360 = vmatprep.subr.mxu0 0.0
        %2361 = vmatpush2.xpose.msra.mxu0 0.0
        %2362 = vmatprep.subr.mxu0 0.0
        %2363 = vmatpush2.xpose.msra.mxu0 0.0
        %2364 = vmatprep.subr.mxu0 0.0
        %2365 = vmatpush2.xpose.msra.mxu0 0.0
        %2366 = vmatprep.subr.mxu0 0.0
        %2367 = vmatpush2.xpose.msra.mxu0 0.0
        %2368 = vmatprep.mubr.f32.mxu0 0.0
        %2369 = vmatmul.mubr.f32.gmra.mxu0 %v1425
        %v2370 = vpop.f32.mrf.mxu0
        %v2371 = vadd.f32 0.0, %v2370
        %v2372 = vpop.f32.mrf.mxu0
        %2373 = vmatprep.mubr.f32.mxu0 0.0
        %2374 = vmatmul.mubr.f32.gmra.mxu0 %v1431
        %v2375 = vpop.f32.mrf.mxu0
        %v2376 = vadd.f32 0.0, %v2375
        %v2377 = vpop.f32.mrf.mxu0
        %2378 = vmatprep.mubr.f32.mxu0 0.0
        %2379 = vmatmul.mubr.f32.gmra.mxu0 %v1437
        %v2380 = vpop.f32.mrf.mxu0
        %v2381 = vadd.f32 0.0, %v2380
        %v2382 = vpop.f32.mrf.mxu0
        %2383 = vmatprep.mubr.f32.mxu0 0.0
        %2384 = vmatmul.mubr.f32.gmra.mxu0 %v1443
        %v2385 = vpop.f32.mrf.mxu0
        %v2386 = vadd.f32 0.0, %v2385
        %v2387 = vpop.f32.mrf.mxu0
        %2388 = vdwg.mxu0
        %v2389 = vmul.f32 %v2286, 0.0625
        %v2390 = vmul.f32 %v2291, 0.0625
        %v2391 = vmul.f32 %v2296, 0.0625
        %v2392 = vmul.f32 %v2301, 0.0625
        %v2393 = vmul.f32 %v2371, 0.0625
        %v2394 = vmul.f32 %v2376, 0.0625
        %v2395 = vmul.f32 %v2381, 0.0625
        %v2396 = vmul.f32 %v2386, 0.0625
        %v2397 = vadd.f32 %v2389, %v1682
        %v2398 = vadd.f32 %v2390, %v1683
        %v2399 = vadd.f32 %v2391, %v1684
        %v2400 = vadd.f32 %v2392, %v1685
        %v2401 = vadd.f32 %v2393, %v1682
        %v2402 = vadd.f32 %v2394, %v1683
        %v2403 = vadd.f32 %v2395, %v1684
        %v2404 = vadd.f32 %v2396, %v1685
        %v2405 = vsel %vm1936, %v2397, -inf
        %2406 = vmax.xlane.f32.xlu0 %v2405
        %v2407 = vpop.xlane.xlu0 %2406
        %v2408 = vsel %vm1936, %v2398, -inf
        %2409 = vmax.xlane.f32.xlu0 %v2408
        %v2410 = vpop.xlane.xlu0 %2409
        %v2411 = vsel %vm1936, %v2399, -inf
        %2412 = vmax.xlane.f32.xlu0 %v2411
        %v2413 = vpop.xlane.xlu0 %2412
        %v2414 = vsel %vm1936, %v2400, -inf
        %2415 = vmax.xlane.f32.xlu0 %v2414
        %v2416 = vpop.xlane.xlu0 %2415
        %v2417 = vsel %vm1936, %v2401, -inf
        %2418 = vmax.xlane.f32.xlu0 %v2417
        %v2419 = vpop.xlane.xlu0 %2418
        %v2420 = vsel %vm1936, %v2402, -inf
        %2421 = vmax.xlane.f32.xlu0 %v2420
        %v2422 = vpop.xlane.xlu0 %2421
        %v2423 = vsel %vm1936, %v2403, -inf
        %2424 = vmax.xlane.f32.xlu0 %v2423
        %v2425 = vpop.xlane.xlu0 %2424
        %v2426 = vsel %vm1936, %v2404, -inf
        %2427 = vmax.xlane.f32.xlu0 %v2426
        %v2428 = vpop.xlane.xlu0 %2427
        %v2429 = vsub.f32 %v2397, %v2407
        %v2430 = vsub.f32 %v2398, %v2410
        %v2431 = vsub.f32 %v2399, %v2413
        %v2432 = vsub.f32 %v2400, %v2416
        %v2433 = vsub.f32 %v2401, %v2419
        %v2434 = vsub.f32 %v2402, %v2422
        %v2435 = vsub.f32 %v2403, %v2425
        %v2436 = vsub.f32 %v2404, %v2428
        %v2437 = vmul.f32 %v2429, 1.442695
        %v2438 = vpow.pop %v2437
        %v2439 = vmul.f32 %v2430, 1.442695
        %v2440 = vpow.pop %v2439
        %v2441 = vmul.f32 %v2431, 1.442695
        %v2442 = vpow.pop %v2441
        %v2443 = vmul.f32 %v2432, 1.442695
        %v2444 = vpow.pop %v2443
        %v2445 = vmul.f32 %v2433, 1.442695
        %v2446 = vpow.pop %v2445
        %v2447 = vmul.f32 %v2434, 1.442695
        %v2448 = vpow.pop %v2447
        %v2449 = vmul.f32 %v2435, 1.442695
        %v2450 = vpow.pop %v2449
        %v2451 = vmul.f32 %v2436, 1.442695
        %v2452 = vpow.pop %v2451
        %v2453 = vsel %vm1936, %v2438, 0.0
        %2454 = vadd.xlane.f32.xlu0 %v2453
        %v2455 = vpop.xlane.xlu0 %2454
        %v2456 = vsel %vm1936, %v2440, 0.0
        %2457 = vadd.xlane.f32.xlu0 %v2456
        %v2458 = vpop.xlane.xlu0 %2457
        %v2459 = vsel %vm1936, %v2442, 0.0
        %2460 = vadd.xlane.f32.xlu0 %v2459
        %v2461 = vpop.xlane.xlu0 %2460
        %v2462 = vsel %vm1936, %v2444, 0.0
        %2463 = vadd.xlane.f32.xlu0 %v2462
        %v2464 = vpop.xlane.xlu0 %2463
        %v2465 = vsel %vm1936, %v2446, 0.0
        %2466 = vadd.xlane.f32.xlu0 %v2465
        %v2467 = vpop.xlane.xlu0 %2466
        %v2468 = vsel %vm1936, %v2448, 0.0
        %2469 = vadd.xlane.f32.xlu0 %v2468
        %v2470 = vpop.xlane.xlu0 %2469
        %v2471 = vsel %vm1936, %v2450, 0.0
        %2472 = vadd.xlane.f32.xlu0 %v2471
        %v2473 = vpop.xlane.xlu0 %2472
        %v2474 = vsel %vm1936, %v2452, 0.0
        %2475 = vadd.xlane.f32.xlu0 %v2474
        %v2476 = vpop.xlane.xlu0 %2475
        %v2477 = vrcp.pop %v2455
        %v2478 = vrcp.pop %v2458
        %v2479 = vrcp.pop %v2461
        %v2480 = vrcp.pop %v2464
        %v2481 = vrcp.pop %v2467
        %v2482 = vrcp.pop %v2470
        %v2483 = vrcp.pop %v2473
        %v2484 = vrcp.pop %v2476
        %v2485 = vmul.f32 %v2438, %v2477
        %v2486 = vmul.f32 %v2440, %v2478
        %v2487 = vmul.f32 %v2442, %v2479
        %v2488 = vmul.f32 %v2444, %v2480
        %v2489 = vmul.f32 %v2446, %v2481
        %v2490 = vmul.f32 %v2448, %v2482
        %v2491 = vmul.f32 %v2450, %v2483
        %v2492 = vmul.f32 %v2452, %v2484
        %v2494 = vsel %vm1936, %v2485, 0
        %v2497 = vsel %vm1936, %v2486, 0
        %v2500 = vsel %vm1936, %v2487, 0
        %v2503 = vsel %vm1936, %v2488, 0
        %2505 = vmatprep.subr.mxu0 0.0
        %2506 = vmatpush1.msra.mxu0 0.0
        %2507 = vmatprep.subr.mxu0 0.0
        %2508 = vmatpush1.msra.mxu0 0.0
        %2509 = vmatprep.subr.mxu0 0.0
        %2510 = vmatpush1.msra.mxu0 0.0
        %2511 = vmatprep.subr.mxu0 0.0
        %2512 = vmatpush1.msra.mxu0 0.0
        %2513 = vmatprep.subr.mxu0 0.0
        %2514 = vmatpush1.msra.mxu0 0.0
        %2515 = vmatprep.subr.mxu0 0.0
        %2516 = vmatpush1.msra.mxu0 0.0
        %2517 = vmatprep.subr.mxu0 0.0
        %2518 = vmatpush1.msra.mxu0 0.0
        %2519 = vmatprep.subr.mxu0 0.0
        %2520 = vmatpush1.msra.mxu0 0.0
        %2521 = vmatprep.subr.mxu0 0.0
        %2522 = vmatpush1.msra.mxu0 0.0
        %2523 = vmatprep.subr.mxu0 0.0
        %2524 = vmatpush1.msra.mxu0 0.0
        %2525 = vmatprep.subr.mxu0 0.0
        %2526 = vmatpush1.msra.mxu0 0.0
        %2527 = vmatprep.subr.mxu0 0.0
        %2528 = vmatpush1.msra.mxu0 0.0
        %2529 = vmatprep.subr.mxu0 0.0
        %2530 = vmatpush1.msra.mxu0 %v1645
        %2531 = vmatprep.subr.mxu0 0.0
        %2532 = vmatpush1.msra.mxu0 %v1639
        %2533 = vmatprep.subr.mxu0 0.0
        %2534 = vmatpush1.msra.mxu0 %v1633
        %2535 = vmatprep.subr.mxu0 0.0
        %2536 = vmatpush1.msra.mxu0 %v1627
        %2537 = vmatprep.subr.mxu0 0.0
        %2538 = vmatpush2.msra.mxu0 0.0
        %2539 = vmatprep.subr.mxu0 0.0
        %2540 = vmatpush2.msra.mxu0 0.0
        %2541 = vmatprep.subr.mxu0 0.0
        %2542 = vmatpush2.msra.mxu0 0.0
        %2543 = vmatprep.subr.mxu0 0.0
        %2544 = vmatpush2.msra.mxu0 0.0
        %2545 = vmatprep.subr.mxu0 0.0
        %2546 = vmatpush2.msra.mxu0 0.0
        %2547 = vmatprep.subr.mxu0 0.0
        %2548 = vmatpush2.msra.mxu0 0.0
        %2549 = vmatprep.subr.mxu0 0.0
        %2550 = vmatpush2.msra.mxu0 0.0
        %2551 = vmatprep.subr.mxu0 0.0
        %2552 = vmatpush2.msra.mxu0 0.0
        %2553 = vmatprep.subr.mxu0 0.0
        %2554 = vmatpush2.msra.mxu0 0.0
        %2555 = vmatprep.subr.mxu0 0.0
        %2556 = vmatpush2.msra.mxu0 0.0
        %2557 = vmatprep.subr.mxu0 0.0
        %2558 = vmatpush2.msra.mxu0 0.0
        %2559 = vmatprep.subr.mxu0 0.0
        %2560 = vmatpush2.msra.mxu0 0.0
        %2561 = vmatprep.subr.mxu0 0.0
        %2562 = vmatpush2.msra.mxu0 0.0
        %2563 = vmatprep.subr.mxu0 0.0
        %2564 = vmatpush2.msra.mxu0 0.0
        %2565 = vmatprep.subr.mxu0 0.0
        %2566 = vmatpush2.msra.mxu0 0.0
        %2567 = vmatprep.subr.mxu0 0.0
        %2568 = vmatpush2.msra.mxu0 0.0
        %2569 = vmatprep.mubr.f32.mxu0 0.0
        %2570 = vmatmul.mubr.f32.gmra.mxu0 %v2494
        %v2571 = vpop.f32.mrf.mxu0
        %v2572 = vadd.f32 0.0, %v2571
        %v2573 = vpop.f32.mrf.mxu0
        %2574 = vmatprep.mubr.f32.mxu0 0.0
        %2575 = vmatmul.mubr.f32.gmra.mxu0 %v2497
        %v2576 = vpop.f32.mrf.mxu0
        %v2577 = vadd.f32 0.0, %v2576
        %v2578 = vpop.f32.mrf.mxu0
        %2579 = vmatprep.mubr.f32.mxu0 0.0
        %2580 = vmatmul.mubr.f32.gmra.mxu0 %v2500
        %v2581 = vpop.f32.mrf.mxu0
        %v2582 = vadd.f32 0.0, %v2581
        %v2583 = vpop.f32.mrf.mxu0
        %2584 = vmatprep.mubr.f32.mxu0 0.0
        %2585 = vmatmul.mubr.f32.gmra.mxu0 %v2503
        %v2586 = vpop.f32.mrf.mxu0
        %v2587 = vadd.f32 0.0, %v2586
        %v2588 = vpop.f32.mrf.mxu0
        %2589 = vdwg.mxu0
        %v2591 = vsel %vm1936, %v2489, 0
        %v2594 = vsel %vm1936, %v2490, 0
        %v2597 = vsel %vm1936, %v2491, 0
        %v2600 = vsel %vm1936, %v2492, 0
        %2602 = vmatprep.subr.mxu0 0.0
        %2603 = vmatpush1.msra.mxu0 0.0
        %2604 = vmatprep.subr.mxu0 0.0
        %2605 = vmatpush1.msra.mxu0 0.0
        %2606 = vmatprep.subr.mxu0 0.0
        %2607 = vmatpush1.msra.mxu0 0.0
        %2608 = vmatprep.subr.mxu0 0.0
        %2609 = vmatpush1.msra.mxu0 0.0
        %2610 = vmatprep.subr.mxu0 0.0
        %2611 = vmatpush1.msra.mxu0 0.0
        %2612 = vmatprep.subr.mxu0 0.0
        %2613 = vmatpush1.msra.mxu0 0.0
        %2614 = vmatprep.subr.mxu0 0.0
        %2615 = vmatpush1.msra.mxu0 0.0
        %2616 = vmatprep.subr.mxu0 0.0
        %2617 = vmatpush1.msra.mxu0 0.0
        %2618 = vmatprep.subr.mxu0 0.0
        %2619 = vmatpush1.msra.mxu0 0.0
        %2620 = vmatprep.subr.mxu0 0.0
        %2621 = vmatpush1.msra.mxu0 0.0
        %2622 = vmatprep.subr.mxu0 0.0
        %2623 = vmatpush1.msra.mxu0 0.0
        %2624 = vmatprep.subr.mxu0 0.0
        %2625 = vmatpush1.msra.mxu0 0.0
        %2626 = vmatprep.subr.mxu0 0.0
        %2627 = vmatpush1.msra.mxu0 %v1669
        %2628 = vmatprep.subr.mxu0 0.0
        %2629 = vmatpush1.msra.mxu0 %v1663
        %2630 = vmatprep.subr.mxu0 0.0
        %2631 = vmatpush1.msra.mxu0 %v1657
        %2632 = vmatprep.subr.mxu0 0.0
        %2633 = vmatpush1.msra.mxu0 %v1651
        %2634 = vmatprep.subr.mxu0 0.0
        %2635 = vmatpush2.msra.mxu0 0.0
        %2636 = vmatprep.subr.mxu0 0.0
        %2637 = vmatpush2.msra.mxu0 0.0
        %2638 = vmatprep.subr.mxu0 0.0
        %2639 = vmatpush2.msra.mxu0 0.0
        %2640 = vmatprep.subr.mxu0 0.0
        %2641 = vmatpush2.msra.mxu0 0.0
        %2642 = vmatprep.subr.mxu0 0.0
        %2643 = vmatpush2.msra.mxu0 0.0
        %2644 = vmatprep.subr.mxu0 0.0
        %2645 = vmatpush2.msra.mxu0 0.0
        %2646 = vmatprep.subr.mxu0 0.0
        %2647 = vmatpush2.msra.mxu0 0.0
        %2648 = vmatprep.subr.mxu0 0.0
        %2649 = vmatpush2.msra.mxu0 0.0
        %2650 = vmatprep.subr.mxu0 0.0
        %2651 = vmatpush2.msra.mxu0 0.0
        %2652 = vmatprep.subr.mxu0 0.0
        %2653 = vmatpush2.msra.mxu0 0.0
        %2654 = vmatprep.subr.mxu0 0.0
        %2655 = vmatpush2.msra.mxu0 0.0
        %2656 = vmatprep.subr.mxu0 0.0
        %2657 = vmatpush2.msra.mxu0 0.0
        %2658 = vmatprep.subr.mxu0 0.0
        %2659 = vmatpush2.msra.mxu0 0.0
        %2660 = vmatprep.subr.mxu0 0.0
        %2661 = vmatpush2.msra.mxu0 0.0
        %2662 = vmatprep.subr.mxu0 0.0
        %2663 = vmatpush2.msra.mxu0 0.0
        %2664 = vmatprep.subr.mxu0 0.0
        %2665 = vmatpush2.msra.mxu0 0.0
        %2666 = vmatprep.mubr.f32.mxu0 0.0
        %2667 = vmatmul.mubr.f32.gmra.mxu0 %v2591
        %v2668 = vpop.f32.mrf.mxu0
        %v2669 = vadd.f32 0.0, %v2668
        %v2670 = vpop.f32.mrf.mxu0
        %2671 = vmatprep.mubr.f32.mxu0 0.0
        %2672 = vmatmul.mubr.f32.gmra.mxu0 %v2594
        %v2673 = vpop.f32.mrf.mxu0
        %v2674 = vadd.f32 0.0, %v2673
        %v2675 = vpop.f32.mrf.mxu0
        %2676 = vmatprep.mubr.f32.mxu0 0.0
        %2677 = vmatmul.mubr.f32.gmra.mxu0 %v2597
        %v2678 = vpop.f32.mrf.mxu0
        %v2679 = vadd.f32 0.0, %v2678
        %v2680 = vpop.f32.mrf.mxu0
        %2681 = vmatprep.mubr.f32.mxu0 0.0
        %2682 = vmatmul.mubr.f32.gmra.mxu0 %v2600
        %v2683 = vpop.f32.mrf.mxu0
        %v2684 = vadd.f32 0.0, %v2683
        %v2685 = vpop.f32.mrf.mxu0
        %2686 = vdwg.mxu0
        %2687 = vmatprep.subr.mxu0 %v1749
        %2688 = vmatpush1.msra.mxu0 %v1748
        %2689 = vmatprep.subr.mxu0 %v1747
        %2690 = vmatpush1.msra.mxu0 %v1746
        %2691 = vmatprep.subr.mxu0 %v1745
        %2692 = vmatpush1.msra.mxu0 %v1744
        %2693 = vmatprep.subr.mxu0 %v1743
        %2694 = vmatpush1.msra.mxu0 %v1742
        %2695 = vmatprep.subr.mxu0 %v1741
        %2696 = vmatpush1.msra.mxu0 %v1740
        %2697 = vmatprep.subr.mxu0 %v1739
        %2698 = vmatpush1.msra.mxu0 %v1738
        %2699 = vmatprep.subr.mxu0 %v1737
        %2700 = vmatpush1.msra.mxu0 %v1736
        %2701 = vmatprep.subr.mxu0 %v1735
        %2702 = vmatpush1.msra.mxu0 %v1734
        %2703 = vmatprep.subr.mxu0 %v1733
        %2704 = vmatpush1.msra.mxu0 %v1732
        %2705 = vmatprep.subr.mxu0 %v1731
        %2706 = vmatpush1.msra.mxu0 %v1730
        %2707 = vmatprep.subr.mxu0 %v1729
        %2708 = vmatpush1.msra.mxu0 %v1728
        %2709 = vmatprep.subr.mxu0 %v1727
        %2710 = vmatpush1.msra.mxu0 %v1726
        %2711 = vmatprep.subr.mxu0 %v1725
        %2712 = vmatpush1.msra.mxu0 %v1724
        %2713 = vmatprep.subr.mxu0 %v1723
        %2714 = vmatpush1.msra.mxu0 %v1722
        %2715 = vmatprep.subr.mxu0 %v1721
        %2716 = vmatpush1.msra.mxu0 %v1720
        %2717 = vmatprep.subr.mxu0 %v1719
        %2718 = vmatpush1.msra.mxu0 %v1718
        %2719 = vmatprep.subr.mxu0 0.0
        %2720 = vmatpush2.msra.mxu0 0.0
        %2721 = vmatprep.subr.mxu0 0.0
        %2722 = vmatpush2.msra.mxu0 0.0
        %2723 = vmatprep.subr.mxu0 0.0
        %2724 = vmatpush2.msra.mxu0 0.0
        %2725 = vmatprep.subr.mxu0 0.0
        %2726 = vmatpush2.msra.mxu0 0.0
        %2727 = vmatprep.subr.mxu0 0.0
        %2728 = vmatpush2.msra.mxu0 0.0
        %2729 = vmatprep.subr.mxu0 0.0
        %2730 = vmatpush2.msra.mxu0 0.0
        %2731 = vmatprep.subr.mxu0 0.0
        %2732 = vmatpush2.msra.mxu0 0.0
        %2733 = vmatprep.subr.mxu0 0.0
        %2734 = vmatpush2.msra.mxu0 0.0
        %2735 = vmatprep.subr.mxu0 0.0
        %2736 = vmatpush2.msra.mxu0 0.0
        %2737 = vmatprep.subr.mxu0 0.0
        %2738 = vmatpush2.msra.mxu0 0.0
        %2739 = vmatprep.subr.mxu0 0.0
        %2740 = vmatpush2.msra.mxu0 0.0
        %2741 = vmatprep.subr.mxu0 0.0
        %2742 = vmatpush2.msra.mxu0 0.0
        %2743 = vmatprep.subr.mxu0 0.0
        %2744 = vmatpush2.msra.mxu0 0.0
        %2745 = vmatprep.subr.mxu0 0.0
        %2746 = vmatpush2.msra.mxu0 0.0
        %2747 = vmatprep.subr.mxu0 0.0
        %2748 = vmatpush2.msra.mxu0 0.0
        %2749 = vmatprep.subr.mxu0 0.0
        %2750 = vmatpush2.msra.mxu0 0.0
        %2751 = vmatprep.mubr.f32.mxu0 0.0
        %2752 = vmatmul.mubr.f32.gmra.mxu0 %v2572
        %v2753 = vpop.f32.mrf.mxu0
        %v2754 = vadd.f32 0.0, %v2753
        %v2755 = vpop.f32.mrf.mxu0
        %v2756 = vadd.f32 0.0, %v2755
        %2757 = vmatprep.mubr.f32.mxu0 0.0
        %2758 = vmatmul.mubr.f32.gmra.mxu0 %v2577
        %v2759 = vpop.f32.mrf.mxu0
        %v2760 = vadd.f32 0.0, %v2759
        %v2761 = vpop.f32.mrf.mxu0
        %v2762 = vadd.f32 0.0, %v2761
        %2763 = vmatprep.mubr.f32.mxu0 0.0
        %2764 = vmatmul.mubr.f32.gmra.mxu0 %v2582
        %v2765 = vpop.f32.mrf.mxu0
        %v2766 = vadd.f32 0.0, %v2765
        %v2767 = vpop.f32.mrf.mxu0
        %v2768 = vadd.f32 0.0, %v2767
        %2769 = vmatprep.mubr.f32.mxu0 0.0
        %2770 = vmatmul.mubr.f32.gmra.mxu0 %v2587
        %v2771 = vpop.f32.mrf.mxu0
        %v2772 = vadd.f32 0.0, %v2771
        %v2773 = vpop.f32.mrf.mxu0
        %v2774 = vadd.f32 0.0, %v2773
        %2775 = vmatprep.mubr.f32.mxu0 0.0
        %2776 = vmatmul.mubr.f32.gmra.mxu0 %v2669
        %v2777 = vpop.f32.mrf.mxu0
        %v2778 = vadd.f32 0.0, %v2777
        %v2779 = vpop.f32.mrf.mxu0
        %v2780 = vadd.f32 0.0, %v2779
        %2781 = vmatprep.mubr.f32.mxu0 0.0
        %2782 = vmatmul.mubr.f32.gmra.mxu0 %v2674
        %v2783 = vpop.f32.mrf.mxu0
        %v2784 = vadd.f32 0.0, %v2783
        %v2785 = vpop.f32.mrf.mxu0
        %v2786 = vadd.f32 0.0, %v2785
        %2787 = vmatprep.mubr.f32.mxu0 0.0
        %2788 = vmatmul.mubr.f32.gmra.mxu0 %v2679
        %v2789 = vpop.f32.mrf.mxu0
        %v2790 = vadd.f32 0.0, %v2789
        %v2791 = vpop.f32.mrf.mxu0
        %v2792 = vadd.f32 0.0, %v2791
        %2793 = vmatprep.mubr.f32.mxu0 0.0
        %2794 = vmatmul.mubr.f32.gmra.mxu0 %v2684
        %v2795 = vpop.f32.mrf.mxu0
        %v2796 = vadd.f32 0.0, %v2795
        %v2797 = vpop.f32.mrf.mxu0
        %v2798 = vadd.f32 0.0, %v2797
        %2799 = vdwg.mxu0
        %2800 = vmatprep.subr.mxu0 %v1717
        %2801 = vmatpush1.msra.mxu0 %v1716
        %2802 = vmatprep.subr.mxu0 %v1715
        %2803 = vmatpush1.msra.mxu0 %v1714
        %2804 = vmatprep.subr.mxu0 %v1713
        %2805 = vmatpush1.msra.mxu0 %v1712
        %2806 = vmatprep.subr.mxu0 %v1711
        %2807 = vmatpush1.msra.mxu0 %v1710
        %2808 = vmatprep.subr.mxu0 %v1709
        %2809 = vmatpush1.msra.mxu0 %v1708
        %2810 = vmatprep.subr.mxu0 %v1707
        %2811 = vmatpush1.msra.mxu0 %v1706
        %2812 = vmatprep.subr.mxu0 %v1705
        %2813 = vmatpush1.msra.mxu0 %v1704
        %2814 = vmatprep.subr.mxu0 %v1703
        %2815 = vmatpush1.msra.mxu0 %v1702
        %2816 = vmatprep.subr.mxu0 %v1701
        %2817 = vmatpush1.msra.mxu0 %v1700
        %2818 = vmatprep.subr.mxu0 %v1699
        %2819 = vmatpush1.msra.mxu0 %v1698
        %2820 = vmatprep.subr.mxu0 %v1697
        %2821 = vmatpush1.msra.mxu0 %v1696
        %2822 = vmatprep.subr.mxu0 %v1695
        %2823 = vmatpush1.msra.mxu0 %v1694
        %2824 = vmatprep.subr.mxu0 %v1693
        %2825 = vmatpush1.msra.mxu0 %v1692
        %2826 = vmatprep.subr.mxu0 %v1691
        %2827 = vmatpush1.msra.mxu0 %v1690
        %2828 = vmatprep.subr.mxu0 %v1689
        %2829 = vmatpush1.msra.mxu0 %v1688
        %2830 = vmatprep.subr.mxu0 %v1687
        %2831 = vmatpush1.msra.mxu0 %v1686
        %2832 = vmatprep.subr.mxu0 0.0
        %2833 = vmatpush2.msra.mxu0 0.0
        %2834 = vmatprep.subr.mxu0 0.0
        %2835 = vmatpush2.msra.mxu0 0.0
        %2836 = vmatprep.subr.mxu0 0.0
        %2837 = vmatpush2.msra.mxu0 0.0
        %2838 = vmatprep.subr.mxu0 0.0
        %2839 = vmatpush2.msra.mxu0 0.0
        %2840 = vmatprep.subr.mxu0 0.0
        %2841 = vmatpush2.msra.mxu0 0.0
        %2842 = vmatprep.subr.mxu0 0.0
        %2843 = vmatpush2.msra.mxu0 0.0
        %2844 = vmatprep.subr.mxu0 0.0
        %2845 = vmatpush2.msra.mxu0 0.0
        %2846 = vmatprep.subr.mxu0 0.0
        %2847 = vmatpush2.msra.mxu0 0.0
        %2848 = vmatprep.subr.mxu0 0.0
        %2849 = vmatpush2.msra.mxu0 0.0
        %2850 = vmatprep.subr.mxu0 0.0
        %2851 = vmatpush2.msra.mxu0 0.0
        %2852 = vmatprep.subr.mxu0 0.0
        %2853 = vmatpush2.msra.mxu0 0.0
        %2854 = vmatprep.subr.mxu0 0.0
        %2855 = vmatpush2.msra.mxu0 0.0
        %2856 = vmatprep.subr.mxu0 0.0
        %2857 = vmatpush2.msra.mxu0 0.0
        %2858 = vmatprep.subr.mxu0 0.0
        %2859 = vmatpush2.msra.mxu0 0.0
        %2860 = vmatprep.subr.mxu0 0.0
        %2861 = vmatpush2.msra.mxu0 0.0
        %2862 = vmatprep.subr.mxu0 0.0
        %2863 = vmatpush2.msra.mxu0 0.0
        %2864 = vmatprep.mubr.f32.mxu0 0.0
        %2865 = vmatmul.mubr.f32.gmra.mxu0 %v2104
        %v2866 = vpop.f32.mrf.mxu0
        %v2867 = vadd.f32 %v2754, %v2866
        %v2868 = vpop.f32.mrf.mxu0
        %v2869 = vadd.f32 %v2756, %v2868
        %2870 = vmatprep.mubr.f32.mxu0 0.0
        %2871 = vmatmul.mubr.f32.gmra.mxu0 %v2109
        %v2872 = vpop.f32.mrf.mxu0
        %v2873 = vadd.f32 %v2760, %v2872
        %v2874 = vpop.f32.mrf.mxu0
        %v2875 = vadd.f32 %v2762, %v2874
        %2876 = vmatprep.mubr.f32.mxu0 0.0
        %2877 = vmatmul.mubr.f32.gmra.mxu0 %v2114
        %v2878 = vpop.f32.mrf.mxu0
        %v2879 = vadd.f32 %v2766, %v2878
        %v2880 = vpop.f32.mrf.mxu0
        %v2881 = vadd.f32 %v2768, %v2880
        %2882 = vmatprep.mubr.f32.mxu0 0.0
        %2883 = vmatmul.mubr.f32.gmra.mxu0 %v2119
        %v2884 = vpop.f32.mrf.mxu0
        %v2885 = vadd.f32 %v2772, %v2884
        %v2886 = vpop.f32.mrf.mxu0
        %v2887 = vadd.f32 %v2774, %v2886
        %2888 = vmatprep.mubr.f32.mxu0 0.0
        %2889 = vmatmul.mubr.f32.gmra.mxu0 %v2201
        %v2890 = vpop.f32.mrf.mxu0
        %v2891 = vadd.f32 %v2778, %v2890
        %v2892 = vpop.f32.mrf.mxu0
        %v2893 = vadd.f32 %v2780, %v2892
        %2894 = vmatprep.mubr.f32.mxu0 0.0
        %2895 = vmatmul.mubr.f32.gmra.mxu0 %v2206
        %v2896 = vpop.f32.mrf.mxu0
        %v2897 = vadd.f32 %v2784, %v2896
        %v2898 = vpop.f32.mrf.mxu0
        %v2899 = vadd.f32 %v2786, %v2898
        %2900 = vmatprep.mubr.f32.mxu0 0.0
        %2901 = vmatmul.mubr.f32.gmra.mxu0 %v2211
        %v2902 = vpop.f32.mrf.mxu0
        %v2903 = vadd.f32 %v2790, %v2902
        %v2904 = vpop.f32.mrf.mxu0
        %v2905 = vadd.f32 %v2792, %v2904
        %2906 = vmatprep.mubr.f32.mxu0 0.0
        %2907 = vmatmul.mubr.f32.gmra.mxu0 %v2216
        %v2908 = vpop.f32.mrf.mxu0
        %v2909 = vadd.f32 %v2796, %v2908
        %v2910 = vpop.f32.mrf.mxu0
        %v2911 = vadd.f32 %v2798, %v2910
        %2912 = vdwg.mxu0
        %v2913 = vld [vmem:[%s735] sm:$0x3]
        %v2915 = vlaneseq
        %v2916 = vshrl.u32 %v2915, 7
        %v2917 = vsub.s32 0, %v2916
        %v2918 = vrot.slane %v2913, %v2917
        %v2919 = vlaneseq
        %v2920 = vshrl.u32 %v2919, 7
        %v2921 = vsub.s32 1, %v2920
        %v2922 = vrot.slane %v2913, %v2921
        %v2925 = vadd.f32 %v2867, %v2918
        %v2926 = vadd.f32 %v2869, %v2922
        %v2927 = vadd.f32 %v2873, %v2918
        %v2928 = vadd.f32 %v2875, %v2922
        %v2929 = vadd.f32 %v2879, %v2918
        %v2930 = vadd.f32 %v2881, %v2922
        %v2931 = vadd.f32 %v2885, %v2918
        %v2932 = vadd.f32 %v2887, %v2922
        %v2933 = vadd.f32 %v2891, %v2918
        %v2934 = vadd.f32 %v2893, %v2922
        %v2935 = vadd.f32 %v2897, %v2918
        %v2936 = vadd.f32 %v2899, %v2922
        %v2937 = vadd.f32 %v2903, %v2918
        %v2938 = vadd.f32 %v2905, %v2922
        %v2939 = vadd.f32 %v2909, %v2918
        %v2940 = vadd.f32 %v2911, %v2922
        %v2941 = vadd.f32 %v923, %v2925
        %v2942 = vadd.f32 %v924, %v2926
        %v2943 = vadd.f32 %v925, %v2927
        %v2944 = vadd.f32 %v926, %v2928
        %v2945 = vadd.f32 %v927, %v2929
        %v2946 = vadd.f32 %v928, %v2930
        %v2947 = vadd.f32 %v929, %v2931
        %v2948 = vadd.f32 %v930, %v2932
        %v2949 = vadd.f32 %v931, %v2933
        %v2950 = vadd.f32 %v932, %v2934
        %v2951 = vadd.f32 %v933, %v2935
        %v2952 = vadd.f32 %v934, %v2936
        %v2953 = vadd.f32 %v935, %v2937
        %v2954 = vadd.f32 %v936, %v2938
        %v2955 = vadd.f32 %v937, %v2939
        %v2956 = vadd.f32 %v938, %v2940
        %v2957 = vadd.f32 %v2941, %v2942
        %2958 = vadd.xlane.f32.xlu0 %v2957
        %v2959 = vpop.xlane.xlu0 %2958
        %v2960 = vadd.f32 %v2943, %v2944
        %2961 = vadd.xlane.f32.xlu0 %v2960
        %v2962 = vpop.xlane.xlu0 %2961
        %v2963 = vadd.f32 %v2945, %v2946
        %2964 = vadd.xlane.f32.xlu0 %v2963
        %v2965 = vpop.xlane.xlu0 %2964
        %v2966 = vadd.f32 %v2947, %v2948
        %2967 = vadd.xlane.f32.xlu0 %v2966
        %v2968 = vpop.xlane.xlu0 %2967
        %v2969 = vadd.f32 %v2949, %v2950
        %2970 = vadd.xlane.f32.xlu0 %v2969
        %v2971 = vpop.xlane.xlu0 %2970
        %v2972 = vadd.f32 %v2951, %v2952
        %2973 = vadd.xlane.f32.xlu0 %v2972
        %v2974 = vpop.xlane.xlu0 %2973
        %v2975 = vadd.f32 %v2953, %v2954
        %2976 = vadd.xlane.f32.xlu0 %v2975
        %v2977 = vpop.xlane.xlu0 %2976
        %v2978 = vadd.f32 %v2955, %v2956
        %2979 = vadd.xlane.f32.xlu0 %v2978
        %v2980 = vpop.xlane.xlu0 %2979
        %v2981 = vmul.f32 %v2959, %v963
        %v2982 = vmul.f32 %v2962, %v963
        %v2983 = vmul.f32 %v2965, %v963
        %v2984 = vmul.f32 %v2968, %v963
        %v2985 = vmul.f32 %v2971, %v963
        %v2986 = vmul.f32 %v2974, %v963
        %v2987 = vmul.f32 %v2977, %v963
        %v2988 = vmul.f32 %v2980, %v963
        %v2989 = vmul.f32 %v2941, %v2941
        %v2990 = vmul.f32 %v2942, %v2942
        %v2991 = vmul.f32 %v2943, %v2943
        %v2992 = vmul.f32 %v2944, %v2944
        %v2993 = vmul.f32 %v2945, %v2945
        %v2994 = vmul.f32 %v2946, %v2946
        %v2995 = vmul.f32 %v2947, %v2947
        %v2996 = vmul.f32 %v2948, %v2948
        %v2997 = vmul.f32 %v2949, %v2949
        %v2998 = vmul.f32 %v2950, %v2950
        %v2999 = vmul.f32 %v2951, %v2951
        %v3000 = vmul.f32 %v2952, %v2952
        %v3001 = vmul.f32 %v2953, %v2953
        %v3002 = vmul.f32 %v2954, %v2954
        %v3003 = vmul.f32 %v2955, %v2955
        %v3004 = vmul.f32 %v2956, %v2956
        %v3005 = vadd.f32 %v2989, %v2990
        %3006 = vadd.xlane.f32.xlu0 %v3005
        %v3007 = vpop.xlane.xlu0 %3006
        %v3008 = vadd.f32 %v2991, %v2992
        %3009 = vadd.xlane.f32.xlu0 %v3008
        %v3010 = vpop.xlane.xlu0 %3009
        %v3011 = vadd.f32 %v2993, %v2994
        %3012 = vadd.xlane.f32.xlu0 %v3011
        %v3013 = vpop.xlane.xlu0 %3012
        %v3014 = vadd.f32 %v2995, %v2996
        %3015 = vadd.xlane.f32.xlu0 %v3014
        %v3016 = vpop.xlane.xlu0 %3015
        %v3017 = vadd.f32 %v2997, %v2998
        %3018 = vadd.xlane.f32.xlu0 %v3017
        %v3019 = vpop.xlane.xlu0 %3018
        %v3020 = vadd.f32 %v2999, %v3000
        %3021 = vadd.xlane.f32.xlu0 %v3020
        %v3022 = vpop.xlane.xlu0 %3021
        %v3023 = vadd.f32 %v3001, %v3002
        %3024 = vadd.xlane.f32.xlu0 %v3023
        %v3025 = vpop.xlane.xlu0 %3024
        %v3026 = vadd.f32 %v3003, %v3004
        %3027 = vadd.xlane.f32.xlu0 %v3026
        %v3028 = vpop.xlane.xlu0 %3027
        %v3029 = vmul.f32 %v3007, %v963
        %v3030 = vmul.f32 %v3010, %v963
        %v3031 = vmul.f32 %v3013, %v963
        %v3032 = vmul.f32 %v3016, %v963
        %v3033 = vmul.f32 %v3019, %v963
        %v3034 = vmul.f32 %v3022, %v963
        %v3035 = vmul.f32 %v3025, %v963
        %v3036 = vmul.f32 %v3028, %v963
        %v3037 = vmul.f32 %v2981, %v2981
        %v3038 = vmul.f32 %v2982, %v2982
        %v3039 = vmul.f32 %v2983, %v2983
        %v3040 = vmul.f32 %v2984, %v2984
        %v3041 = vmul.f32 %v2985, %v2985
        %v3042 = vmul.f32 %v2986, %v2986
        %v3043 = vmul.f32 %v2987, %v2987
        %v3044 = vmul.f32 %v2988, %v2988
        %v3045 = vsub.f32 %v3029, %v3037
        %v3046 = vsub.f32 %v3030, %v3038
        %v3047 = vsub.f32 %v3031, %v3039
        %v3048 = vsub.f32 %v3032, %v3040
        %v3049 = vsub.f32 %v3033, %v3041
        %v3050 = vsub.f32 %v3034, %v3042
        %v3051 = vsub.f32 %v3035, %v3043
        %v3052 = vsub.f32 %v3036, %v3044
        %v3053 = vsub.f32 %v2941, %v2981
        %v3054 = vsub.f32 %v2942, %v2981
        %v3055 = vsub.f32 %v2943, %v2982
        %v3056 = vsub.f32 %v2944, %v2982
        %v3057 = vsub.f32 %v2945, %v2983
        %v3058 = vsub.f32 %v2946, %v2983
        %v3059 = vsub.f32 %v2947, %v2984
        %v3060 = vsub.f32 %v2948, %v2984
        %v3061 = vsub.f32 %v2949, %v2985
        %v3062 = vsub.f32 %v2950, %v2985
        %v3063 = vsub.f32 %v2951, %v2986
        %v3064 = vsub.f32 %v2952, %v2986
        %v3065 = vsub.f32 %v2953, %v2987
        %v3066 = vsub.f32 %v2954, %v2987
        %v3067 = vsub.f32 %v2955, %v2988
        %v3068 = vsub.f32 %v2956, %v2988
        %v3069 = vadd.f32 %v3045, 1e-05
        %v3070 = vadd.f32 %v3046, 1e-05
        %v3071 = vadd.f32 %v3047, 1e-05
        %v3072 = vadd.f32 %v3048, 1e-05
        %v3073 = vadd.f32 %v3049, 1e-05
        %v3074 = vadd.f32 %v3050, 1e-05
        %v3075 = vadd.f32 %v3051, 1e-05
        %v3076 = vadd.f32 %v3052, 1e-05
        %v3077 = vrsqrt.pop %v3069
        %v3078 = vrsqrt.pop %v3070
        %v3079 = vrsqrt.pop %v3071
        %v3080 = vrsqrt.pop %v3072
        %v3081 = vrsqrt.pop %v3073
        %v3082 = vrsqrt.pop %v3074
        %v3083 = vrsqrt.pop %v3075
        %v3084 = vrsqrt.pop %v3076
        %v3085 = vmul.f32 %v3053, %v3077
        %v3086 = vmul.f32 %v3054, %v3077
        %v3087 = vmul.f32 %v3055, %v3078
        %v3088 = vmul.f32 %v3056, %v3078
        %v3089 = vmul.f32 %v3057, %v3079
        %v3090 = vmul.f32 %v3058, %v3079
        %v3091 = vmul.f32 %v3059, %v3080
        %v3092 = vmul.f32 %v3060, %v3080
        %v3093 = vmul.f32 %v3061, %v3081
        %v3094 = vmul.f32 %v3062, %v3081
        %v3095 = vmul.f32 %v3063, %v3082
        %v3096 = vmul.f32 %v3064, %v3082
        %v3097 = vmul.f32 %v3065, %v3083
        %v3098 = vmul.f32 %v3066, %v3083
        %v3099 = vmul.f32 %v3067, %v3084
        %v3100 = vmul.f32 %v3068, %v3084
        %v3101 = vld [vmem:[%s744] sm:$0x3]
        %v3103 = vlaneseq
        %v3104 = vshrl.u32 %v3103, 7
        %v3105 = vsub.s32 0, %v3104
        %v3106 = vrot.slane %v3101, %v3105
        %v3107 = vlaneseq
        %v3108 = vshrl.u32 %v3107, 7
        %v3109 = vsub.s32 1, %v3108
        %v3110 = vrot.slane %v3101, %v3109
        %v3113 = vmul.f32 %v3085, %v3106
        %v3114 = vmul.f32 %v3086, %v3110
        %v3115 = vmul.f32 %v3087, %v3106
        %v3116 = vmul.f32 %v3088, %v3110
        %v3117 = vmul.f32 %v3089, %v3106
        %v3118 = vmul.f32 %v3090, %v3110
        %v3119 = vmul.f32 %v3091, %v3106
        %v3120 = vmul.f32 %v3092, %v3110
        %v3121 = vmul.f32 %v3093, %v3106
        %v3122 = vmul.f32 %v3094, %v3110
        %v3123 = vmul.f32 %v3095, %v3106
        %v3124 = vmul.f32 %v3096, %v3110
        %v3125 = vmul.f32 %v3097, %v3106
        %v3126 = vmul.f32 %v3098, %v3110
        %v3127 = vmul.f32 %v3099, %v3106
        %v3128 = vmul.f32 %v3100, %v3110
        %v3129 = vld [vmem:[%s753] sm:$0x3]
        %v3131 = vlaneseq
        %v3132 = vshrl.u32 %v3131, 7
        %v3133 = vsub.s32 0, %v3132
        %v3134 = vrot.slane %v3129, %v3133
        %v3135 = vlaneseq
        %v3136 = vshrl.u32 %v3135, 7
        %v3137 = vsub.s32 1, %v3136
        %v3138 = vrot.slane %v3129, %v3137
        %v3141 = vadd.f32 %v3113, %v3134
        %v3142 = vadd.f32 %v3114, %v3138
        %v3143 = vadd.f32 %v3115, %v3134
        %v3144 = vadd.f32 %v3116, %v3138
        %v3145 = vadd.f32 %v3117, %v3134
        %v3146 = vadd.f32 %v3118, %v3138
        %v3147 = vadd.f32 %v3119, %v3134
        %v3148 = vadd.f32 %v3120, %v3138
        %v3149 = vadd.f32 %v3121, %v3134
        %v3150 = vadd.f32 %v3122, %v3138
        %v3151 = vadd.f32 %v3123, %v3134
        %v3152 = vadd.f32 %v3124, %v3138
        %v3153 = vadd.f32 %v3125, %v3134
        %v3154 = vadd.f32 %v3126, %v3138
        %v3155 = vadd.f32 %v3127, %v3134
        %v3156 = vadd.f32 %v3128, %v3138
        %v3157 = vld [vmem:[%s762] sm:$0xff]
        %v3158 = vld [vmem:[%s762 + $0x8] sm:$0xff]
        %v3159 = vld [vmem:[%s762 + $0x10] sm:$0xff]
        %v3160 = vld [vmem:[%s762 + $0x18] sm:$0xff]
        %v3161 = vld [vmem:[%s762 + $0x20] sm:$0xff]
        %v3162 = vld [vmem:[%s762 + $0x28] sm:$0xff]
        %v3163 = vld [vmem:[%s762 + $0x30] sm:$0xff]
        %v3164 = vld [vmem:[%s762 + $0x38] sm:$0xff]
        %v3165 = vld [vmem:[%s762 + $0x40] sm:$0xff]
        %v3166 = vld [vmem:[%s762 + $0x48] sm:$0xff]
        %v3167 = vld [vmem:[%s762 + $0x50] sm:$0xff]
        %v3168 = vld [vmem:[%s762 + $0x58] sm:$0xff]
        %v3169 = vld [vmem:[%s762 + $0x60] sm:$0xff]
        %v3170 = vld [vmem:[%s762 + $0x68] sm:$0xff]
        %v3171 = vld [vmem:[%s762 + $0x70] sm:$0xff]
        %v3172 = vld [vmem:[%s762 + $0x78] sm:$0xff]
        %v3173 = vld [vmem:[%s762 + $0x80] sm:$0xff]
        %v3174 = vld [vmem:[%s762 + $0x88] sm:$0xff]
        %v3175 = vld [vmem:[%s762 + $0x90] sm:$0xff]
        %v3176 = vld [vmem:[%s762 + $0x98] sm:$0xff]
        %v3177 = vld [vmem:[%s762 + $0xa0] sm:$0xff]
        %v3178 = vld [vmem:[%s762 + $0xa8] sm:$0xff]
        %v3179 = vld [vmem:[%s762 + $0xb0] sm:$0xff]
        %v3180 = vld [vmem:[%s762 + $0xb8] sm:$0xff]
        %v3181 = vld [vmem:[%s762 + $0xc0] sm:$0xff]
        %v3182 = vld [vmem:[%s762 + $0xc8] sm:$0xff]
        %v3183 = vld [vmem:[%s762 + $0xd0] sm:$0xff]
        %v3184 = vld [vmem:[%s762 + $0xd8] sm:$0xff]
        %v3185 = vld [vmem:[%s762 + $0xe0] sm:$0xff]
        %v3186 = vld [vmem:[%s762 + $0xe8] sm:$0xff]
        %v3187 = vld [vmem:[%s762 + $0xf0] sm:$0xff]
        %v3188 = vld [vmem:[%s762 + $0xf8] sm:$0xff]
        %v3189 = vld [vmem:[%s762 + $0x100] sm:$0xff]
        %v3190 = vld [vmem:[%s762 + $0x108] sm:$0xff]
        %v3191 = vld [vmem:[%s762 + $0x110] sm:$0xff]
        %v3192 = vld [vmem:[%s762 + $0x118] sm:$0xff]
        %v3193 = vld [vmem:[%s762 + $0x120] sm:$0xff]
        %v3194 = vld [vmem:[%s762 + $0x128] sm:$0xff]
        %v3195 = vld [vmem:[%s762 + $0x130] sm:$0xff]
        %v3196 = vld [vmem:[%s762 + $0x138] sm:$0xff]
        %v3197 = vld [vmem:[%s762 + $0x140] sm:$0xff]
        %v3198 = vld [vmem:[%s762 + $0x148] sm:$0xff]
        %v3199 = vld [vmem:[%s762 + $0x150] sm:$0xff]
        %v3200 = vld [vmem:[%s762 + $0x158] sm:$0xff]
        %v3201 = vld [vmem:[%s762 + $0x160] sm:$0xff]
        %v3202 = vld [vmem:[%s762 + $0x168] sm:$0xff]
        %v3203 = vld [vmem:[%s762 + $0x170] sm:$0xff]
        %v3204 = vld [vmem:[%s762 + $0x178] sm:$0xff]
        %v3205 = vld [vmem:[%s762 + $0x180] sm:$0xff]
        %v3206 = vld [vmem:[%s762 + $0x188] sm:$0xff]
        %v3207 = vld [vmem:[%s762 + $0x190] sm:$0xff]
        %v3208 = vld [vmem:[%s762 + $0x198] sm:$0xff]
        %v3209 = vld [vmem:[%s762 + $0x1a0] sm:$0xff]
        %v3210 = vld [vmem:[%s762 + $0x1a8] sm:$0xff]
        %v3211 = vld [vmem:[%s762 + $0x1b0] sm:$0xff]
        %v3212 = vld [vmem:[%s762 + $0x1b8] sm:$0xff]
        %v3213 = vld [vmem:[%s762 + $0x1c0] sm:$0xff]
        %v3214 = vld [vmem:[%s762 + $0x1c8] sm:$0xff]
        %v3215 = vld [vmem:[%s762 + $0x1d0] sm:$0xff]
        %v3216 = vld [vmem:[%s762 + $0x1d8] sm:$0xff]
        %v3217 = vld [vmem:[%s762 + $0x1e0] sm:$0xff]
        %v3218 = vld [vmem:[%s762 + $0x1e8] sm:$0xff]
        %v3219 = vld [vmem:[%s762 + $0x1f0] sm:$0xff]
        %v3220 = vld [vmem:[%s762 + $0x1f8] sm:$0xff]
        %v3221 = vld [vmem:[%s762 + $0x200] sm:$0xff]
        %v3222 = vld [vmem:[%s762 + $0x208] sm:$0xff]
        %v3223 = vld [vmem:[%s762 + $0x210] sm:$0xff]
        %v3224 = vld [vmem:[%s762 + $0x218] sm:$0xff]
        %v3225 = vld [vmem:[%s762 + $0x220] sm:$0xff]
        %v3226 = vld [vmem:[%s762 + $0x228] sm:$0xff]
        %v3227 = vld [vmem:[%s762 + $0x230] sm:$0xff]
        %v3228 = vld [vmem:[%s762 + $0x238] sm:$0xff]
        %v3229 = vld [vmem:[%s762 + $0x240] sm:$0xff]
        %v3230 = vld [vmem:[%s762 + $0x248] sm:$0xff]
        %v3231 = vld [vmem:[%s762 + $0x250] sm:$0xff]
        %v3232 = vld [vmem:[%s762 + $0x258] sm:$0xff]
        %v3233 = vld [vmem:[%s762 + $0x260] sm:$0xff]
        %v3234 = vld [vmem:[%s762 + $0x268] sm:$0xff]
        %v3235 = vld [vmem:[%s762 + $0x270] sm:$0xff]
        %v3236 = vld [vmem:[%s762 + $0x278] sm:$0xff]
        %v3237 = vld [vmem:[%s762 + $0x280] sm:$0xff]
        %v3238 = vld [vmem:[%s762 + $0x288] sm:$0xff]
        %v3239 = vld [vmem:[%s762 + $0x290] sm:$0xff]
        %v3240 = vld [vmem:[%s762 + $0x298] sm:$0xff]
        %v3241 = vld [vmem:[%s762 + $0x2a0] sm:$0xff]
        %v3242 = vld [vmem:[%s762 + $0x2a8] sm:$0xff]
        %v3243 = vld [vmem:[%s762 + $0x2b0] sm:$0xff]
        %v3244 = vld [vmem:[%s762 + $0x2b8] sm:$0xff]
        %v3245 = vld [vmem:[%s762 + $0x2c0] sm:$0xff]
        %v3246 = vld [vmem:[%s762 + $0x2c8] sm:$0xff]
        %v3247 = vld [vmem:[%s762 + $0x2d0] sm:$0xff]
        %v3248 = vld [vmem:[%s762 + $0x2d8] sm:$0xff]
        %v3249 = vld [vmem:[%s762 + $0x2e0] sm:$0xff]
        %v3250 = vld [vmem:[%s762 + $0x2e8] sm:$0xff]
        %v3251 = vld [vmem:[%s762 + $0x2f0] sm:$0xff]
        %v3252 = vld [vmem:[%s762 + $0x2f8] sm:$0xff]
        %v3253 = vld [vmem:[%s762 + $0x300] sm:$0xff]
        %v3254 = vld [vmem:[%s762 + $0x308] sm:$0xff]
        %v3255 = vld [vmem:[%s762 + $0x310] sm:$0xff]
        %v3256 = vld [vmem:[%s762 + $0x318] sm:$0xff]
        %v3257 = vld [vmem:[%s762 + $0x320] sm:$0xff]
        %v3258 = vld [vmem:[%s762 + $0x328] sm:$0xff]
        %v3259 = vld [vmem:[%s762 + $0x330] sm:$0xff]
        %v3260 = vld [vmem:[%s762 + $0x338] sm:$0xff]
        %v3261 = vld [vmem:[%s762 + $0x340] sm:$0xff]
        %v3262 = vld [vmem:[%s762 + $0x348] sm:$0xff]
        %v3263 = vld [vmem:[%s762 + $0x350] sm:$0xff]
        %v3264 = vld [vmem:[%s762 + $0x358] sm:$0xff]
        %v3265 = vld [vmem:[%s762 + $0x360] sm:$0xff]
        %v3266 = vld [vmem:[%s762 + $0x368] sm:$0xff]
        %v3267 = vld [vmem:[%s762 + $0x370] sm:$0xff]
        %v3268 = vld [vmem:[%s762 + $0x378] sm:$0xff]
        %v3269 = vld [vmem:[%s762 + $0x380] sm:$0xff]
        %v3270 = vld [vmem:[%s762 + $0x388] sm:$0xff]
        %v3271 = vld [vmem:[%s762 + $0x390] sm:$0xff]
        %v3272 = vld [vmem:[%s762 + $0x398] sm:$0xff]
        %v3273 = vld [vmem:[%s762 + $0x3a0] sm:$0xff]
        %v3274 = vld [vmem:[%s762 + $0x3a8] sm:$0xff]
        %v3275 = vld [vmem:[%s762 + $0x3b0] sm:$0xff]
        %v3276 = vld [vmem:[%s762 + $0x3b8] sm:$0xff]
        %v3277 = vld [vmem:[%s762 + $0x3c0] sm:$0xff]
        %v3278 = vld [vmem:[%s762 + $0x3c8] sm:$0xff]
        %v3279 = vld [vmem:[%s762 + $0x3d0] sm:$0xff]
        %v3280 = vld [vmem:[%s762 + $0x3d8] sm:$0xff]
        %v3281 = vld [vmem:[%s762 + $0x3e0] sm:$0xff]
        %v3282 = vld [vmem:[%s762 + $0x3e8] sm:$0xff]
        %v3283 = vld [vmem:[%s762 + $0x3f0] sm:$0xff]
        %v3284 = vld [vmem:[%s762 + $0x3f8] sm:$0xff]
        %v3285 = vld [vmem:[%s762 + $0x400] sm:$0xff]
        %v3286 = vld [vmem:[%s762 + $0x408] sm:$0xff]
        %v3287 = vld [vmem:[%s762 + $0x410] sm:$0xff]
        %v3288 = vld [vmem:[%s762 + $0x418] sm:$0xff]
        %v3289 = vld [vmem:[%s762 + $0x420] sm:$0xff]
        %v3290 = vld [vmem:[%s762 + $0x428] sm:$0xff]
        %v3291 = vld [vmem:[%s762 + $0x430] sm:$0xff]
        %v3292 = vld [vmem:[%s762 + $0x438] sm:$0xff]
        %v3293 = vld [vmem:[%s762 + $0x440] sm:$0xff]
        %v3294 = vld [vmem:[%s762 + $0x448] sm:$0xff]
        %v3295 = vld [vmem:[%s762 + $0x450] sm:$0xff]
        %v3296 = vld [vmem:[%s762 + $0x458] sm:$0xff]
        %v3297 = vld [vmem:[%s762 + $0x460] sm:$0xff]
        %v3298 = vld [vmem:[%s762 + $0x468] sm:$0xff]
        %v3299 = vld [vmem:[%s762 + $0x470] sm:$0xff]
        %v3300 = vld [vmem:[%s762 + $0x478] sm:$0xff]
        %v3301 = vld [vmem:[%s762 + $0x480] sm:$0xff]
        %v3302 = vld [vmem:[%s762 + $0x488] sm:$0xff]
        %v3303 = vld [vmem:[%s762 + $0x490] sm:$0xff]
        %v3304 = vld [vmem:[%s762 + $0x498] sm:$0xff]
        %v3305 = vld [vmem:[%s762 + $0x4a0] sm:$0xff]
        %v3306 = vld [vmem:[%s762 + $0x4a8] sm:$0xff]
        %v3307 = vld [vmem:[%s762 + $0x4b0] sm:$0xff]
        %v3308 = vld [vmem:[%s762 + $0x4b8] sm:$0xff]
        %v3309 = vld [vmem:[%s762 + $0x4c0] sm:$0xff]
        %v3310 = vld [vmem:[%s762 + $0x4c8] sm:$0xff]
        %v3311 = vld [vmem:[%s762 + $0x4d0] sm:$0xff]
        %v3312 = vld [vmem:[%s762 + $0x4d8] sm:$0xff]
        %v3313 = vld [vmem:[%s762 + $0x4e0] sm:$0xff]
        %v3314 = vld [vmem:[%s762 + $0x4e8] sm:$0xff]
        %v3315 = vld [vmem:[%s762 + $0x4f0] sm:$0xff]
        %v3316 = vld [vmem:[%s762 + $0x4f8] sm:$0xff]
        %v3317 = vld [vmem:[%s762 + $0x500] sm:$0xff]
        %v3318 = vld [vmem:[%s762 + $0x508] sm:$0xff]
        %v3319 = vld [vmem:[%s762 + $0x510] sm:$0xff]
        %v3320 = vld [vmem:[%s762 + $0x518] sm:$0xff]
        %v3321 = vld [vmem:[%s762 + $0x520] sm:$0xff]
        %v3322 = vld [vmem:[%s762 + $0x528] sm:$0xff]
        %v3323 = vld [vmem:[%s762 + $0x530] sm:$0xff]
        %v3324 = vld [vmem:[%s762 + $0x538] sm:$0xff]
        %v3325 = vld [vmem:[%s762 + $0x540] sm:$0xff]
        %v3326 = vld [vmem:[%s762 + $0x548] sm:$0xff]
        %v3327 = vld [vmem:[%s762 + $0x550] sm:$0xff]
        %v3328 = vld [vmem:[%s762 + $0x558] sm:$0xff]
        %v3329 = vld [vmem:[%s762 + $0x560] sm:$0xff]
        %v3330 = vld [vmem:[%s762 + $0x568] sm:$0xff]
        %v3331 = vld [vmem:[%s762 + $0x570] sm:$0xff]
        %v3332 = vld [vmem:[%s762 + $0x578] sm:$0xff]
        %v3333 = vld [vmem:[%s762 + $0x580] sm:$0xff]
        %v3334 = vld [vmem:[%s762 + $0x588] sm:$0xff]
        %v3335 = vld [vmem:[%s762 + $0x590] sm:$0xff]
        %v3336 = vld [vmem:[%s762 + $0x598] sm:$0xff]
        %v3337 = vld [vmem:[%s762 + $0x5a0] sm:$0xff]
        %v3338 = vld [vmem:[%s762 + $0x5a8] sm:$0xff]
        %v3339 = vld [vmem:[%s762 + $0x5b0] sm:$0xff]
        %v3340 = vld [vmem:[%s762 + $0x5b8] sm:$0xff]
        %v3341 = vld [vmem:[%s762 + $0x5c0] sm:$0xff]
        %v3342 = vld [vmem:[%s762 + $0x5c8] sm:$0xff]
        %v3343 = vld [vmem:[%s762 + $0x5d0] sm:$0xff]
        %v3344 = vld [vmem:[%s762 + $0x5d8] sm:$0xff]
        %v3345 = vld [vmem:[%s762 + $0x5e0] sm:$0xff]
        %v3346 = vld [vmem:[%s762 + $0x5e8] sm:$0xff]
        %v3347 = vld [vmem:[%s762 + $0x5f0] sm:$0xff]
        %v3348 = vld [vmem:[%s762 + $0x5f8] sm:$0xff]
        %v3349 = vld [vmem:[%s762 + $0x600] sm:$0xff]
        %v3350 = vld [vmem:[%s762 + $0x608] sm:$0xff]
        %v3351 = vld [vmem:[%s762 + $0x610] sm:$0xff]
        %v3352 = vld [vmem:[%s762 + $0x618] sm:$0xff]
        %v3353 = vld [vmem:[%s762 + $0x620] sm:$0xff]
        %v3354 = vld [vmem:[%s762 + $0x628] sm:$0xff]
        %v3355 = vld [vmem:[%s762 + $0x630] sm:$0xff]
        %v3356 = vld [vmem:[%s762 + $0x638] sm:$0xff]
        %v3357 = vld [vmem:[%s762 + $0x640] sm:$0xff]
        %v3358 = vld [vmem:[%s762 + $0x648] sm:$0xff]
        %v3359 = vld [vmem:[%s762 + $0x650] sm:$0xff]
        %v3360 = vld [vmem:[%s762 + $0x658] sm:$0xff]
        %v3361 = vld [vmem:[%s762 + $0x660] sm:$0xff]
        %v3362 = vld [vmem:[%s762 + $0x668] sm:$0xff]
        %v3363 = vld [vmem:[%s762 + $0x670] sm:$0xff]
        %v3364 = vld [vmem:[%s762 + $0x678] sm:$0xff]
        %v3365 = vld [vmem:[%s762 + $0x680] sm:$0xff]
        %v3366 = vld [vmem:[%s762 + $0x688] sm:$0xff]
        %v3367 = vld [vmem:[%s762 + $0x690] sm:$0xff]
        %v3368 = vld [vmem:[%s762 + $0x698] sm:$0xff]
        %v3369 = vld [vmem:[%s762 + $0x6a0] sm:$0xff]
        %v3370 = vld [vmem:[%s762 + $0x6a8] sm:$0xff]
        %v3371 = vld [vmem:[%s762 + $0x6b0] sm:$0xff]
        %v3372 = vld [vmem:[%s762 + $0x6b8] sm:$0xff]
        %v3373 = vld [vmem:[%s762 + $0x6c0] sm:$0xff]
        %v3374 = vld [vmem:[%s762 + $0x6c8] sm:$0xff]
        %v3375 = vld [vmem:[%s762 + $0x6d0] sm:$0xff]
        %v3376 = vld [vmem:[%s762 + $0x6d8] sm:$0xff]
        %v3377 = vld [vmem:[%s762 + $0x6e0] sm:$0xff]
        %v3378 = vld [vmem:[%s762 + $0x6e8] sm:$0xff]
        %v3379 = vld [vmem:[%s762 + $0x6f0] sm:$0xff]
        %v3380 = vld [vmem:[%s762 + $0x6f8] sm:$0xff]
        %v3381 = vld [vmem:[%s762 + $0x700] sm:$0xff]
        %v3382 = vld [vmem:[%s762 + $0x708] sm:$0xff]
        %v3383 = vld [vmem:[%s762 + $0x710] sm:$0xff]
        %v3384 = vld [vmem:[%s762 + $0x718] sm:$0xff]
        %v3385 = vld [vmem:[%s762 + $0x720] sm:$0xff]
        %v3386 = vld [vmem:[%s762 + $0x728] sm:$0xff]
        %v3387 = vld [vmem:[%s762 + $0x730] sm:$0xff]
        %v3388 = vld [vmem:[%s762 + $0x738] sm:$0xff]
        %v3389 = vld [vmem:[%s762 + $0x740] sm:$0xff]
        %v3390 = vld [vmem:[%s762 + $0x748] sm:$0xff]
        %v3391 = vld [vmem:[%s762 + $0x750] sm:$0xff]
        %v3392 = vld [vmem:[%s762 + $0x758] sm:$0xff]
        %v3393 = vld [vmem:[%s762 + $0x760] sm:$0xff]
        %v3394 = vld [vmem:[%s762 + $0x768] sm:$0xff]
        %v3395 = vld [vmem:[%s762 + $0x770] sm:$0xff]
        %v3396 = vld [vmem:[%s762 + $0x778] sm:$0xff]
        %v3397 = vld [vmem:[%s762 + $0x780] sm:$0xff]
        %v3398 = vld [vmem:[%s762 + $0x788] sm:$0xff]
        %v3399 = vld [vmem:[%s762 + $0x790] sm:$0xff]
        %v3400 = vld [vmem:[%s762 + $0x798] sm:$0xff]
        %v3401 = vld [vmem:[%s762 + $0x7a0] sm:$0xff]
        %v3402 = vld [vmem:[%s762 + $0x7a8] sm:$0xff]
        %v3403 = vld [vmem:[%s762 + $0x7b0] sm:$0xff]
        %v3404 = vld [vmem:[%s762 + $0x7b8] sm:$0xff]
        %v3405 = vld [vmem:[%s762 + $0x7c0] sm:$0xff]
        %v3406 = vld [vmem:[%s762 + $0x7c8] sm:$0xff]
        %v3407 = vld [vmem:[%s762 + $0x7d0] sm:$0xff]
        %v3408 = vld [vmem:[%s762 + $0x7d8] sm:$0xff]
        %v3409 = vld [vmem:[%s762 + $0x7e0] sm:$0xff]
        %v3410 = vld [vmem:[%s762 + $0x7e8] sm:$0xff]
        %v3411 = vld [vmem:[%s762 + $0x7f0] sm:$0xff]
        %v3412 = vld [vmem:[%s762 + $0x7f8] sm:$0xff]
        %v3413 = vld [vmem:[%s771] sm:$0xff]
        %v3415 = vlaneseq
        %v3416 = vshrl.u32 %v3415, 7
        %v3417 = vsub.s32 0, %v3416
        %v3418 = vrot.slane %v3413, %v3417
        %v3419 = vlaneseq
        %v3420 = vshrl.u32 %v3419, 7
        %v3421 = vsub.s32 1, %v3420
        %v3422 = vrot.slane %v3413, %v3421
        %v3423 = vlaneseq
        %v3424 = vshrl.u32 %v3423, 7
        %v3425 = vsub.s32 2, %v3424
        %v3426 = vrot.slane %v3413, %v3425
        %v3427 = vlaneseq
        %v3428 = vshrl.u32 %v3427, 7
        %v3429 = vsub.s32 3, %v3428
        %v3430 = vrot.slane %v3413, %v3429
        %v3431 = vlaneseq
        %v3432 = vshrl.u32 %v3431, 7
        %v3433 = vsub.s32 4, %v3432
        %v3434 = vrot.slane %v3413, %v3433
        %v3435 = vlaneseq
        %v3436 = vshrl.u32 %v3435, 7
        %v3437 = vsub.s32 5, %v3436
        %v3438 = vrot.slane %v3413, %v3437
        %v3439 = vlaneseq
        %v3440 = vshrl.u32 %v3439, 7
        %v3441 = vsub.s32 6, %v3440
        %v3442 = vrot.slane %v3413, %v3441
        %v3443 = vlaneseq
        %v3444 = vshrl.u32 %v3443, 7
        %v3445 = vsub.s32 7, %v3444
        %v3446 = vrot.slane %v3413, %v3445
        %3455 = vmatprep.subr.mxu0 %v3278
        %3456 = vmatpush1.msra.mxu0 %v3277
        %3457 = vmatprep.subr.mxu0 %v3270
        %3458 = vmatpush1.msra.mxu0 %v3269
        %3459 = vmatprep.subr.mxu0 %v3262
        %3460 = vmatpush1.msra.mxu0 %v3261
        %3461 = vmatprep.subr.mxu0 %v3254
        %3462 = vmatpush1.msra.mxu0 %v3253
        %3463 = vmatprep.subr.mxu0 %v3246
        %3464 = vmatpush1.msra.mxu0 %v3245
        %3465 = vmatprep.subr.mxu0 %v3238
        %3466 = vmatpush1.msra.mxu0 %v3237
        %3467 = vmatprep.subr.mxu0 %v3230
        %3468 = vmatpush1.msra.mxu0 %v3229
        %3469 = vmatprep.subr.mxu0 %v3222
        %3470 = vmatpush1.msra.mxu0 %v3221
        %3471 = vmatprep.subr.mxu0 %v3214
        %3472 = vmatpush1.msra.mxu0 %v3213
        %3473 = vmatprep.subr.mxu0 %v3206
        %3474 = vmatpush1.msra.mxu0 %v3205
        %3475 = vmatprep.subr.mxu0 %v3198
        %3476 = vmatpush1.msra.mxu0 %v3197
        %3477 = vmatprep.subr.mxu0 %v3190
        %3478 = vmatpush1.msra.mxu0 %v3189
        %3479 = vmatprep.subr.mxu0 %v3182
        %3480 = vmatpush1.msra.mxu0 %v3181
        %3481 = vmatprep.subr.mxu0 %v3174
        %3482 = vmatpush1.msra.mxu0 %v3173
        %3483 = vmatprep.subr.mxu0 %v3166
        %3484 = vmatpush1.msra.mxu0 %v3165
        %3485 = vmatprep.subr.mxu0 %v3158
        %3486 = vmatpush1.msra.mxu0 %v3157
        %3487 = vmatprep.subr.mxu0 %v3406
        %3488 = vmatpush2.msra.mxu0 %v3405
        %3489 = vmatprep.subr.mxu0 %v3398
        %3490 = vmatpush2.msra.mxu0 %v3397
        %3491 = vmatprep.subr.mxu0 %v3390
        %3492 = vmatpush2.msra.mxu0 %v3389
        %3493 = vmatprep.subr.mxu0 %v3382
        %3494 = vmatpush2.msra.mxu0 %v3381
        %3495 = vmatprep.subr.mxu0 %v3374
        %3496 = vmatpush2.msra.mxu0 %v3373
        %3497 = vmatprep.subr.mxu0 %v3366
        %3498 = vmatpush2.msra.mxu0 %v3365
        %3499 = vmatprep.subr.mxu0 %v3358
        %3500 = vmatpush2.msra.mxu0 %v3357
        %3501 = vmatprep.subr.mxu0 %v3350
        %3502 = vmatpush2.msra.mxu0 %v3349
        %3503 = vmatprep.subr.mxu0 %v3342
        %3504 = vmatpush2.msra.mxu0 %v3341
        %3505 = vmatprep.subr.mxu0 %v3334
        %3506 = vmatpush2.msra.mxu0 %v3333
        %3507 = vmatprep.subr.mxu0 %v3326
        %3508 = vmatpush2.msra.mxu0 %v3325
        %3509 = vmatprep.subr.mxu0 %v3318
        %3510 = vmatpush2.msra.mxu0 %v3317
        %3511 = vmatprep.subr.mxu0 %v3310
        %3512 = vmatpush2.msra.mxu0 %v3309
        %3513 = vmatprep.subr.mxu0 %v3302
        %3514 = vmatpush2.msra.mxu0 %v3301
        %3515 = vmatprep.subr.mxu0 %v3294
        %3516 = vmatpush2.msra.mxu0 %v3293
        %3517 = vmatprep.subr.mxu0 %v3286
        %3518 = vmatpush2.msra.mxu0 %v3285
        %3519 = vmatprep.mubr.f32.mxu0 %v3142
        %3520 = vmatmul.mubr.f32.gmra.mxu0 %v3141
        %v3521 = vpop.f32.mrf.mxu0
        %v3522 = vadd.f32 %v3418, %v3521
        %v3523 = vpop.f32.mrf.mxu0
        %v3524 = vadd.f32 %v3422, %v3523
        %3525 = vmatprep.mubr.f32.mxu0 %v3144
        %3526 = vmatmul.mubr.f32.gmra.mxu0 %v3143
        %v3527 = vpop.f32.mrf.mxu0
        %v3528 = vadd.f32 %v3418, %v3527
        %v3529 = vpop.f32.mrf.mxu0
        %v3530 = vadd.f32 %v3422, %v3529
        %3531 = vmatprep.mubr.f32.mxu0 %v3146
        %3532 = vmatmul.mubr.f32.gmra.mxu0 %v3145
        %v3533 = vpop.f32.mrf.mxu0
        %v3534 = vadd.f32 %v3418, %v3533
        %v3535 = vpop.f32.mrf.mxu0
        %v3536 = vadd.f32 %v3422, %v3535
        %3537 = vmatprep.mubr.f32.mxu0 %v3148
        %3538 = vmatmul.mubr.f32.gmra.mxu0 %v3147
        %v3539 = vpop.f32.mrf.mxu0
        %v3540 = vadd.f32 %v3418, %v3539
        %v3541 = vpop.f32.mrf.mxu0
        %v3542 = vadd.f32 %v3422, %v3541
        %3543 = vmatprep.mubr.f32.mxu0 %v3150
        %3544 = vmatmul.mubr.f32.gmra.mxu0 %v3149
        %v3545 = vpop.f32.mrf.mxu0
        %v3546 = vadd.f32 %v3418, %v3545
        %v3547 = vpop.f32.mrf.mxu0
        %v3548 = vadd.f32 %v3422, %v3547
        %3549 = vmatprep.mubr.f32.mxu0 %v3152
        %3550 = vmatmul.mubr.f32.gmra.mxu0 %v3151
        %v3551 = vpop.f32.mrf.mxu0
        %v3552 = vadd.f32 %v3418, %v3551
        %v3553 = vpop.f32.mrf.mxu0
        %v3554 = vadd.f32 %v3422, %v3553
        %3555 = vmatprep.mubr.f32.mxu0 %v3154
        %3556 = vmatmul.mubr.f32.gmra.mxu0 %v3153
        %v3557 = vpop.f32.mrf.mxu0
        %v3558 = vadd.f32 %v3418, %v3557
        %v3559 = vpop.f32.mrf.mxu0
        %v3560 = vadd.f32 %v3422, %v3559
        %3561 = vmatprep.mubr.f32.mxu0 %v3156
        %3562 = vmatmul.mubr.f32.gmra.mxu0 %v3155
        %v3563 = vpop.f32.mrf.mxu0
        %v3564 = vadd.f32 %v3418, %v3563
        %v3565 = vpop.f32.mrf.mxu0
        %v3566 = vadd.f32 %v3422, %v3565
        %3567 = vdwg.mxu0
        %3568 = vmatprep.subr.mxu0 %v3280
        %3569 = vmatpush1.msra.mxu0 %v3279
        %3570 = vmatprep.subr.mxu0 %v3272
        %3571 = vmatpush1.msra.mxu0 %v3271
        %3572 = vmatprep.subr.mxu0 %v3264
        %3573 = vmatpush1.msra.mxu0 %v3263
        %3574 = vmatprep.subr.mxu0 %v3256
        %3575 = vmatpush1.msra.mxu0 %v3255
        %3576 = vmatprep.subr.mxu0 %v3248
        %3577 = vmatpush1.msra.mxu0 %v3247
        %3578 = vmatprep.subr.mxu0 %v3240
        %3579 = vmatpush1.msra.mxu0 %v3239
        %3580 = vmatprep.subr.mxu0 %v3232
        %3581 = vmatpush1.msra.mxu0 %v3231
        %3582 = vmatprep.subr.mxu0 %v3224
        %3583 = vmatpush1.msra.mxu0 %v3223
        %3584 = vmatprep.subr.mxu0 %v3216
        %3585 = vmatpush1.msra.mxu0 %v3215
        %3586 = vmatprep.subr.mxu0 %v3208
        %3587 = vmatpush1.msra.mxu0 %v3207
        %3588 = vmatprep.subr.mxu0 %v3200
        %3589 = vmatpush1.msra.mxu0 %v3199
        %3590 = vmatprep.subr.mxu0 %v3192
        %3591 = vmatpush1.msra.mxu0 %v3191
        %3592 = vmatprep.subr.mxu0 %v3184
        %3593 = vmatpush1.msra.mxu0 %v3183
        %3594 = vmatprep.subr.mxu0 %v3176
        %3595 = vmatpush1.msra.mxu0 %v3175
        %3596 = vmatprep.subr.mxu0 %v3168
        %3597 = vmatpush1.msra.mxu0 %v3167
        %3598 = vmatprep.subr.mxu0 %v3160
        %3599 = vmatpush1.msra.mxu0 %v3159
        %3600 = vmatprep.subr.mxu0 %v3408
        %3601 = vmatpush2.msra.mxu0 %v3407
        %3602 = vmatprep.subr.mxu0 %v3400
        %3603 = vmatpush2.msra.mxu0 %v3399
        %3604 = vmatprep.subr.mxu0 %v3392
        %3605 = vmatpush2.msra.mxu0 %v3391
        %3606 = vmatprep.subr.mxu0 %v3384
        %3607 = vmatpush2.msra.mxu0 %v3383
        %3608 = vmatprep.subr.mxu0 %v3376
        %3609 = vmatpush2.msra.mxu0 %v3375
        %3610 = vmatprep.subr.mxu0 %v3368
        %3611 = vmatpush2.msra.mxu0 %v3367
        %3612 = vmatprep.subr.mxu0 %v3360
        %3613 = vmatpush2.msra.mxu0 %v3359
        %3614 = vmatprep.subr.mxu0 %v3352
        %3615 = vmatpush2.msra.mxu0 %v3351
        %3616 = vmatprep.subr.mxu0 %v3344
        %3617 = vmatpush2.msra.mxu0 %v3343
        %3618 = vmatprep.subr.mxu0 %v3336
        %3619 = vmatpush2.msra.mxu0 %v3335
        %3620 = vmatprep.subr.mxu0 %v3328
        %3621 = vmatpush2.msra.mxu0 %v3327
        %3622 = vmatprep.subr.mxu0 %v3320
        %3623 = vmatpush2.msra.mxu0 %v3319
        %3624 = vmatprep.subr.mxu0 %v3312
        %3625 = vmatpush2.msra.mxu0 %v3311
        %3626 = vmatprep.subr.mxu0 %v3304
        %3627 = vmatpush2.msra.mxu0 %v3303
        %3628 = vmatprep.subr.mxu0 %v3296
        %3629 = vmatpush2.msra.mxu0 %v3295
        %3630 = vmatprep.subr.mxu0 %v3288
        %3631 = vmatpush2.msra.mxu0 %v3287
        %3632 = vmatprep.mubr.f32.mxu0 %v3142
        %3633 = vmatmul.mubr.f32.gmra.mxu0 %v3141
        %v3634 = vpop.f32.mrf.mxu0
        %v3635 = vadd.f32 %v3426, %v3634
        %v3636 = vpop.f32.mrf.mxu0
        %v3637 = vadd.f32 %v3430, %v3636
        %3638 = vmatprep.mubr.f32.mxu0 %v3144
        %3639 = vmatmul.mubr.f32.gmra.mxu0 %v3143
        %v3640 = vpop.f32.mrf.mxu0
        %v3641 = vadd.f32 %v3426, %v3640
        %v3642 = vpop.f32.mrf.mxu0
        %v3643 = vadd.f32 %v3430, %v3642
        %3644 = vmatprep.mubr.f32.mxu0 %v3146
        %3645 = vmatmul.mubr.f32.gmra.mxu0 %v3145
        %v3646 = vpop.f32.mrf.mxu0
        %v3647 = vadd.f32 %v3426, %v3646
        %v3648 = vpop.f32.mrf.mxu0
        %v3649 = vadd.f32 %v3430, %v3648
        %3650 = vmatprep.mubr.f32.mxu0 %v3148
        %3651 = vmatmul.mubr.f32.gmra.mxu0 %v3147
        %v3652 = vpop.f32.mrf.mxu0
        %v3653 = vadd.f32 %v3426, %v3652
        %v3654 = vpop.f32.mrf.mxu0
        %v3655 = vadd.f32 %v3430, %v3654
        %3656 = vmatprep.mubr.f32.mxu0 %v3150
        %3657 = vmatmul.mubr.f32.gmra.mxu0 %v3149
        %v3658 = vpop.f32.mrf.mxu0
        %v3659 = vadd.f32 %v3426, %v3658
        %v3660 = vpop.f32.mrf.mxu0
        %v3661 = vadd.f32 %v3430, %v3660
        %3662 = vmatprep.mubr.f32.mxu0 %v3152
        %3663 = vmatmul.mubr.f32.gmra.mxu0 %v3151
        %v3664 = vpop.f32.mrf.mxu0
        %v3665 = vadd.f32 %v3426, %v3664
        %v3666 = vpop.f32.mrf.mxu0
        %v3667 = vadd.f32 %v3430, %v3666
        %3668 = vmatprep.mubr.f32.mxu0 %v3154
        %3669 = vmatmul.mubr.f32.gmra.mxu0 %v3153
        %v3670 = vpop.f32.mrf.mxu0
        %v3671 = vadd.f32 %v3426, %v3670
        %v3672 = vpop.f32.mrf.mxu0
        %v3673 = vadd.f32 %v3430, %v3672
        %3674 = vmatprep.mubr.f32.mxu0 %v3156
        %3675 = vmatmul.mubr.f32.gmra.mxu0 %v3155
        %v3676 = vpop.f32.mrf.mxu0
        %v3677 = vadd.f32 %v3426, %v3676
        %v3678 = vpop.f32.mrf.mxu0
        %v3679 = vadd.f32 %v3430, %v3678
        %3680 = vdwg.mxu0
        %3681 = vmatprep.subr.mxu0 %v3282
        %3682 = vmatpush1.msra.mxu0 %v3281
        %3683 = vmatprep.subr.mxu0 %v3274
        %3684 = vmatpush1.msra.mxu0 %v3273
        %3685 = vmatprep.subr.mxu0 %v3266
        %3686 = vmatpush1.msra.mxu0 %v3265
        %3687 = vmatprep.subr.mxu0 %v3258
        %3688 = vmatpush1.msra.mxu0 %v3257
        %3689 = vmatprep.subr.mxu0 %v3250
        %3690 = vmatpush1.msra.mxu0 %v3249
        %3691 = vmatprep.subr.mxu0 %v3242
        %3692 = vmatpush1.msra.mxu0 %v3241
        %3693 = vmatprep.subr.mxu0 %v3234
        %3694 = vmatpush1.msra.mxu0 %v3233
        %3695 = vmatprep.subr.mxu0 %v3226
        %3696 = vmatpush1.msra.mxu0 %v3225
        %3697 = vmatprep.subr.mxu0 %v3218
        %3698 = vmatpush1.msra.mxu0 %v3217
        %3699 = vmatprep.subr.mxu0 %v3210
        %3700 = vmatpush1.msra.mxu0 %v3209
        %3701 = vmatprep.subr.mxu0 %v3202
        %3702 = vmatpush1.msra.mxu0 %v3201
        %3703 = vmatprep.subr.mxu0 %v3194
        %3704 = vmatpush1.msra.mxu0 %v3193
        %3705 = vmatprep.subr.mxu0 %v3186
        %3706 = vmatpush1.msra.mxu0 %v3185
        %3707 = vmatprep.subr.mxu0 %v3178
        %3708 = vmatpush1.msra.mxu0 %v3177
        %3709 = vmatprep.subr.mxu0 %v3170
        %3710 = vmatpush1.msra.mxu0 %v3169
        %3711 = vmatprep.subr.mxu0 %v3162
        %3712 = vmatpush1.msra.mxu0 %v3161
        %3713 = vmatprep.subr.mxu0 %v3410
        %3714 = vmatpush2.msra.mxu0 %v3409
        %3715 = vmatprep.subr.mxu0 %v3402
        %3716 = vmatpush2.msra.mxu0 %v3401
        %3717 = vmatprep.subr.mxu0 %v3394
        %3718 = vmatpush2.msra.mxu0 %v3393
        %3719 = vmatprep.subr.mxu0 %v3386
        %3720 = vmatpush2.msra.mxu0 %v3385
        %3721 = vmatprep.subr.mxu0 %v3378
        %3722 = vmatpush2.msra.mxu0 %v3377
        %3723 = vmatprep.subr.mxu0 %v3370
        %3724 = vmatpush2.msra.mxu0 %v3369
        %3725 = vmatprep.subr.mxu0 %v3362
        %3726 = vmatpush2.msra.mxu0 %v3361
        %3727 = vmatprep.subr.mxu0 %v3354
        %3728 = vmatpush2.msra.mxu0 %v3353
        %3729 = vmatprep.subr.mxu0 %v3346
        %3730 = vmatpush2.msra.mxu0 %v3345
        %3731 = vmatprep.subr.mxu0 %v3338
        %3732 = vmatpush2.msra.mxu0 %v3337
        %3733 = vmatprep.subr.mxu0 %v3330
        %3734 = vmatpush2.msra.mxu0 %v3329
        %3735 = vmatprep.subr.mxu0 %v3322
        %3736 = vmatpush2.msra.mxu0 %v3321
        %3737 = vmatprep.subr.mxu0 %v3314
        %3738 = vmatpush2.msra.mxu0 %v3313
        %3739 = vmatprep.subr.mxu0 %v3306
        %3740 = vmatpush2.msra.mxu0 %v3305
        %3741 = vmatprep.subr.mxu0 %v3298
        %3742 = vmatpush2.msra.mxu0 %v3297
        %3743 = vmatprep.subr.mxu0 %v3290
        %3744 = vmatpush2.msra.mxu0 %v3289
        %3745 = vmatprep.mubr.f32.mxu0 %v3142
        %3746 = vmatmul.mubr.f32.gmra.mxu0 %v3141
        %v3747 = vpop.f32.mrf.mxu0
        %v3748 = vadd.f32 %v3434, %v3747
        %v3749 = vpop.f32.mrf.mxu0
        %v3750 = vadd.f32 %v3438, %v3749
        %3751 = vmatprep.mubr.f32.mxu0 %v3144
        %3752 = vmatmul.mubr.f32.gmra.mxu0 %v3143
        %v3753 = vpop.f32.mrf.mxu0
        %v3754 = vadd.f32 %v3434, %v3753
        %v3755 = vpop.f32.mrf.mxu0
        %v3756 = vadd.f32 %v3438, %v3755
        %3757 = vmatprep.mubr.f32.mxu0 %v3146
        %3758 = vmatmul.mubr.f32.gmra.mxu0 %v3145
        %v3759 = vpop.f32.mrf.mxu0
        %v3760 = vadd.f32 %v3434, %v3759
        %v3761 = vpop.f32.mrf.mxu0
        %v3762 = vadd.f32 %v3438, %v3761
        %3763 = vmatprep.mubr.f32.mxu0 %v3148
        %3764 = vmatmul.mubr.f32.gmra.mxu0 %v3147
        %v3765 = vpop.f32.mrf.mxu0
        %v3766 = vadd.f32 %v3434, %v3765
        %v3767 = vpop.f32.mrf.mxu0
        %v3768 = vadd.f32 %v3438, %v3767
        %3769 = vmatprep.mubr.f32.mxu0 %v3150
        %3770 = vmatmul.mubr.f32.gmra.mxu0 %v3149
        %v3771 = vpop.f32.mrf.mxu0
        %v3772 = vadd.f32 %v3434, %v3771
        %v3773 = vpop.f32.mrf.mxu0
        %v3774 = vadd.f32 %v3438, %v3773
        %3775 = vmatprep.mubr.f32.mxu0 %v3152
        %3776 = vmatmul.mubr.f32.gmra.mxu0 %v3151
        %v3777 = vpop.f32.mrf.mxu0
        %v3778 = vadd.f32 %v3434, %v3777
        %v3779 = vpop.f32.mrf.mxu0
        %v3780 = vadd.f32 %v3438, %v3779
        %3781 = vmatprep.mubr.f32.mxu0 %v3154
        %3782 = vmatmul.mubr.f32.gmra.mxu0 %v3153
        %v3783 = vpop.f32.mrf.mxu0
        %v3784 = vadd.f32 %v3434, %v3783
        %v3785 = vpop.f32.mrf.mxu0
        %v3786 = vadd.f32 %v3438, %v3785
        %3787 = vmatprep.mubr.f32.mxu0 %v3156
        %3788 = vmatmul.mubr.f32.gmra.mxu0 %v3155
        %v3789 = vpop.f32.mrf.mxu0
        %v3790 = vadd.f32 %v3434, %v3789
        %v3791 = vpop.f32.mrf.mxu0
        %v3792 = vadd.f32 %v3438, %v3791
        %3793 = vdwg.mxu0
        %3794 = vmatprep.subr.mxu0 %v3284
        %3795 = vmatpush1.msra.mxu0 %v3283
        %3796 = vmatprep.subr.mxu0 %v3276
        %3797 = vmatpush1.msra.mxu0 %v3275
        %3798 = vmatprep.subr.mxu0 %v3268
        %3799 = vmatpush1.msra.mxu0 %v3267
        %3800 = vmatprep.subr.mxu0 %v3260
        %3801 = vmatpush1.msra.mxu0 %v3259
        %3802 = vmatprep.subr.mxu0 %v3252
        %3803 = vmatpush1.msra.mxu0 %v3251
        %3804 = vmatprep.subr.mxu0 %v3244
        %3805 = vmatpush1.msra.mxu0 %v3243
        %3806 = vmatprep.subr.mxu0 %v3236
        %3807 = vmatpush1.msra.mxu0 %v3235
        %3808 = vmatprep.subr.mxu0 %v3228
        %3809 = vmatpush1.msra.mxu0 %v3227
        %3810 = vmatprep.subr.mxu0 %v3220
        %3811 = vmatpush1.msra.mxu0 %v3219
        %3812 = vmatprep.subr.mxu0 %v3212
        %3813 = vmatpush1.msra.mxu0 %v3211
        %3814 = vmatprep.subr.mxu0 %v3204
        %3815 = vmatpush1.msra.mxu0 %v3203
        %3816 = vmatprep.subr.mxu0 %v3196
        %3817 = vmatpush1.msra.mxu0 %v3195
        %3818 = vmatprep.subr.mxu0 %v3188
        %3819 = vmatpush1.msra.mxu0 %v3187
        %3820 = vmatprep.subr.mxu0 %v3180
        %3821 = vmatpush1.msra.mxu0 %v3179
        %3822 = vmatprep.subr.mxu0 %v3172
        %3823 = vmatpush1.msra.mxu0 %v3171
        %3824 = vmatprep.subr.mxu0 %v3164
        %3825 = vmatpush1.msra.mxu0 %v3163
        %3826 = vmatprep.subr.mxu0 %v3412
        %3827 = vmatpush2.msra.mxu0 %v3411
        %3828 = vmatprep.subr.mxu0 %v3404
        %3829 = vmatpush2.msra.mxu0 %v3403
        %3830 = vmatprep.subr.mxu0 %v3396
        %3831 = vmatpush2.msra.mxu0 %v3395
        %3832 = vmatprep.subr.mxu0 %v3388
        %3833 = vmatpush2.msra.mxu0 %v3387
        %3834 = vmatprep.subr.mxu0 %v3380
        %3835 = vmatpush2.msra.mxu0 %v3379
        %3836 = vmatprep.subr.mxu0 %v3372
        %3837 = vmatpush2.msra.mxu0 %v3371
        %3838 = vmatprep.subr.mxu0 %v3364
        %3839 = vmatpush2.msra.mxu0 %v3363
        %3840 = vmatprep.subr.mxu0 %v3356
        %3841 = vmatpush2.msra.mxu0 %v3355
        %3842 = vmatprep.subr.mxu0 %v3348
        %3843 = vmatpush2.msra.mxu0 %v3347
        %3844 = vmatprep.subr.mxu0 %v3340
        %3845 = vmatpush2.msra.mxu0 %v3339
        %3846 = vmatprep.subr.mxu0 %v3332
        %3847 = vmatpush2.msra.mxu0 %v3331
        %3848 = vmatprep.subr.mxu0 %v3324
        %3849 = vmatpush2.msra.mxu0 %v3323
        %3850 = vmatprep.subr.mxu0 %v3316
        %3851 = vmatpush2.msra.mxu0 %v3315
        %3852 = vmatprep.subr.mxu0 %v3308
        %3853 = vmatpush2.msra.mxu0 %v3307
        %3854 = vmatprep.subr.mxu0 %v3300
        %3855 = vmatpush2.msra.mxu0 %v3299
        %3856 = vmatprep.subr.mxu0 %v3292
        %3857 = vmatpush2.msra.mxu0 %v3291
        %3858 = vmatprep.mubr.f32.mxu0 %v3142
        %3859 = vmatmul.mubr.f32.gmra.mxu0 %v3141
        %v3860 = vpop.f32.mrf.mxu0
        %v3861 = vadd.f32 %v3442, %v3860
        %v3862 = vpop.f32.mrf.mxu0
        %v3863 = vadd.f32 %v3446, %v3862
        %3864 = vmatprep.mubr.f32.mxu0 %v3144
        %3865 = vmatmul.mubr.f32.gmra.mxu0 %v3143
        %v3866 = vpop.f32.mrf.mxu0
        %v3867 = vadd.f32 %v3442, %v3866
        %v3868 = vpop.f32.mrf.mxu0
        %v3869 = vadd.f32 %v3446, %v3868
        %3870 = vmatprep.mubr.f32.mxu0 %v3146
        %3871 = vmatmul.mubr.f32.gmra.mxu0 %v3145
        %v3872 = vpop.f32.mrf.mxu0
        %v3873 = vadd.f32 %v3442, %v3872
        %v3874 = vpop.f32.mrf.mxu0
        %v3875 = vadd.f32 %v3446, %v3874
        %3876 = vmatprep.mubr.f32.mxu0 %v3148
        %3877 = vmatmul.mubr.f32.gmra.mxu0 %v3147
        %v3878 = vpop.f32.mrf.mxu0
        %v3879 = vadd.f32 %v3442, %v3878
        %v3880 = vpop.f32.mrf.mxu0
        %v3881 = vadd.f32 %v3446, %v3880
        %3882 = vmatprep.mubr.f32.mxu0 %v3150
        %3883 = vmatmul.mubr.f32.gmra.mxu0 %v3149
        %v3884 = vpop.f32.mrf.mxu0
        %v3885 = vadd.f32 %v3442, %v3884
        %v3886 = vpop.f32.mrf.mxu0
        %v3887 = vadd.f32 %v3446, %v3886
        %3888 = vmatprep.mubr.f32.mxu0 %v3152
        %3889 = vmatmul.mubr.f32.gmra.mxu0 %v3151
        %v3890 = vpop.f32.mrf.mxu0
        %v3891 = vadd.f32 %v3442, %v3890
        %v3892 = vpop.f32.mrf.mxu0
        %v3893 = vadd.f32 %v3446, %v3892
        %3894 = vmatprep.mubr.f32.mxu0 %v3154
        %3895 = vmatmul.mubr.f32.gmra.mxu0 %v3153
        %v3896 = vpop.f32.mrf.mxu0
        %v3897 = vadd.f32 %v3442, %v3896
        %v3898 = vpop.f32.mrf.mxu0
        %v3899 = vadd.f32 %v3446, %v3898
        %3900 = vmatprep.mubr.f32.mxu0 %v3156
        %3901 = vmatmul.mubr.f32.gmra.mxu0 %v3155
        %v3902 = vpop.f32.mrf.mxu0
        %v3903 = vadd.f32 %v3442, %v3902
        %v3904 = vpop.f32.mrf.mxu0
        %v3905 = vadd.f32 %v3446, %v3904
        %3906 = vdwg.mxu0
        %v3907 = vmax.f32 %v3522, 0.0
        %v3908 = vmax.f32 %v3524, 0.0
        %v3909 = vmax.f32 %v3635, 0.0
        %v3910 = vmax.f32 %v3637, 0.0
        %v3911 = vmax.f32 %v3748, 0.0
        %v3912 = vmax.f32 %v3750, 0.0
        %v3913 = vmax.f32 %v3861, 0.0
        %v3914 = vmax.f32 %v3863, 0.0
        %v3915 = vmax.f32 %v3528, 0.0
        %v3916 = vmax.f32 %v3530, 0.0
        %v3917 = vmax.f32 %v3641, 0.0
        %v3918 = vmax.f32 %v3643, 0.0
        %v3919 = vmax.f32 %v3754, 0.0
        %v3920 = vmax.f32 %v3756, 0.0
        %v3921 = vmax.f32 %v3867, 0.0
        %v3922 = vmax.f32 %v3869, 0.0
        %v3923 = vmax.f32 %v3534, 0.0
        %v3924 = vmax.f32 %v3536, 0.0
        %v3925 = vmax.f32 %v3647, 0.0
        %v3926 = vmax.f32 %v3649, 0.0
        %v3927 = vmax.f32 %v3760, 0.0
        %v3928 = vmax.f32 %v3762, 0.0
        %v3929 = vmax.f32 %v3873, 0.0
        %v3930 = vmax.f32 %v3875, 0.0
        %v3931 = vmax.f32 %v3540, 0.0
        %v3932 = vmax.f32 %v3542, 0.0
        %v3933 = vmax.f32 %v3653, 0.0
        %v3934 = vmax.f32 %v3655, 0.0
        %v3935 = vmax.f32 %v3766, 0.0
        %v3936 = vmax.f32 %v3768, 0.0
        %v3937 = vmax.f32 %v3879, 0.0
        %v3938 = vmax.f32 %v3881, 0.0
        %v3939 = vmax.f32 %v3546, 0.0
        %v3940 = vmax.f32 %v3548, 0.0
        %v3941 = vmax.f32 %v3659, 0.0
        %v3942 = vmax.f32 %v3661, 0.0
        %v3943 = vmax.f32 %v3772, 0.0
        %v3944 = vmax.f32 %v3774, 0.0
        %v3945 = vmax.f32 %v3885, 0.0
        %v3946 = vmax.f32 %v3887, 0.0
        %v3947 = vmax.f32 %v3552, 0.0
        %v3948 = vmax.f32 %v3554, 0.0
        %v3949 = vmax.f32 %v3665, 0.0
        %v3950 = vmax.f32 %v3667, 0.0
        %v3951 = vmax.f32 %v3778, 0.0
        %v3952 = vmax.f32 %v3780, 0.0
        %v3953 = vmax.f32 %v3891, 0.0
        %v3954 = vmax.f32 %v3893, 0.0
        %v3955 = vmax.f32 %v3558, 0.0
        %v3956 = vmax.f32 %v3560, 0.0
        %v3957 = vmax.f32 %v3671, 0.0
        %v3958 = vmax.f32 %v3673, 0.0
        %v3959 = vmax.f32 %v3784, 0.0
        %v3960 = vmax.f32 %v3786, 0.0
        %v3961 = vmax.f32 %v3897, 0.0
        %v3962 = vmax.f32 %v3899, 0.0
        %v3963 = vmax.f32 %v3564, 0.0
        %v3964 = vmax.f32 %v3566, 0.0
        %v3965 = vmax.f32 %v3677, 0.0
        %v3966 = vmax.f32 %v3679, 0.0
        %v3967 = vmax.f32 %v3790, 0.0
        %v3968 = vmax.f32 %v3792, 0.0
        %v3969 = vmax.f32 %v3903, 0.0
        %v3970 = vmax.f32 %v3905, 0.0
        %v3971 = vld [vmem:[%s780] sm:$0xff]
        %v3972 = vld [vmem:[%s780 + $0x8] sm:$0xff]
        %v3973 = vld [vmem:[%s780 + $0x10] sm:$0xff]
        %v3974 = vld [vmem:[%s780 + $0x18] sm:$0xff]
        %v3975 = vld [vmem:[%s780 + $0x20] sm:$0xff]
        %v3976 = vld [vmem:[%s780 + $0x28] sm:$0xff]
        %v3977 = vld [vmem:[%s780 + $0x30] sm:$0xff]
        %v3978 = vld [vmem:[%s780 + $0x38] sm:$0xff]
        %v3979 = vld [vmem:[%s780 + $0x40] sm:$0xff]
        %v3980 = vld [vmem:[%s780 + $0x48] sm:$0xff]
        %v3981 = vld [vmem:[%s780 + $0x50] sm:$0xff]
        %v3982 = vld [vmem:[%s780 + $0x58] sm:$0xff]
        %v3983 = vld [vmem:[%s780 + $0x60] sm:$0xff]
        %v3984 = vld [vmem:[%s780 + $0x68] sm:$0xff]
        %v3985 = vld [vmem:[%s780 + $0x70] sm:$0xff]
        %v3986 = vld [vmem:[%s780 + $0x78] sm:$0xff]
        %v3987 = vld [vmem:[%s780 + $0x80] sm:$0xff]
        %v3988 = vld [vmem:[%s780 + $0x88] sm:$0xff]
        %v3989 = vld [vmem:[%s780 + $0x90] sm:$0xff]
        %v3990 = vld [vmem:[%s780 + $0x98] sm:$0xff]
        %v3991 = vld [vmem:[%s780 + $0xa0] sm:$0xff]
        %v3992 = vld [vmem:[%s780 + $0xa8] sm:$0xff]
        %v3993 = vld [vmem:[%s780 + $0xb0] sm:$0xff]
        %v3994 = vld [vmem:[%s780 + $0xb8] sm:$0xff]
        %v3995 = vld [vmem:[%s780 + $0xc0] sm:$0xff]
        %v3996 = vld [vmem:[%s780 + $0xc8] sm:$0xff]
        %v3997 = vld [vmem:[%s780 + $0xd0] sm:$0xff]
        %v3998 = vld [vmem:[%s780 + $0xd8] sm:$0xff]
        %v3999 = vld [vmem:[%s780 + $0xe0] sm:$0xff]
        %v4000 = vld [vmem:[%s780 + $0xe8] sm:$0xff]
        %v4001 = vld [vmem:[%s780 + $0xf0] sm:$0xff]
        %v4002 = vld [vmem:[%s780 + $0xf8] sm:$0xff]
        %v4003 = vld [vmem:[%s780 + $0x100] sm:$0xff]
        %v4004 = vld [vmem:[%s780 + $0x108] sm:$0xff]
        %v4005 = vld [vmem:[%s780 + $0x110] sm:$0xff]
        %v4006 = vld [vmem:[%s780 + $0x118] sm:$0xff]
        %v4007 = vld [vmem:[%s780 + $0x120] sm:$0xff]
        %v4008 = vld [vmem:[%s780 + $0x128] sm:$0xff]
        %v4009 = vld [vmem:[%s780 + $0x130] sm:$0xff]
        %v4010 = vld [vmem:[%s780 + $0x138] sm:$0xff]
        %v4011 = vld [vmem:[%s780 + $0x140] sm:$0xff]
        %v4012 = vld [vmem:[%s780 + $0x148] sm:$0xff]
        %v4013 = vld [vmem:[%s780 + $0x150] sm:$0xff]
        %v4014 = vld [vmem:[%s780 + $0x158] sm:$0xff]
        %v4015 = vld [vmem:[%s780 + $0x160] sm:$0xff]
        %v4016 = vld [vmem:[%s780 + $0x168] sm:$0xff]
        %v4017 = vld [vmem:[%s780 + $0x170] sm:$0xff]
        %v4018 = vld [vmem:[%s780 + $0x178] sm:$0xff]
        %v4019 = vld [vmem:[%s780 + $0x180] sm:$0xff]
        %v4020 = vld [vmem:[%s780 + $0x188] sm:$0xff]
        %v4021 = vld [vmem:[%s780 + $0x190] sm:$0xff]
        %v4022 = vld [vmem:[%s780 + $0x198] sm:$0xff]
        %v4023 = vld [vmem:[%s780 + $0x1a0] sm:$0xff]
        %v4024 = vld [vmem:[%s780 + $0x1a8] sm:$0xff]
        %v4025 = vld [vmem:[%s780 + $0x1b0] sm:$0xff]
        %v4026 = vld [vmem:[%s780 + $0x1b8] sm:$0xff]
        %v4027 = vld [vmem:[%s780 + $0x1c0] sm:$0xff]
        %v4028 = vld [vmem:[%s780 + $0x1c8] sm:$0xff]
        %v4029 = vld [vmem:[%s780 + $0x1d0] sm:$0xff]
        %v4030 = vld [vmem:[%s780 + $0x1d8] sm:$0xff]
        %v4031 = vld [vmem:[%s780 + $0x1e0] sm:$0xff]
        %v4032 = vld [vmem:[%s780 + $0x1e8] sm:$0xff]
        %v4033 = vld [vmem:[%s780 + $0x1f0] sm:$0xff]
        %v4034 = vld [vmem:[%s780 + $0x1f8] sm:$0xff]
        %v4035 = vld [vmem:[%s780 + $0x200] sm:$0xff]
        %v4036 = vld [vmem:[%s780 + $0x208] sm:$0xff]
        %v4037 = vld [vmem:[%s780 + $0x210] sm:$0xff]
        %v4038 = vld [vmem:[%s780 + $0x218] sm:$0xff]
        %v4039 = vld [vmem:[%s780 + $0x220] sm:$0xff]
        %v4040 = vld [vmem:[%s780 + $0x228] sm:$0xff]
        %v4041 = vld [vmem:[%s780 + $0x230] sm:$0xff]
        %v4042 = vld [vmem:[%s780 + $0x238] sm:$0xff]
        %v4043 = vld [vmem:[%s780 + $0x240] sm:$0xff]
        %v4044 = vld [vmem:[%s780 + $0x248] sm:$0xff]
        %v4045 = vld [vmem:[%s780 + $0x250] sm:$0xff]
        %v4046 = vld [vmem:[%s780 + $0x258] sm:$0xff]
        %v4047 = vld [vmem:[%s780 + $0x260] sm:$0xff]
        %v4048 = vld [vmem:[%s780 + $0x268] sm:$0xff]
        %v4049 = vld [vmem:[%s780 + $0x270] sm:$0xff]
        %v4050 = vld [vmem:[%s780 + $0x278] sm:$0xff]
        %v4051 = vld [vmem:[%s780 + $0x280] sm:$0xff]
        %v4052 = vld [vmem:[%s780 + $0x288] sm:$0xff]
        %v4053 = vld [vmem:[%s780 + $0x290] sm:$0xff]
        %v4054 = vld [vmem:[%s780 + $0x298] sm:$0xff]
        %v4055 = vld [vmem:[%s780 + $0x2a0] sm:$0xff]
        %v4056 = vld [vmem:[%s780 + $0x2a8] sm:$0xff]
        %v4057 = vld [vmem:[%s780 + $0x2b0] sm:$0xff]
        %v4058 = vld [vmem:[%s780 + $0x2b8] sm:$0xff]
        %v4059 = vld [vmem:[%s780 + $0x2c0] sm:$0xff]
        %v4060 = vld [vmem:[%s780 + $0x2c8] sm:$0xff]
        %v4061 = vld [vmem:[%s780 + $0x2d0] sm:$0xff]
        %v4062 = vld [vmem:[%s780 + $0x2d8] sm:$0xff]
        %v4063 = vld [vmem:[%s780 + $0x2e0] sm:$0xff]
        %v4064 = vld [vmem:[%s780 + $0x2e8] sm:$0xff]
        %v4065 = vld [vmem:[%s780 + $0x2f0] sm:$0xff]
        %v4066 = vld [vmem:[%s780 + $0x2f8] sm:$0xff]
        %v4067 = vld [vmem:[%s780 + $0x300] sm:$0xff]
        %v4068 = vld [vmem:[%s780 + $0x308] sm:$0xff]
        %v4069 = vld [vmem:[%s780 + $0x310] sm:$0xff]
        %v4070 = vld [vmem:[%s780 + $0x318] sm:$0xff]
        %v4071 = vld [vmem:[%s780 + $0x320] sm:$0xff]
        %v4072 = vld [vmem:[%s780 + $0x328] sm:$0xff]
        %v4073 = vld [vmem:[%s780 + $0x330] sm:$0xff]
        %v4074 = vld [vmem:[%s780 + $0x338] sm:$0xff]
        %v4075 = vld [vmem:[%s780 + $0x340] sm:$0xff]
        %v4076 = vld [vmem:[%s780 + $0x348] sm:$0xff]
        %v4077 = vld [vmem:[%s780 + $0x350] sm:$0xff]
        %v4078 = vld [vmem:[%s780 + $0x358] sm:$0xff]
        %v4079 = vld [vmem:[%s780 + $0x360] sm:$0xff]
        %v4080 = vld [vmem:[%s780 + $0x368] sm:$0xff]
        %v4081 = vld [vmem:[%s780 + $0x370] sm:$0xff]
        %v4082 = vld [vmem:[%s780 + $0x378] sm:$0xff]
        %v4083 = vld [vmem:[%s780 + $0x380] sm:$0xff]
        %v4084 = vld [vmem:[%s780 + $0x388] sm:$0xff]
        %v4085 = vld [vmem:[%s780 + $0x390] sm:$0xff]
        %v4086 = vld [vmem:[%s780 + $0x398] sm:$0xff]
        %v4087 = vld [vmem:[%s780 + $0x3a0] sm:$0xff]
        %v4088 = vld [vmem:[%s780 + $0x3a8] sm:$0xff]
        %v4089 = vld [vmem:[%s780 + $0x3b0] sm:$0xff]
        %v4090 = vld [vmem:[%s780 + $0x3b8] sm:$0xff]
        %v4091 = vld [vmem:[%s780 + $0x3c0] sm:$0xff]
        %v4092 = vld [vmem:[%s780 + $0x3c8] sm:$0xff]
        %v4093 = vld [vmem:[%s780 + $0x3d0] sm:$0xff]
        %v4094 = vld [vmem:[%s780 + $0x3d8] sm:$0xff]
        %v4095 = vld [vmem:[%s780 + $0x3e0] sm:$0xff]
        %v4096 = vld [vmem:[%s780 + $0x3e8] sm:$0xff]
        %v4097 = vld [vmem:[%s780 + $0x3f0] sm:$0xff]
        %v4098 = vld [vmem:[%s780 + $0x3f8] sm:$0xff]
        %v4099 = vld [vmem:[%s780 + $0x400] sm:$0xff]
        %v4100 = vld [vmem:[%s780 + $0x408] sm:$0xff]
        %v4101 = vld [vmem:[%s780 + $0x410] sm:$0xff]
        %v4102 = vld [vmem:[%s780 + $0x418] sm:$0xff]
        %v4103 = vld [vmem:[%s780 + $0x420] sm:$0xff]
        %v4104 = vld [vmem:[%s780 + $0x428] sm:$0xff]
        %v4105 = vld [vmem:[%s780 + $0x430] sm:$0xff]
        %v4106 = vld [vmem:[%s780 + $0x438] sm:$0xff]
        %v4107 = vld [vmem:[%s780 + $0x440] sm:$0xff]
        %v4108 = vld [vmem:[%s780 + $0x448] sm:$0xff]
        %v4109 = vld [vmem:[%s780 + $0x450] sm:$0xff]
        %v4110 = vld [vmem:[%s780 + $0x458] sm:$0xff]
        %v4111 = vld [vmem:[%s780 + $0x460] sm:$0xff]
        %v4112 = vld [vmem:[%s780 + $0x468] sm:$0xff]
        %v4113 = vld [vmem:[%s780 + $0x470] sm:$0xff]
        %v4114 = vld [vmem:[%s780 + $0x478] sm:$0xff]
        %v4115 = vld [vmem:[%s780 + $0x480] sm:$0xff]
        %v4116 = vld [vmem:[%s780 + $0x488] sm:$0xff]
        %v4117 = vld [vmem:[%s780 + $0x490] sm:$0xff]
        %v4118 = vld [vmem:[%s780 + $0x498] sm:$0xff]
        %v4119 = vld [vmem:[%s780 + $0x4a0] sm:$0xff]
        %v4120 = vld [vmem:[%s780 + $0x4a8] sm:$0xff]
        %v4121 = vld [vmem:[%s780 + $0x4b0] sm:$0xff]
        %v4122 = vld [vmem:[%s780 + $0x4b8] sm:$0xff]
        %v4123 = vld [vmem:[%s780 + $0x4c0] sm:$0xff]
        %v4124 = vld [vmem:[%s780 + $0x4c8] sm:$0xff]
        %v4125 = vld [vmem:[%s780 + $0x4d0] sm:$0xff]
        %v4126 = vld [vmem:[%s780 + $0x4d8] sm:$0xff]
        %v4127 = vld [vmem:[%s780 + $0x4e0] sm:$0xff]
        %v4128 = vld [vmem:[%s780 + $0x4e8] sm:$0xff]
        %v4129 = vld [vmem:[%s780 + $0x4f0] sm:$0xff]
        %v4130 = vld [vmem:[%s780 + $0x4f8] sm:$0xff]
        %v4131 = vld [vmem:[%s780 + $0x500] sm:$0xff]
        %v4132 = vld [vmem:[%s780 + $0x508] sm:$0xff]
        %v4133 = vld [vmem:[%s780 + $0x510] sm:$0xff]
        %v4134 = vld [vmem:[%s780 + $0x518] sm:$0xff]
        %v4135 = vld [vmem:[%s780 + $0x520] sm:$0xff]
        %v4136 = vld [vmem:[%s780 + $0x528] sm:$0xff]
        %v4137 = vld [vmem:[%s780 + $0x530] sm:$0xff]
        %v4138 = vld [vmem:[%s780 + $0x538] sm:$0xff]
        %v4139 = vld [vmem:[%s780 + $0x540] sm:$0xff]
        %v4140 = vld [vmem:[%s780 + $0x548] sm:$0xff]
        %v4141 = vld [vmem:[%s780 + $0x550] sm:$0xff]
        %v4142 = vld [vmem:[%s780 + $0x558] sm:$0xff]
        %v4143 = vld [vmem:[%s780 + $0x560] sm:$0xff]
        %v4144 = vld [vmem:[%s780 + $0x568] sm:$0xff]
        %v4145 = vld [vmem:[%s780 + $0x570] sm:$0xff]
        %v4146 = vld [vmem:[%s780 + $0x578] sm:$0xff]
        %v4147 = vld [vmem:[%s780 + $0x580] sm:$0xff]
        %v4148 = vld [vmem:[%s780 + $0x588] sm:$0xff]
        %v4149 = vld [vmem:[%s780 + $0x590] sm:$0xff]
        %v4150 = vld [vmem:[%s780 + $0x598] sm:$0xff]
        %v4151 = vld [vmem:[%s780 + $0x5a0] sm:$0xff]
        %v4152 = vld [vmem:[%s780 + $0x5a8] sm:$0xff]
        %v4153 = vld [vmem:[%s780 + $0x5b0] sm:$0xff]
        %v4154 = vld [vmem:[%s780 + $0x5b8] sm:$0xff]
        %v4155 = vld [vmem:[%s780 + $0x5c0] sm:$0xff]
        %v4156 = vld [vmem:[%s780 + $0x5c8] sm:$0xff]
        %v4157 = vld [vmem:[%s780 + $0x5d0] sm:$0xff]
        %v4158 = vld [vmem:[%s780 + $0x5d8] sm:$0xff]
        %v4159 = vld [vmem:[%s780 + $0x5e0] sm:$0xff]
        %v4160 = vld [vmem:[%s780 + $0x5e8] sm:$0xff]
        %v4161 = vld [vmem:[%s780 + $0x5f0] sm:$0xff]
        %v4162 = vld [vmem:[%s780 + $0x5f8] sm:$0xff]
        %v4163 = vld [vmem:[%s780 + $0x600] sm:$0xff]
        %v4164 = vld [vmem:[%s780 + $0x608] sm:$0xff]
        %v4165 = vld [vmem:[%s780 + $0x610] sm:$0xff]
        %v4166 = vld [vmem:[%s780 + $0x618] sm:$0xff]
        %v4167 = vld [vmem:[%s780 + $0x620] sm:$0xff]
        %v4168 = vld [vmem:[%s780 + $0x628] sm:$0xff]
        %v4169 = vld [vmem:[%s780 + $0x630] sm:$0xff]
        %v4170 = vld [vmem:[%s780 + $0x638] sm:$0xff]
        %v4171 = vld [vmem:[%s780 + $0x640] sm:$0xff]
        %v4172 = vld [vmem:[%s780 + $0x648] sm:$0xff]
        %v4173 = vld [vmem:[%s780 + $0x650] sm:$0xff]
        %v4174 = vld [vmem:[%s780 + $0x658] sm:$0xff]
        %v4175 = vld [vmem:[%s780 + $0x660] sm:$0xff]
        %v4176 = vld [vmem:[%s780 + $0x668] sm:$0xff]
        %v4177 = vld [vmem:[%s780 + $0x670] sm:$0xff]
        %v4178 = vld [vmem:[%s780 + $0x678] sm:$0xff]
        %v4179 = vld [vmem:[%s780 + $0x680] sm:$0xff]
        %v4180 = vld [vmem:[%s780 + $0x688] sm:$0xff]
        %v4181 = vld [vmem:[%s780 + $0x690] sm:$0xff]
        %v4182 = vld [vmem:[%s780 + $0x698] sm:$0xff]
        %v4183 = vld [vmem:[%s780 + $0x6a0] sm:$0xff]
        %v4184 = vld [vmem:[%s780 + $0x6a8] sm:$0xff]
        %v4185 = vld [vmem:[%s780 + $0x6b0] sm:$0xff]
        %v4186 = vld [vmem:[%s780 + $0x6b8] sm:$0xff]
        %v4187 = vld [vmem:[%s780 + $0x6c0] sm:$0xff]
        %v4188 = vld [vmem:[%s780 + $0x6c8] sm:$0xff]
        %v4189 = vld [vmem:[%s780 + $0x6d0] sm:$0xff]
        %v4190 = vld [vmem:[%s780 + $0x6d8] sm:$0xff]
        %v4191 = vld [vmem:[%s780 + $0x6e0] sm:$0xff]
        %v4192 = vld [vmem:[%s780 + $0x6e8] sm:$0xff]
        %v4193 = vld [vmem:[%s780 + $0x6f0] sm:$0xff]
        %v4194 = vld [vmem:[%s780 + $0x6f8] sm:$0xff]
        %v4195 = vld [vmem:[%s780 + $0x700] sm:$0xff]
        %v4196 = vld [vmem:[%s780 + $0x708] sm:$0xff]
        %v4197 = vld [vmem:[%s780 + $0x710] sm:$0xff]
        %v4198 = vld [vmem:[%s780 + $0x718] sm:$0xff]
        %v4199 = vld [vmem:[%s780 + $0x720] sm:$0xff]
        %v4200 = vld [vmem:[%s780 + $0x728] sm:$0xff]
        %v4201 = vld [vmem:[%s780 + $0x730] sm:$0xff]
        %v4202 = vld [vmem:[%s780 + $0x738] sm:$0xff]
        %v4203 = vld [vmem:[%s780 + $0x740] sm:$0xff]
        %v4204 = vld [vmem:[%s780 + $0x748] sm:$0xff]
        %v4205 = vld [vmem:[%s780 + $0x750] sm:$0xff]
        %v4206 = vld [vmem:[%s780 + $0x758] sm:$0xff]
        %v4207 = vld [vmem:[%s780 + $0x760] sm:$0xff]
        %v4208 = vld [vmem:[%s780 + $0x768] sm:$0xff]
        %v4209 = vld [vmem:[%s780 + $0x770] sm:$0xff]
        %v4210 = vld [vmem:[%s780 + $0x778] sm:$0xff]
        %v4211 = vld [vmem:[%s780 + $0x780] sm:$0xff]
        %v4212 = vld [vmem:[%s780 + $0x788] sm:$0xff]
        %v4213 = vld [vmem:[%s780 + $0x790] sm:$0xff]
        %v4214 = vld [vmem:[%s780 + $0x798] sm:$0xff]
        %v4215 = vld [vmem:[%s780 + $0x7a0] sm:$0xff]
        %v4216 = vld [vmem:[%s780 + $0x7a8] sm:$0xff]
        %v4217 = vld [vmem:[%s780 + $0x7b0] sm:$0xff]
        %v4218 = vld [vmem:[%s780 + $0x7b8] sm:$0xff]
        %v4219 = vld [vmem:[%s780 + $0x7c0] sm:$0xff]
        %v4220 = vld [vmem:[%s780 + $0x7c8] sm:$0xff]
        %v4221 = vld [vmem:[%s780 + $0x7d0] sm:$0xff]
        %v4222 = vld [vmem:[%s780 + $0x7d8] sm:$0xff]
        %v4223 = vld [vmem:[%s780 + $0x7e0] sm:$0xff]
        %v4224 = vld [vmem:[%s780 + $0x7e8] sm:$0xff]
        %v4225 = vld [vmem:[%s780 + $0x7f0] sm:$0xff]
        %v4226 = vld [vmem:[%s780 + $0x7f8] sm:$0xff]
        %v4227 = vld [vmem:[%s789] sm:$0x3]
        %v4229 = vlaneseq
        %v4230 = vshrl.u32 %v4229, 7
        %v4231 = vsub.s32 0, %v4230
        %v4232 = vrot.slane %v4227, %v4231
        %v4233 = vlaneseq
        %v4234 = vshrl.u32 %v4233, 7
        %v4235 = vsub.s32 1, %v4234
        %v4236 = vrot.slane %v4227, %v4235
        %4239 = vmatprep.subr.mxu0 %v4002
        %4240 = vmatpush1.msra.mxu0 %v4001
        %4241 = vmatprep.subr.mxu0 %v4000
        %4242 = vmatpush1.msra.mxu0 %v3999
        %4243 = vmatprep.subr.mxu0 %v3998
        %4244 = vmatpush1.msra.mxu0 %v3997
        %4245 = vmatprep.subr.mxu0 %v3996
        %4246 = vmatpush1.msra.mxu0 %v3995
        %4247 = vmatprep.subr.mxu0 %v3994
        %4248 = vmatpush1.msra.mxu0 %v3993
        %4249 = vmatprep.subr.mxu0 %v3992
        %4250 = vmatpush1.msra.mxu0 %v3991
        %4251 = vmatprep.subr.mxu0 %v3990
        %4252 = vmatpush1.msra.mxu0 %v3989
        %4253 = vmatprep.subr.mxu0 %v3988
        %4254 = vmatpush1.msra.mxu0 %v3987
        %4255 = vmatprep.subr.mxu0 %v3986
        %4256 = vmatpush1.msra.mxu0 %v3985
        %4257 = vmatprep.subr.mxu0 %v3984
        %4258 = vmatpush1.msra.mxu0 %v3983
        %4259 = vmatprep.subr.mxu0 %v3982
        %4260 = vmatpush1.msra.mxu0 %v3981
        %4261 = vmatprep.subr.mxu0 %v3980
        %4262 = vmatpush1.msra.mxu0 %v3979
        %4263 = vmatprep.subr.mxu0 %v3978
        %4264 = vmatpush1.msra.mxu0 %v3977
        %4265 = vmatprep.subr.mxu0 %v3976
        %4266 = vmatpush1.msra.mxu0 %v3975
        %4267 = vmatprep.subr.mxu0 %v3974
        %4268 = vmatpush1.msra.mxu0 %v3973
        %4269 = vmatprep.subr.mxu0 %v3972
        %4270 = vmatpush1.msra.mxu0 %v3971
        %4271 = vmatprep.subr.mxu0 %v4034
        %4272 = vmatpush2.msra.mxu0 %v4033
        %4273 = vmatprep.subr.mxu0 %v4032
        %4274 = vmatpush2.msra.mxu0 %v4031
        %4275 = vmatprep.subr.mxu0 %v4030
        %4276 = vmatpush2.msra.mxu0 %v4029
        %4277 = vmatprep.subr.mxu0 %v4028
        %4278 = vmatpush2.msra.mxu0 %v4027
        %4279 = vmatprep.subr.mxu0 %v4026
        %4280 = vmatpush2.msra.mxu0 %v4025
        %4281 = vmatprep.subr.mxu0 %v4024
        %4282 = vmatpush2.msra.mxu0 %v4023
        %4283 = vmatprep.subr.mxu0 %v4022
        %4284 = vmatpush2.msra.mxu0 %v4021
        %4285 = vmatprep.subr.mxu0 %v4020
        %4286 = vmatpush2.msra.mxu0 %v4019
        %4287 = vmatprep.subr.mxu0 %v4018
        %4288 = vmatpush2.msra.mxu0 %v4017
        %4289 = vmatprep.subr.mxu0 %v4016
        %4290 = vmatpush2.msra.mxu0 %v4015
        %4291 = vmatprep.subr.mxu0 %v4014
        %4292 = vmatpush2.msra.mxu0 %v4013
        %4293 = vmatprep.subr.mxu0 %v4012
        %4294 = vmatpush2.msra.mxu0 %v4011
        %4295 = vmatprep.subr.mxu0 %v4010
        %4296 = vmatpush2.msra.mxu0 %v4009
        %4297 = vmatprep.subr.mxu0 %v4008
        %4298 = vmatpush2.msra.mxu0 %v4007
        %4299 = vmatprep.subr.mxu0 %v4006
        %4300 = vmatpush2.msra.mxu0 %v4005
        %4301 = vmatprep.subr.mxu0 %v4004
        %4302 = vmatpush2.msra.mxu0 %v4003
        %4303 = vmatprep.mubr.f32.mxu0 %v3908
        %4304 = vmatmul.mubr.f32.gmra.mxu0 %v3907
        %v4305 = vpop.f32.mrf.mxu0
        %v4306 = vadd.f32 %v4232, %v4305
        %v4307 = vpop.f32.mrf.mxu0
        %v4308 = vadd.f32 %v4236, %v4307
        %4309 = vmatprep.mubr.f32.mxu0 %v3916
        %4310 = vmatmul.mubr.f32.gmra.mxu0 %v3915
        %v4311 = vpop.f32.mrf.mxu0
        %v4312 = vadd.f32 %v4232, %v4311
        %v4313 = vpop.f32.mrf.mxu0
        %v4314 = vadd.f32 %v4236, %v4313
        %4315 = vmatprep.mubr.f32.mxu0 %v3924
        %4316 = vmatmul.mubr.f32.gmra.mxu0 %v3923
        %v4317 = vpop.f32.mrf.mxu0
        %v4318 = vadd.f32 %v4232, %v4317
        %v4319 = vpop.f32.mrf.mxu0
        %v4320 = vadd.f32 %v4236, %v4319
        %4321 = vmatprep.mubr.f32.mxu0 %v3932
        %4322 = vmatmul.mubr.f32.gmra.mxu0 %v3931
        %v4323 = vpop.f32.mrf.mxu0
        %v4324 = vadd.f32 %v4232, %v4323
        %v4325 = vpop.f32.mrf.mxu0
        %v4326 = vadd.f32 %v4236, %v4325
        %4327 = vmatprep.mubr.f32.mxu0 %v3940
        %4328 = vmatmul.mubr.f32.gmra.mxu0 %v3939
        %v4329 = vpop.f32.mrf.mxu0
        %v4330 = vadd.f32 %v4232, %v4329
        %v4331 = vpop.f32.mrf.mxu0
        %v4332 = vadd.f32 %v4236, %v4331
        %4333 = vmatprep.mubr.f32.mxu0 %v3948
        %4334 = vmatmul.mubr.f32.gmra.mxu0 %v3947
        %v4335 = vpop.f32.mrf.mxu0
        %v4336 = vadd.f32 %v4232, %v4335
        %v4337 = vpop.f32.mrf.mxu0
        %v4338 = vadd.f32 %v4236, %v4337
        %4339 = vmatprep.mubr.f32.mxu0 %v3956
        %4340 = vmatmul.mubr.f32.gmra.mxu0 %v3955
        %v4341 = vpop.f32.mrf.mxu0
        %v4342 = vadd.f32 %v4232, %v4341
        %v4343 = vpop.f32.mrf.mxu0
        %v4344 = vadd.f32 %v4236, %v4343
        %4345 = vmatprep.mubr.f32.mxu0 %v3964
        %4346 = vmatmul.mubr.f32.gmra.mxu0 %v3963
        %v4347 = vpop.f32.mrf.mxu0
        %v4348 = vadd.f32 %v4232, %v4347
        %v4349 = vpop.f32.mrf.mxu0
        %v4350 = vadd.f32 %v4236, %v4349
        %4351 = vdwg.mxu0
        %4352 = vmatprep.subr.mxu0 %v4066
        %4353 = vmatpush1.msra.mxu0 %v4065
        %4354 = vmatprep.subr.mxu0 %v4064
        %4355 = vmatpush1.msra.mxu0 %v4063
        %4356 = vmatprep.subr.mxu0 %v4062
        %4357 = vmatpush1.msra.mxu0 %v4061
        %4358 = vmatprep.subr.mxu0 %v4060
        %4359 = vmatpush1.msra.mxu0 %v4059
        %4360 = vmatprep.subr.mxu0 %v4058
        %4361 = vmatpush1.msra.mxu0 %v4057
        %4362 = vmatprep.subr.mxu0 %v4056
        %4363 = vmatpush1.msra.mxu0 %v4055
        %4364 = vmatprep.subr.mxu0 %v4054
        %4365 = vmatpush1.msra.mxu0 %v4053
        %4366 = vmatprep.subr.mxu0 %v4052
        %4367 = vmatpush1.msra.mxu0 %v4051
        %4368 = vmatprep.subr.mxu0 %v4050
        %4369 = vmatpush1.msra.mxu0 %v4049
        %4370 = vmatprep.subr.mxu0 %v4048
        %4371 = vmatpush1.msra.mxu0 %v4047
        %4372 = vmatprep.subr.mxu0 %v4046
        %4373 = vmatpush1.msra.mxu0 %v4045
        %4374 = vmatprep.subr.mxu0 %v4044
        %4375 = vmatpush1.msra.mxu0 %v4043
        %4376 = vmatprep.subr.mxu0 %v4042
        %4377 = vmatpush1.msra.mxu0 %v4041
        %4378 = vmatprep.subr.mxu0 %v4040
        %4379 = vmatpush1.msra.mxu0 %v4039
        %4380 = vmatprep.subr.mxu0 %v4038
        %4381 = vmatpush1.msra.mxu0 %v4037
        %4382 = vmatprep.subr.mxu0 %v4036
        %4383 = vmatpush1.msra.mxu0 %v4035
        %4384 = vmatprep.subr.mxu0 %v4098
        %4385 = vmatpush2.msra.mxu0 %v4097
        %4386 = vmatprep.subr.mxu0 %v4096
        %4387 = vmatpush2.msra.mxu0 %v4095
        %4388 = vmatprep.subr.mxu0 %v4094
        %4389 = vmatpush2.msra.mxu0 %v4093
        %4390 = vmatprep.subr.mxu0 %v4092
        %4391 = vmatpush2.msra.mxu0 %v4091
        %4392 = vmatprep.subr.mxu0 %v4090
        %4393 = vmatpush2.msra.mxu0 %v4089
        %4394 = vmatprep.subr.mxu0 %v4088
        %4395 = vmatpush2.msra.mxu0 %v4087
        %4396 = vmatprep.subr.mxu0 %v4086
        %4397 = vmatpush2.msra.mxu0 %v4085
        %4398 = vmatprep.subr.mxu0 %v4084
        %4399 = vmatpush2.msra.mxu0 %v4083
        %4400 = vmatprep.subr.mxu0 %v4082
        %4401 = vmatpush2.msra.mxu0 %v4081
        %4402 = vmatprep.subr.mxu0 %v4080
        %4403 = vmatpush2.msra.mxu0 %v4079
        %4404 = vmatprep.subr.mxu0 %v4078
        %4405 = vmatpush2.msra.mxu0 %v4077
        %4406 = vmatprep.subr.mxu0 %v4076
        %4407 = vmatpush2.msra.mxu0 %v4075
        %4408 = vmatprep.subr.mxu0 %v4074
        %4409 = vmatpush2.msra.mxu0 %v4073
        %4410 = vmatprep.subr.mxu0 %v4072
        %4411 = vmatpush2.msra.mxu0 %v4071
        %4412 = vmatprep.subr.mxu0 %v4070
        %4413 = vmatpush2.msra.mxu0 %v4069
        %4414 = vmatprep.subr.mxu0 %v4068
        %4415 = vmatpush2.msra.mxu0 %v4067
        %4416 = vmatprep.mubr.f32.mxu0 %v3910
        %4417 = vmatmul.mubr.f32.gmra.mxu0 %v3909
        %v4418 = vpop.f32.mrf.mxu0
        %v4419 = vadd.f32 %v4306, %v4418
        %v4420 = vpop.f32.mrf.mxu0
        %v4421 = vadd.f32 %v4308, %v4420
        %4422 = vmatprep.mubr.f32.mxu0 %v3918
        %4423 = vmatmul.mubr.f32.gmra.mxu0 %v3917
        %v4424 = vpop.f32.mrf.mxu0
        %v4425 = vadd.f32 %v4312, %v4424
        %v4426 = vpop.f32.mrf.mxu0
        %v4427 = vadd.f32 %v4314, %v4426
        %4428 = vmatprep.mubr.f32.mxu0 %v3926
        %4429 = vmatmul.mubr.f32.gmra.mxu0 %v3925
        %v4430 = vpop.f32.mrf.mxu0
        %v4431 = vadd.f32 %v4318, %v4430
        %v4432 = vpop.f32.mrf.mxu0
        %v4433 = vadd.f32 %v4320, %v4432
        %4434 = vmatprep.mubr.f32.mxu0 %v3934
        %4435 = vmatmul.mubr.f32.gmra.mxu0 %v3933
        %v4436 = vpop.f32.mrf.mxu0
        %v4437 = vadd.f32 %v4324, %v4436
        %v4438 = vpop.f32.mrf.mxu0
        %v4439 = vadd.f32 %v4326, %v4438
        %4440 = vmatprep.mubr.f32.mxu0 %v3942
        %4441 = vmatmul.mubr.f32.gmra.mxu0 %v3941
        %v4442 = vpop.f32.mrf.mxu0
        %v4443 = vadd.f32 %v4330, %v4442
        %v4444 = vpop.f32.mrf.mxu0
        %v4445 = vadd.f32 %v4332, %v4444
        %4446 = vmatprep.mubr.f32.mxu0 %v3950
        %4447 = vmatmul.mubr.f32.gmra.mxu0 %v3949
        %v4448 = vpop.f32.mrf.mxu0
        %v4449 = vadd.f32 %v4336, %v4448
        %v4450 = vpop.f32.mrf.mxu0
        %v4451 = vadd.f32 %v4338, %v4450
        %4452 = vmatprep.mubr.f32.mxu0 %v3958
        %4453 = vmatmul.mubr.f32.gmra.mxu0 %v3957
        %v4454 = vpop.f32.mrf.mxu0
        %v4455 = vadd.f32 %v4342, %v4454
        %v4456 = vpop.f32.mrf.mxu0
        %v4457 = vadd.f32 %v4344, %v4456
        %4458 = vmatprep.mubr.f32.mxu0 %v3966
        %4459 = vmatmul.mubr.f32.gmra.mxu0 %v3965
        %v4460 = vpop.f32.mrf.mxu0
        %v4461 = vadd.f32 %v4348, %v4460
        %v4462 = vpop.f32.mrf.mxu0
        %v4463 = vadd.f32 %v4350, %v4462
        %4464 = vdwg.mxu0
        %4465 = vmatprep.subr.mxu0 %v4130
        %4466 = vmatpush1.msra.mxu0 %v4129
        %4467 = vmatprep.subr.mxu0 %v4128
        %4468 = vmatpush1.msra.mxu0 %v4127
        %4469 = vmatprep.subr.mxu0 %v4126
        %4470 = vmatpush1.msra.mxu0 %v4125
        %4471 = vmatprep.subr.mxu0 %v4124
        %4472 = vmatpush1.msra.mxu0 %v4123
        %4473 = vmatprep.subr.mxu0 %v4122
        %4474 = vmatpush1.msra.mxu0 %v4121
        %4475 = vmatprep.subr.mxu0 %v4120
        %4476 = vmatpush1.msra.mxu0 %v4119
        %4477 = vmatprep.subr.mxu0 %v4118
        %4478 = vmatpush1.msra.mxu0 %v4117
        %4479 = vmatprep.subr.mxu0 %v4116
        %4480 = vmatpush1.msra.mxu0 %v4115
        %4481 = vmatprep.subr.mxu0 %v4114
        %4482 = vmatpush1.msra.mxu0 %v4113
        %4483 = vmatprep.subr.mxu0 %v4112
        %4484 = vmatpush1.msra.mxu0 %v4111
        %4485 = vmatprep.subr.mxu0 %v4110
        %4486 = vmatpush1.msra.mxu0 %v4109
        %4487 = vmatprep.subr.mxu0 %v4108
        %4488 = vmatpush1.msra.mxu0 %v4107
        %4489 = vmatprep.subr.mxu0 %v4106
        %4490 = vmatpush1.msra.mxu0 %v4105
        %4491 = vmatprep.subr.mxu0 %v4104
        %4492 = vmatpush1.msra.mxu0 %v4103
        %4493 = vmatprep.subr.mxu0 %v4102
        %4494 = vmatpush1.msra.mxu0 %v4101
        %4495 = vmatprep.subr.mxu0 %v4100
        %4496 = vmatpush1.msra.mxu0 %v4099
        %4497 = vmatprep.subr.mxu0 %v4162
        %4498 = vmatpush2.msra.mxu0 %v4161
        %4499 = vmatprep.subr.mxu0 %v4160
        %4500 = vmatpush2.msra.mxu0 %v4159
        %4501 = vmatprep.subr.mxu0 %v4158
        %4502 = vmatpush2.msra.mxu0 %v4157
        %4503 = vmatprep.subr.mxu0 %v4156
        %4504 = vmatpush2.msra.mxu0 %v4155
        %4505 = vmatprep.subr.mxu0 %v4154
        %4506 = vmatpush2.msra.mxu0 %v4153
        %4507 = vmatprep.subr.mxu0 %v4152
        %4508 = vmatpush2.msra.mxu0 %v4151
        %4509 = vmatprep.subr.mxu0 %v4150
        %4510 = vmatpush2.msra.mxu0 %v4149
        %4511 = vmatprep.subr.mxu0 %v4148
        %4512 = vmatpush2.msra.mxu0 %v4147
        %4513 = vmatprep.subr.mxu0 %v4146
        %4514 = vmatpush2.msra.mxu0 %v4145
        %4515 = vmatprep.subr.mxu0 %v4144
        %4516 = vmatpush2.msra.mxu0 %v4143
        %4517 = vmatprep.subr.mxu0 %v4142
        %4518 = vmatpush2.msra.mxu0 %v4141
        %4519 = vmatprep.subr.mxu0 %v4140
        %4520 = vmatpush2.msra.mxu0 %v4139
        %4521 = vmatprep.subr.mxu0 %v4138
        %4522 = vmatpush2.msra.mxu0 %v4137
        %4523 = vmatprep.subr.mxu0 %v4136
        %4524 = vmatpush2.msra.mxu0 %v4135
        %4525 = vmatprep.subr.mxu0 %v4134
        %4526 = vmatpush2.msra.mxu0 %v4133
        %4527 = vmatprep.subr.mxu0 %v4132
        %4528 = vmatpush2.msra.mxu0 %v4131
        %4529 = vmatprep.mubr.f32.mxu0 %v3912
        %4530 = vmatmul.mubr.f32.gmra.mxu0 %v3911
        %v4531 = vpop.f32.mrf.mxu0
        %v4532 = vadd.f32 %v4419, %v4531
        %v4533 = vpop.f32.mrf.mxu0
        %v4534 = vadd.f32 %v4421, %v4533
        %4535 = vmatprep.mubr.f32.mxu0 %v3920
        %4536 = vmatmul.mubr.f32.gmra.mxu0 %v3919
        %v4537 = vpop.f32.mrf.mxu0
        %v4538 = vadd.f32 %v4425, %v4537
        %v4539 = vpop.f32.mrf.mxu0
        %v4540 = vadd.f32 %v4427, %v4539
        %4541 = vmatprep.mubr.f32.mxu0 %v3928
        %4542 = vmatmul.mubr.f32.gmra.mxu0 %v3927
        %v4543 = vpop.f32.mrf.mxu0
        %v4544 = vadd.f32 %v4431, %v4543
        %v4545 = vpop.f32.mrf.mxu0
        %v4546 = vadd.f32 %v4433, %v4545
        %4547 = vmatprep.mubr.f32.mxu0 %v3936
        %4548 = vmatmul.mubr.f32.gmra.mxu0 %v3935
        %v4549 = vpop.f32.mrf.mxu0
        %v4550 = vadd.f32 %v4437, %v4549
        %v4551 = vpop.f32.mrf.mxu0
        %v4552 = vadd.f32 %v4439, %v4551
        %4553 = vmatprep.mubr.f32.mxu0 %v3944
        %4554 = vmatmul.mubr.f32.gmra.mxu0 %v3943
        %v4555 = vpop.f32.mrf.mxu0
        %v4556 = vadd.f32 %v4443, %v4555
        %v4557 = vpop.f32.mrf.mxu0
        %v4558 = vadd.f32 %v4445, %v4557
        %4559 = vmatprep.mubr.f32.mxu0 %v3952
        %4560 = vmatmul.mubr.f32.gmra.mxu0 %v3951
        %v4561 = vpop.f32.mrf.mxu0
        %v4562 = vadd.f32 %v4449, %v4561
        %v4563 = vpop.f32.mrf.mxu0
        %v4564 = vadd.f32 %v4451, %v4563
        %4565 = vmatprep.mubr.f32.mxu0 %v3960
        %4566 = vmatmul.mubr.f32.gmra.mxu0 %v3959
        %v4567 = vpop.f32.mrf.mxu0
        %v4568 = vadd.f32 %v4455, %v4567
        %v4569 = vpop.f32.mrf.mxu0
        %v4570 = vadd.f32 %v4457, %v4569
        %4571 = vmatprep.mubr.f32.mxu0 %v3968
        %4572 = vmatmul.mubr.f32.gmra.mxu0 %v3967
        %v4573 = vpop.f32.mrf.mxu0
        %v4574 = vadd.f32 %v4461, %v4573
        %v4575 = vpop.f32.mrf.mxu0
        %v4576 = vadd.f32 %v4463, %v4575
        %4577 = vdwg.mxu0
        %4578 = vmatprep.subr.mxu0 %v4194
        %4579 = vmatpush1.msra.mxu0 %v4193
        %4580 = vmatprep.subr.mxu0 %v4192
        %4581 = vmatpush1.msra.mxu0 %v4191
        %4582 = vmatprep.subr.mxu0 %v4190
        %4583 = vmatpush1.msra.mxu0 %v4189
        %4584 = vmatprep.subr.mxu0 %v4188
        %4585 = vmatpush1.msra.mxu0 %v4187
        %4586 = vmatprep.subr.mxu0 %v4186
        %4587 = vmatpush1.msra.mxu0 %v4185
        %4588 = vmatprep.subr.mxu0 %v4184
        %4589 = vmatpush1.msra.mxu0 %v4183
        %4590 = vmatprep.subr.mxu0 %v4182
        %4591 = vmatpush1.msra.mxu0 %v4181
        %4592 = vmatprep.subr.mxu0 %v4180
        %4593 = vmatpush1.msra.mxu0 %v4179
        %4594 = vmatprep.subr.mxu0 %v4178
        %4595 = vmatpush1.msra.mxu0 %v4177
        %4596 = vmatprep.subr.mxu0 %v4176
        %4597 = vmatpush1.msra.mxu0 %v4175
        %4598 = vmatprep.subr.mxu0 %v4174
        %4599 = vmatpush1.msra.mxu0 %v4173
        %4600 = vmatprep.subr.mxu0 %v4172
        %4601 = vmatpush1.msra.mxu0 %v4171
        %4602 = vmatprep.subr.mxu0 %v4170
        %4603 = vmatpush1.msra.mxu0 %v4169
        %4604 = vmatprep.subr.mxu0 %v4168
        %4605 = vmatpush1.msra.mxu0 %v4167
        %4606 = vmatprep.subr.mxu0 %v4166
        %4607 = vmatpush1.msra.mxu0 %v4165
        %4608 = vmatprep.subr.mxu0 %v4164
        %4609 = vmatpush1.msra.mxu0 %v4163
        %4610 = vmatprep.subr.mxu0 %v4226
        %4611 = vmatpush2.msra.mxu0 %v4225
        %4612 = vmatprep.subr.mxu0 %v4224
        %4613 = vmatpush2.msra.mxu0 %v4223
        %4614 = vmatprep.subr.mxu0 %v4222
        %4615 = vmatpush2.msra.mxu0 %v4221
        %4616 = vmatprep.subr.mxu0 %v4220
        %4617 = vmatpush2.msra.mxu0 %v4219
        %4618 = vmatprep.subr.mxu0 %v4218
        %4619 = vmatpush2.msra.mxu0 %v4217
        %4620 = vmatprep.subr.mxu0 %v4216
        %4621 = vmatpush2.msra.mxu0 %v4215
        %4622 = vmatprep.subr.mxu0 %v4214
        %4623 = vmatpush2.msra.mxu0 %v4213
        %4624 = vmatprep.subr.mxu0 %v4212
        %4625 = vmatpush2.msra.mxu0 %v4211
        %4626 = vmatprep.subr.mxu0 %v4210
        %4627 = vmatpush2.msra.mxu0 %v4209
        %4628 = vmatprep.subr.mxu0 %v4208
        %4629 = vmatpush2.msra.mxu0 %v4207
        %4630 = vmatprep.subr.mxu0 %v4206
        %4631 = vmatpush2.msra.mxu0 %v4205
        %4632 = vmatprep.subr.mxu0 %v4204
        %4633 = vmatpush2.msra.mxu0 %v4203
        %4634 = vmatprep.subr.mxu0 %v4202
        %4635 = vmatpush2.msra.mxu0 %v4201
        %4636 = vmatprep.subr.mxu0 %v4200
        %4637 = vmatpush2.msra.mxu0 %v4199
        %4638 = vmatprep.subr.mxu0 %v4198
        %4639 = vmatpush2.msra.mxu0 %v4197
        %4640 = vmatprep.subr.mxu0 %v4196
        %4641 = vmatpush2.msra.mxu0 %v4195
        %4642 = vmatprep.mubr.f32.mxu0 %v3914
        %4643 = vmatmul.mubr.f32.gmra.mxu0 %v3913
        %v4644 = vpop.f32.mrf.mxu0
        %v4645 = vadd.f32 %v4532, %v4644
        %v4646 = vpop.f32.mrf.mxu0
        %v4647 = vadd.f32 %v4534, %v4646
        %4648 = vmatprep.mubr.f32.mxu0 %v3922
        %4649 = vmatmul.mubr.f32.gmra.mxu0 %v3921
        %v4650 = vpop.f32.mrf.mxu0
        %v4651 = vadd.f32 %v4538, %v4650
        %v4652 = vpop.f32.mrf.mxu0
        %v4653 = vadd.f32 %v4540, %v4652
        %4654 = vmatprep.mubr.f32.mxu0 %v3930
        %4655 = vmatmul.mubr.f32.gmra.mxu0 %v3929
        %v4656 = vpop.f32.mrf.mxu0
        %v4657 = vadd.f32 %v4544, %v4656
        %v4658 = vpop.f32.mrf.mxu0
        %v4659 = vadd.f32 %v4546, %v4658
        %4660 = vmatprep.mubr.f32.mxu0 %v3938
        %4661 = vmatmul.mubr.f32.gmra.mxu0 %v3937
        %v4662 = vpop.f32.mrf.mxu0
        %v4663 = vadd.f32 %v4550, %v4662
        %v4664 = vpop.f32.mrf.mxu0
        %v4665 = vadd.f32 %v4552, %v4664
        %4666 = vmatprep.mubr.f32.mxu0 %v3946
        %4667 = vmatmul.mubr.f32.gmra.mxu0 %v3945
        %v4668 = vpop.f32.mrf.mxu0
        %v4669 = vadd.f32 %v4556, %v4668
        %v4670 = vpop.f32.mrf.mxu0
        %v4671 = vadd.f32 %v4558, %v4670
        %4672 = vmatprep.mubr.f32.mxu0 %v3954
        %4673 = vmatmul.mubr.f32.gmra.mxu0 %v3953
        %v4674 = vpop.f32.mrf.mxu0
        %v4675 = vadd.f32 %v4562, %v4674
        %v4676 = vpop.f32.mrf.mxu0
        %v4677 = vadd.f32 %v4564, %v4676
        %4678 = vmatprep.mubr.f32.mxu0 %v3962
        %4679 = vmatmul.mubr.f32.gmra.mxu0 %v3961
        %v4680 = vpop.f32.mrf.mxu0
        %v4681 = vadd.f32 %v4568, %v4680
        %v4682 = vpop.f32.mrf.mxu0
        %v4683 = vadd.f32 %v4570, %v4682
        %4684 = vmatprep.mubr.f32.mxu0 %v3970
        %4685 = vmatmul.mubr.f32.gmra.mxu0 %v3969
        %v4686 = vpop.f32.mrf.mxu0
        %v4687 = vadd.f32 %v4574, %v4686
        %v4688 = vpop.f32.mrf.mxu0
        %v4689 = vadd.f32 %v4576, %v4688
        %4690 = vdwg.mxu0
        %v4691 = vadd.f32 %v2941, %v4645
        %v4692 = vadd.f32 %v2942, %v4647
        %v4693 = vadd.f32 %v2943, %v4651
        %v4694 = vadd.f32 %v2944, %v4653
        %v4695 = vadd.f32 %v2945, %v4657
        %v4696 = vadd.f32 %v2946, %v4659
        %v4697 = vadd.f32 %v2947, %v4663
        %v4698 = vadd.f32 %v2948, %v4665
        %v4699 = vadd.f32 %v2949, %v4669
        %v4700 = vadd.f32 %v2950, %v4671
        %v4701 = vadd.f32 %v2951, %v4675
        %v4702 = vadd.f32 %v2952, %v4677
        %v4703 = vadd.f32 %v2953, %v4681
        %v4704 = vadd.f32 %v2954, %v4683
        %v4705 = vadd.f32 %v2955, %v4687
        %v4706 = vadd.f32 %v2956, %v4689
        %4707 = vst [vmem:[#allocation2] sm:$0xff] %v4691
        %4708 = vst [vmem:[#allocation2 + $0x8] sm:$0xff] %v4692
        %4709 = vst [vmem:[#allocation2 + $0x10] sm:$0xff] %v4693
        %4710 = vst [vmem:[#allocation2 + $0x18] sm:$0xff] %v4694
        %4711 = vst [vmem:[#allocation2 + $0x20] sm:$0xff] %v4695
        %4712 = vst [vmem:[#allocation2 + $0x28] sm:$0xff] %v4696
        %4713 = vst [vmem:[#allocation2 + $0x30] sm:$0xff] %v4697
        %4714 = vst [vmem:[#allocation2 + $0x38] sm:$0xff] %v4698
        %4715 = vst [vmem:[#allocation2 + $0x40] sm:$0xff] %v4699
        %4716 = vst [vmem:[#allocation2 + $0x48] sm:$0xff] %v4700
        %4717 = vst [vmem:[#allocation2 + $0x50] sm:$0xff] %v4701
        %4718 = vst [vmem:[#allocation2 + $0x58] sm:$0xff] %v4702
        %4719 = vst [vmem:[#allocation2 + $0x60] sm:$0xff] %v4703
        %4720 = vst [vmem:[#allocation2 + $0x68] sm:$0xff] %v4704
        %4721 = vst [vmem:[#allocation2 + $0x70] sm:$0xff] %v4705
        %4722 = vst [vmem:[#allocation2 + $0x78] sm:$0xff] %v4706
        %p4723 = scmp.eq.s32.totalorder %s46, 7
        // Predicated region
        $region137: #{tpu_custom_call.1} parent=75 // pred_check
          %p4724 = pneg %p4723
        $region138: #{tpu_custom_call.1} parent=75 // pred_check_branch
          %4726 = sbr.rel (%p4724) target = $region140
        $region139: #{tpu_custom_call.1} parent=75 // pred_region
          %v4727 = vld [vmem:[#allocation23] sm:$0xff]
          %v4728 = vld [vmem:[#allocation23 + $0x8] sm:$0xff]
          %v4729 = vld [vmem:[#allocation23 + $0x10] sm:$0xff]
          %v4730 = vld [vmem:[#allocation23 + $0x18] sm:$0xff]
          %v4731 = vld [vmem:[#allocation23 + $0x20] sm:$0xff]
          %v4732 = vld [vmem:[#allocation23 + $0x28] sm:$0xff]
          %v4733 = vld [vmem:[#allocation23 + $0x30] sm:$0xff]
          %v4734 = vld [vmem:[#allocation23 + $0x38] sm:$0xff]
          %v4735 = vld [vmem:[#allocation23 + $0x40] sm:$0xff]
          %v4736 = vld [vmem:[#allocation23 + $0x48] sm:$0xff]
          %v4737 = vld [vmem:[#allocation23 + $0x50] sm:$0xff]
          %v4738 = vld [vmem:[#allocation23 + $0x58] sm:$0xff]
          %v4739 = vld [vmem:[#allocation23 + $0x60] sm:$0xff]
          %v4740 = vld [vmem:[#allocation23 + $0x68] sm:$0xff]
          %v4741 = vld [vmem:[#allocation23 + $0x70] sm:$0xff]
          %v4742 = vld [vmem:[#allocation23 + $0x78] sm:$0xff]
          %v4743 = vld [vmem:[#allocation23 + $0x80] sm:$0xff]
          %v4744 = vld [vmem:[#allocation23 + $0x88] sm:$0xff]
          %v4745 = vld [vmem:[#allocation23 + $0x90] sm:$0xff]
          %v4746 = vld [vmem:[#allocation23 + $0x98] sm:$0xff]
          %v4747 = vld [vmem:[#allocation23 + $0xa0] sm:$0xff]
          %v4748 = vld [vmem:[#allocation23 + $0xa8] sm:$0xff]
          %v4749 = vld [vmem:[#allocation23 + $0xb0] sm:$0xff]
          %v4750 = vld [vmem:[#allocation23 + $0xb8] sm:$0xff]
          %v4751 = vld [vmem:[#allocation23 + $0xc0] sm:$0xff]
          %v4752 = vld [vmem:[#allocation23 + $0xc8] sm:$0xff]
          %v4753 = vld [vmem:[#allocation23 + $0xd0] sm:$0xff]
          %v4754 = vld [vmem:[#allocation23 + $0xd8] sm:$0xff]
          %v4755 = vld [vmem:[#allocation23 + $0xe0] sm:$0xff]
          %v4756 = vld [vmem:[#allocation23 + $0xe8] sm:$0xff]
          %v4757 = vld [vmem:[#allocation23 + $0xf0] sm:$0xff]
          %v4758 = vld [vmem:[#allocation23 + $0xf8] sm:$0xff]
          %v4759 = vld [vmem:[#allocation24] sm:$0x1]
          %v4761 = vlaneseq
          %v4762 = vshrl.u32 %v4761, 7
          %v4763 = vsub.s32 0, %v4762
          %v4764 = vrot.slane %v4759, %v4763
          %4766 = vmatprep.subr.mxu0 0.0
          %4767 = vmatpush1.msra.mxu0 %v4742
          %4768 = vmatprep.subr.mxu0 0.0
          %4769 = vmatpush1.msra.mxu0 %v4741
          %4770 = vmatprep.subr.mxu0 0.0
          %4771 = vmatpush1.msra.mxu0 %v4740
          %4772 = vmatprep.subr.mxu0 0.0
          %4773 = vmatpush1.msra.mxu0 %v4739
          %4774 = vmatprep.subr.mxu0 0.0
          %4775 = vmatpush1.msra.mxu0 %v4738
          %4776 = vmatprep.subr.mxu0 0.0
          %4777 = vmatpush1.msra.mxu0 %v4737
          %4778 = vmatprep.subr.mxu0 0.0
          %4779 = vmatpush1.msra.mxu0 %v4736
          %4780 = vmatprep.subr.mxu0 0.0
          %4781 = vmatpush1.msra.mxu0 %v4735
          %4782 = vmatprep.subr.mxu0 0.0
          %4783 = vmatpush1.msra.mxu0 %v4734
          %4784 = vmatprep.subr.mxu0 0.0
          %4785 = vmatpush1.msra.mxu0 %v4733
          %4786 = vmatprep.subr.mxu0 0.0
          %4787 = vmatpush1.msra.mxu0 %v4732
          %4788 = vmatprep.subr.mxu0 0.0
          %4789 = vmatpush1.msra.mxu0 %v4731
          %4790 = vmatprep.subr.mxu0 0.0
          %4791 = vmatpush1.msra.mxu0 %v4730
          %4792 = vmatprep.subr.mxu0 0.0
          %4793 = vmatpush1.msra.mxu0 %v4729
          %4794 = vmatprep.subr.mxu0 0.0
          %4795 = vmatpush1.msra.mxu0 %v4728
          %4796 = vmatprep.subr.mxu0 0.0
          %4797 = vmatpush1.msra.mxu0 %v4727
          %4798 = vmatprep.subr.mxu0 0.0
          %4799 = vmatpush2.msra.mxu0 %v4758
          %4800 = vmatprep.subr.mxu0 0.0
          %4801 = vmatpush2.msra.mxu0 %v4757
          %4802 = vmatprep.subr.mxu0 0.0
          %4803 = vmatpush2.msra.mxu0 %v4756
          %4804 = vmatprep.subr.mxu0 0.0
          %4805 = vmatpush2.msra.mxu0 %v4755
          %4806 = vmatprep.subr.mxu0 0.0
          %4807 = vmatpush2.msra.mxu0 %v4754
          %4808 = vmatprep.subr.mxu0 0.0
          %4809 = vmatpush2.msra.mxu0 %v4753
          %4810 = vmatprep.subr.mxu0 0.0
          %4811 = vmatpush2.msra.mxu0 %v4752
          %4812 = vmatprep.subr.mxu0 0.0
          %4813 = vmatpush2.msra.mxu0 %v4751
          %4814 = vmatprep.subr.mxu0 0.0
          %4815 = vmatpush2.msra.mxu0 %v4750
          %4816 = vmatprep.subr.mxu0 0.0
          %4817 = vmatpush2.msra.mxu0 %v4749
          %4818 = vmatprep.subr.mxu0 0.0
          %4819 = vmatpush2.msra.mxu0 %v4748
          %4820 = vmatprep.subr.mxu0 0.0
          %4821 = vmatpush2.msra.mxu0 %v4747
          %4822 = vmatprep.subr.mxu0 0.0
          %4823 = vmatpush2.msra.mxu0 %v4746
          %4824 = vmatprep.subr.mxu0 0.0
          %4825 = vmatpush2.msra.mxu0 %v4745
          %4826 = vmatprep.subr.mxu0 0.0
          %4827 = vmatpush2.msra.mxu0 %v4744
          %4828 = vmatprep.subr.mxu0 0.0
          %4829 = vmatpush2.msra.mxu0 %v4743
          %4830 = vmatprep.mubr.f32.mxu0 %v4692
          %4831 = vmatmul.mubr.f32.gmra.mxu0 %v4691
          %v4832 = vpop.f32.mrf.mxu0
          %v4833 = vadd.f32 %v4764, %v4832
          %v4834 = vpop.f32.mrf.mxu0
          %4835 = vmatprep.mubr.f32.mxu0 %v4694
          %4836 = vmatmul.mubr.f32.gmra.mxu0 %v4693
          %v4837 = vpop.f32.mrf.mxu0
          %v4838 = vadd.f32 %v4764, %v4837
          %v4839 = vpop.f32.mrf.mxu0
          %4840 = vmatprep.mubr.f32.mxu0 %v4696
          %4841 = vmatmul.mubr.f32.gmra.mxu0 %v4695
          %v4842 = vpop.f32.mrf.mxu0
          %v4843 = vadd.f32 %v4764, %v4842
          %v4844 = vpop.f32.mrf.mxu0
          %4845 = vmatprep.mubr.f32.mxu0 %v4698
          %4846 = vmatmul.mubr.f32.gmra.mxu0 %v4697
          %v4847 = vpop.f32.mrf.mxu0
          %v4848 = vadd.f32 %v4764, %v4847
          %v4849 = vpop.f32.mrf.mxu0
          %4850 = vmatprep.mubr.f32.mxu0 %v4700
          %4851 = vmatmul.mubr.f32.gmra.mxu0 %v4699
          %v4852 = vpop.f32.mrf.mxu0
          %v4853 = vadd.f32 %v4764, %v4852
          %v4854 = vpop.f32.mrf.mxu0
          %4855 = vmatprep.mubr.f32.mxu0 %v4702
          %4856 = vmatmul.mubr.f32.gmra.mxu0 %v4701
          %v4857 = vpop.f32.mrf.mxu0
          %v4858 = vadd.f32 %v4764, %v4857
          %v4859 = vpop.f32.mrf.mxu0
          %4860 = vmatprep.mubr.f32.mxu0 %v4704
          %4861 = vmatmul.mubr.f32.gmra.mxu0 %v4703
          %v4862 = vpop.f32.mrf.mxu0
          %v4863 = vadd.f32 %v4764, %v4862
          %v4864 = vpop.f32.mrf.mxu0
          %4865 = vmatprep.mubr.f32.mxu0 %v4706
          %4866 = vmatmul.mubr.f32.gmra.mxu0 %v4705
          %v4867 = vpop.f32.mrf.mxu0
          %v4868 = vadd.f32 %v4764, %v4867
          %v4869 = vpop.f32.mrf.mxu0
          %4870 = vdwg.mxu0
          %4871 = vst [vmem:[#allocation26] sm:$0xff] %v4833
          %4872 = vst [vmem:[#allocation26 + $0x8] sm:$0xff] %v4838
          %4873 = vst [vmem:[#allocation26 + $0x10] sm:$0xff] %v4843
          %4874 = vst [vmem:[#allocation26 + $0x18] sm:$0xff] %v4848
          %4875 = vst [vmem:[#allocation26 + $0x20] sm:$0xff] %v4853
          %4876 = vst [vmem:[#allocation26 + $0x28] sm:$0xff] %v4858
          %4877 = vst [vmem:[#allocation26 + $0x30] sm:$0xff] %v4863
          %4878 = vst [vmem:[#allocation26 + $0x38] sm:$0xff] %v4868
        $region140: #{tpu_custom_call.1} parent=75 // pred_fallthru
          _
        // Predicated region
        $region141: #{tpu_custom_call.1} parent=75 // pred_check
          %p4879 = pneg %p408
        $region142: #{tpu_custom_call.1} parent=75 // pred_check_branch
          %4881 = sbr.rel (%p4879) target = $region144
        $region143: #{tpu_custom_call.1} parent=75 // pred_region
          %s4883 = ssub.s32 1024, 1024
          %4884 = vsyncadd [#allocation5], %s4883
          %s4885 = sshll.u32 [#allocation26], 4
          %s4886 = int_to_ptr.vmem [resolvable:$true] %s4885
          %4891 = dma.vmem_to_hbm [thread:$0]  %s4886, 1024, %s14, [#allocation5], 128, 128, 8
        $region144: #{tpu_custom_call.1} parent=75 // pred_fallthru
          _
        // Predicated region
        $region145: #{tpu_custom_call.1} parent=75 // pred_check
          %p4892 = pneg %p408
        $region146: #{tpu_custom_call.1} parent=75 // pred_check_branch
          %4894 = sbr.rel (%p4892) target = $region148
        $region147: #{tpu_custom_call.1} parent=75 // pred_region
          %4895 = dma.done [#allocation5], 1024
        $region148: #{tpu_custom_call.1} parent=75 // pred_fallthru
          _
      $region76: #{tpu_custom_call.1} parent=5 // pred_fallthru
        _
      %p4896 = scmp.le.s32.totalorder 2, %s41
      // Predicated region
      $region149: #{tpu_custom_call.1} parent=5 // pred_check
        %p4897 = pneg %p4896
      $region150: #{tpu_custom_call.1} parent=5 // pred_check_branch
        %4899 = sbr.rel (%p4897) target = $region152
      $region151: #{tpu_custom_call.1} parent=5 // pred_region
        %s4900 = ssub.s32 %s41, 2
      $region152: #{tpu_custom_call.1} parent=5 // pred_fallthru
        _
    $region6: #{tpu_custom_call.1} parent=1 // loop_footer
      %s45 = sadd.s32 1, %s41
    $region7: #{tpu_custom_call.1} parent=1 // loop_footer_branch
      %40 = sbr.rel target = $region3
    $region8: #{tpu_custom_call.1} parent=1 // loop_exit
      _
    %4901 = vsyncpa [#allocation4], 1
    %s4902 = scalar_lea.sflag [#allocation4], 1
    %4903 = vsyncpa %s4902, 1
    %4904 = vsyncpa [#allocation7], 1
    %s4905 = scalar_lea.sflag [#allocation7], 1
    %4906 = vsyncpa %s4905, 1
    %4907 = vsyncpa [#allocation10], 1
    %s4908 = scalar_lea.sflag [#allocation10], 1
    %4909 = vsyncpa %s4908, 1
    %4910 = vsyncpa [#allocation13], 1
    %s4911 = scalar_lea.sflag [#allocation13], 1
    %4912 = vsyncpa %s4911, 1
    %4913 = vsyncpa [#allocation16], 1
    %s4914 = scalar_lea.sflag [#allocation16], 1
    %4915 = vsyncpa %s4914, 1
    %4916 = vsyncpa [#allocation19], 1
    %s4917 = scalar_lea.sflag [#allocation19], 1
    %4918 = vsyncpa %s4917, 1
    %4919 = vsyncpa [#allocation22], 1
    %s4920 = scalar_lea.sflag [#allocation22], 1
    %4921 = vsyncpa %s4920, 1
    %4922 = vsyncpa [#allocation25], 1
    %4923 = vsyncpa [#allocation5], 1
    %s4924 = scalar_lea.sflag [#allocation5], 1
    %4925 = vsyncpa %s4924, 1

</llo_original>
